<compile_context>
chip_gen: v6e
topology: v6e:2x2x1
jax: 0.10.0
libtpu: 0.0.40
codegen_flags: <defaults>
</compile_context>

<pallas_src>
import math

import jax
import jax.numpy as jnp
from jax.experimental import pallas as pl
from jax.experimental.pallas import tpu as pltpu

EPS = 1e-5
LANE = 128
SUBLANE = 8
MIB = 1024 * 1024
NEG_INF = -1e30


# ---------------------------------------------------------------------------
# helpers
# ---------------------------------------------------------------------------
def _round_up(x, m):
    return (x + m - 1) // m * m


def _pad_to(x, shape):
    pads = [(0, int(s) - int(d)) for d, s in zip(x.shape, shape)]
    if any(p[1] for p in pads):
        return jnp.pad(x, pads)
    return x


def _device_kind():
    try:
        return jax.devices()[0].device_kind.lower()
    except Exception:
        return ""


def _is_v7x():
    return "7" in _device_kind()


def _phys_vmem_bytes():
    try:
        v = int(getattr(pltpu.get_tpu_info(), "vmem_capacity_bytes"))
        if v >= 32 * MIB:
            return v
    except Exception:
        pass
    return 64 * MIB if _is_v7x() else 128 * MIB


def _pick_batch_block(batch, lp, est_fn, budget, min_blocks, max_rows=1024):
    """Largest divisor Bt of batch s.t. the VMEM estimate fits, Bt*Lp <= max_rows,
    and batch//Bt >= min_blocks (v7x: keep both TensorCores fed).  Fewest batch
    blocks == per-layer weights streamed from HBM the fewest times."""
    best = 1
    for bt in range(1, batch + 1):
        if batch % bt:
            continue
        if bt > 1:
            if batch // bt < min_blocks:
                continue
            if bt * lp > max_rows:
                continue
            if est_fn(bt) > budget:
                continue
        best = bt
    return best


# ---------------------------------------------------------------------------
# fused decoder kernel (all layers + final norm) — built via closure over statics
# ---------------------------------------------------------------------------
def _make_decoder_kernel(d_real, d_pad, l_real, l_pad, s_real, s_pad,
                         has_norm, return_intermediate):
    scale = 1.0 / math.sqrt(d_real)
    inv_d = 1.0 / d_real
    f32, bf16 = jnp.float32, jnp.bfloat16

    def _ln(x, g, b, lane_mask):
        # LayerNorm over the *real* feature width.  Padded lanes of x are zero on
        # input; g/b are zero-padded so padded output lanes stay exactly zero.
        mu = jnp.sum(x, axis=-1, keepdims=True) * inv_d
        diff = x - mu
        sq = diff * diff if lane_mask is None else diff * diff * lane_mask
        var = jnp.sum(sq, axis=-1, keepdims=True) * inv_d
        return diff * jax.lax.rsqrt(var + EPS) * g + b

    def _attend(q, k, v, kmask):
        # q/k/v bf16, scores/softmax in f32; padded keys masked to -1e30.
        s = jnp.einsum("bld,bsd->bls", q, k, preferred_element_type=f32) * scale
        if kmask is not None:
            s = jnp.where(kmask, s, NEG_INF)
        s = s - jnp.max(s, axis=-1, keepdims=True)
        p = jnp.exp(s)
        p = p * pl.reciprocal(jnp.sum(p, axis=-1, keepdims=True), approx=True)
        return jnp.einsum("bls,bsd->bld", p.astype(bf16), v,
                          preferred_element_type=f32)

    def kernel(tgt_ref, mem_ref, mempos_ref, qpos_ref,
               w_sa_qk_ref, w_sa_v_ref, w_sa_o_ref, b_sa_ref,
               w_ca_ref, b_ca_ref,
               w1_ref, b1_ref, w2_ref, b2_ref,
               g_ref, be_ref, gn_ref, bn_ref,
               out_ref, x_sc):
        layer = pl.program_id(1)

        @pl.when(layer == 0)
        def _init():
            x_sc[...] = tgt_ref[...].astype(f32)

        bt, lp, dp = x_sc.shape
        ml = bt * lp
        ms = bt * s_pad

        # --- static masks, hoisted (built once per step, fully constant) ---
        lane_mask = None
        if d_pad != d_real:
            lane_mask = (jax.lax.broadcasted_iota(jnp.int32, (1, 1, d_pad), 2)
                         < d_real).astype(f32)
        sa_kmask = None
        if l_pad != l_real:
            sa_kmask = (jax.lax.broadcasted_iota(jnp.int32, (1, 1, l_pad), 2)
                        < l_real)
        ca_kmask = None
        if s_pad != s_real:
            ca_kmask = (jax.lax.broadcasted_iota(jnp.int32, (1, 1, s_pad), 2)
                        < s_real)

        qpos_bf = qpos_ref[...]                      # bf16, layer-invariant
        g = g_ref[0]                                 # (3, Dp) f32
        be = be_ref[0]
        b_sa = b_sa_ref[0]                           # (4, Dp) f32
        b_ca = b_ca_ref[0]

        x = x_sc[...]                                # f32 residual stream

        # ---------------- self-attention (fused Q/K projection) ----------------
        x_bf = x.astype(bf16)
        qk_in = (x_bf + qpos_bf).reshape(ml, dp)
        qk = jnp.dot(qk_in, w_sa_qk_ref[0], preferred_element_type=f32)
        q = (qk[:, :dp] + b_sa[0:1]).reshape(bt, lp, dp).astype(bf16)
        k = (qk[:, dp:] + b_sa[1:2]).reshape(bt, lp, dp).astype(bf16)
        v = (jnp.dot(x_bf.reshape(ml, dp), w_sa_v_ref[0],
                     preferred_element_type=f32) + b_sa[2:3]
             ).reshape(bt, lp, dp).astype(bf16)
        o = _attend(q, k, v, sa_kmask)
        sa = (jnp.dot(o.reshape(ml, dp).astype(bf16), w_sa_o_ref[0],
                      preferred_element_type=f32) + b_sa[3:4]).reshape(bt, lp, dp)
        x = _ln(x + sa, g[0:1], be[0:1], lane_mask)

        # ------------- cross-attention (bf16 memory refs used directly) --------
        x_bf = x.astype(bf16)
        q_in = (x_bf + qpos_bf).reshape(ml, dp)
        q = (jnp.dot(q_in, w_ca_ref[0, 0], preferred_element_type=f32)
             + b_ca[0:1]).reshape(bt, lp, dp).astype(bf16)
        k = (jnp.dot(mempos_ref[...].reshape(ms, dp), w_ca_ref[0, 1],
                     preferred_element_type=f32) + b_ca[1:2]
             ).reshape(bt, s_pad, dp).astype(bf16)
        v = (jnp.dot(mem_ref[...].reshape(ms, dp), w_ca_ref[0, 2],
                     preferred_element_type=f32) + b_ca[2:3]
             ).reshape(bt, s_pad, dp).astype(bf16)
        o = _attend(q, k, v, ca_kmask)
        ca = (jnp.dot(o.reshape(ml, dp).astype(bf16), w_ca_ref[0, 3],
                      preferred_element_type=f32) + b_ca[3:4]).reshape(bt, lp, dp)
        x = _ln(x + ca, g[1:2], be[1:2], lane_mask)

        # ------------------------------ feed-forward ---------------------------
        x2d = x.astype(bf16).reshape(ml, dp)
        h = jnp.maximum(
            jnp.dot(x2d, w1_ref[0], preferred_element_type=f32) + b1_ref[0], 0.0)
        ff = (jnp.dot(h.astype(bf16), w2_ref[0], preferred_element_type=f32)
              + b2_ref[0]).reshape(bt, lp, dp)
        x = _ln(x + ff, g[2:3], be[2:3], lane_mask)

        x_sc[...] = x

        if return_intermediate:
            # intermediate.append(norm(output)) — norm fused, written every layer.
            out_ref[0] = _ln(x, gn_ref[...], bn_ref[...], lane_mask
                             ).astype(out_ref.dtype)
        else:
            @pl.when(layer == pl.num_programs(1) - 1)
            def _finalize():
                y = x
                if has_norm:
                    y = _ln(y, gn_ref[...], bn_ref[...], lane_mask)
                out_ref[...] = y.astype(out_ref.dtype)

    return kernel


# ---------------------------------------------------------------------------
# wrapper — mirrors MambaDecoder.forward semantics
# ---------------------------------------------------------------------------
def mamba_decoder(tgt, memory, pos, query_pos, layer_params,
                  norm_params=None, return_intermediate=False, out_dtype=None):
    B, L, D = tgt.shape
    S = memory.shape[1]
    Dff = layer_params[0]["w1"].shape[-1]
    NL = len(layer_params)
    if return_intermediate:
        assert norm_params is not None, "return_intermediate requires a norm"

    out_dtype = tgt.dtype if out_dtype is None else out_dtype
    Dp = _round_up(D, LANE)
    Dffp = _round_up(Dff, LANE)
    Lp = _round_up(L, SUBLANE)       # sublane-aligned query length
    Sp = _round_up(S, LANE)          # lane-dense score last dim (padded keys masked)

    f32, bf16 = jnp.float32, jnp.bfloat16

    # --- layer-invariant activations: bf16, padded (zeros in padding) ---
    tgt_p = _pad_to(tgt.astype(bf16), (B, Lp, Dp))
    mem_p = _pad_to(memory.astype(bf16), (B, Sp, Dp))
    mempos_p = _pad_to((memory + pos).astype(bf16), (B, Sp, Dp))
    qpos_p = _pad_to(query_pos.astype(bf16), (B, Lp, Dp))

    # --- per-layer weights stacked on a leading layer axis; matmul weights bf16.
    # NOTE: biases / gamma / beta are ZERO-padded on the feature axis; this is what
    # keeps padded lanes exactly zero through residuals + LayerNorm.
    def stack(fn):
        return jnp.stack([fn(p) for p in layer_params])

    w_sa_qk = stack(lambda p: jnp.concatenate(                 # fused Q|K: (Dp, 2Dp)
        [_pad_to(p["w_sa"][0], (Dp, Dp)), _pad_to(p["w_sa"][1], (Dp, Dp))],
        axis=-1)).astype(bf16)
    w_sa_v = stack(lambda p: _pad_to(p["w_sa"][2], (Dp, Dp))).astype(bf16)
    w_sa_o = stack(lambda p: _pad_to(p["w_sa"][3], (Dp, Dp))).astype(bf16)
    b_sa = stack(lambda p: _pad_to(p["b_sa"], (4, Dp))).astype(f32)
    w_ca = stack(lambda p: _pad_to(p["w_ca"], (4, Dp, Dp))).astype(bf16)
    b_ca = stack(lambda p: _pad_to(p["b_ca"], (4, Dp))).astype(f32)
    w1 = stack(lambda p: _pad_to(p["w1"], (Dp, Dffp))).astype(bf16)
    b1 = stack(lambda p: _pad_to(p["b1"].reshape(1, -1), (1, Dffp))).astype(f32)
    w2 = stack(lambda p: _pad_to(p["w2"], (Dffp, Dp))).astype(bf16)
    b2 = stack(lambda p: _pad_to(p["b2"].reshape(1, -1), (1, Dp))).astype(f32)
    gamma = stack(lambda p: _pad_to(p["gamma"], (3, Dp))).astype(f32)
    beta = stack(lambda p: _pad_to(p["beta"], (3, Dp))).astype(f32)

    has_norm = norm_params is not None
    if has_norm:
        g_n = _pad_to(norm_params[0].reshape(1, -1).astype(f32), (1, Dp))
        b_n = _pad_to(norm_params[1].reshape(1, -1).astype(f32), (1, Dp))
    else:
        g_n = jnp.zeros((1, Dp), f32)
        b_n = jnp.zeros((1, Dp), f32)

    # --- generation-aware batch-block / VMEM sizing ---
    phys_vmem = max(_phys_vmem_bytes(), 64 * MIB)
    # v7x has 2 TensorCores: keep >= 2 "parallel" batch blocks so neither idles.
    min_blocks = 2 if (_is_v7x() and B >= 2) else 1
    out_bytes = jnp.dtype(out_dtype).itemsize

    def _est_vmem(bt):
        bf2, f4 = 2, 4
        w_mm = (4 * Dp * Dp + 4 * Dp * Dp + 2 * Dp * Dffp) * bf2   # sa + ca + ffn
        w_small = (4 * Dp + 4 * Dp + Dffp + Dp + 6 * Dp) * f4      # biases + ln
        weights = 2 * (w_mm + w_small)                             # double-buffered
        acts = (2 * bt * Lp + 2 * bt * Sp) * Dp * bf2              # single-buffered
        scratch = bt * Lp * Dp * f4
        out_blk = 2 * bt * Lp * Dp * out_bytes
        tmps = (bt * Lp * Sp * (f4 + bf2)          # scores f32 + probs bf16
                + bt * Lp * Dffp * (f4 + bf2)      # ffn hidden f32 + bf16
                + 6 * bt * Lp * Dp * f4            # residual / q,k temporaries
                + 2 * bt * Sp * Dp * (f4 + bf2))   # cross k/v temporaries
        return weights + acts + scratch + out_blk + tmps

    budget = phys_vmem - 32 * MIB
    Bt = _pick_batch_block(B, Lp, _est_vmem, budget, min_blocks, max_rows=1024)
    vmem_limit = int(min(phys_vmem - 16 * MIB,
                         max(48 * MIB, _est_vmem(Bt) + 16 * MIB)))

    kernel = _make_decoder_kernel(D, Dp, L, Lp, S, Sp, has_norm,
                                  return_intermediate)

    # Layer-invariant blocks: single-buffered (their block index only changes once
    # per batch block); per-layer weights keep default double-buffering so layer
    # l+1 weights prefetch under layer l compute.
    def _invariant_spec(shape, index_map):
        try:
            return pl.BlockSpec(shape, index_map, pipeline_mode=pl.Buffered(1))
        except Exception:
            return pl.BlockSpec(shape, index_map)

    act_L = _invariant_spec((Bt, Lp, Dp), lambda b, l: (b, 0, 0))
    act_S = _invariant_spec((Bt, Sp, Dp), lambda b, l: (b, 0, 0))

    def _per_layer(shape):
        nd = len(shape)
        return pl.BlockSpec((1,) + shape, lambda b, l, _n=nd: (l,) + (0,) * _n)

    def _shared(shape):
        nd = len(shape)
        return pl.BlockSpec(shape, lambda b, l, _n=nd: (0,) * _n)

    in_specs = [
        act_L, act_S, act_S, act_L,
        _per_layer((Dp, 2 * Dp)), _per_layer((Dp, Dp)), _per_layer((Dp, Dp)),
        _per_layer((4, Dp)),
        _per_layer((4, Dp, Dp)), _per_layer((4, Dp)),
        _per_layer((Dp, Dffp)), _per_layer((1, Dffp)),
        _per_layer((Dffp, Dp)), _per_layer((1, Dp)),
        _per_layer((3, Dp)), _per_layer((3, Dp)),
        _shared((1, Dp)), _shared((1, Dp)),
    ]

    if return_intermediate:
        out_shape = jax.ShapeDtypeStruct((NL, B, Lp, Dp), out_dtype)
        out_spec = pl.BlockSpec((1, Bt, Lp, Dp), lambda b, l: (l, b, 0, 0))
    else:
        out_shape = jax.ShapeDtypeStruct((B, Lp, Dp), out_dtype)
        out_spec = pl.BlockSpec((Bt, Lp, Dp), lambda b, l: (b, 0, 0))

    out = pl.pallas_call(
        kernel,
        out_shape=out_shape,
        grid=(B // Bt, NL),
        in_specs=in_specs,
        out_specs=out_spec,
        scratch_shapes=[pltpu.VMEM((Bt, Lp, Dp), jnp.float32)],
        compiler_params=pltpu.CompilerParams(
            dimension_semantics=("parallel", "arbitrary"),
            vmem_limit_bytes=vmem_limit),
    )(tgt_p, mem_p, mempos_p, qpos_p,
      w_sa_qk, w_sa_v, w_sa_o, b_sa, w_ca, b_ca,
      w1, b1, w2, b2, gamma, beta, g_n, b_n)

    if return_intermediate:
        return out[:, :, :L, :D]
    return out[None, :, :L, :D]


# ---------------------------------------------------------------------------
# pure-JAX f32 reference (for correctness check)
# ---------------------------------------------------------------------------
def _ref_ln(x, g, b):
    mu = x.mean(-1, keepdims=True)
    var = ((x - mu) ** 2).mean(-1, keepdims=True)
    return (x - mu) / jnp.sqrt(var + EPS) * g + b


def _ref_attn(qi, ki, vi, w, b):
    d = qi.shape[-1]
    q = qi @ w[0] + b[0]
    k = ki @ w[1] + b[1]
    v = vi @ w[2] + b[2]
    s = jnp.einsum("bld,bsd->bls", q, k) / jnp.sqrt(jnp.float32(d))
    a = jax.nn.softmax(s, axis=-1)
    return jnp.einsum("bls,bsd->bld", a, v) @ w[3] + b[3]


def _ref_layer(tgt, mem, pos, qpos, p):
    x = tgt
    x = _ref_ln(x + _ref_attn(x + qpos, x + qpos, x, p["w_sa"], p["b_sa"]),
                p["gamma"][0], p["beta"][0])
    x = _ref_ln(x + _ref_attn(x + qpos, mem + pos, mem, p["w_ca"], p["b_ca"]),
                p["gamma"][1], p["beta"][1])
    h = jnp.maximum(x @ p["w1"] + p["b1"], 0.0)
    x = _ref_ln(x + h @ p["w2"] + p["b2"], p["gamma"][2], p["beta"][2])
    return x


def _ref_decoder(tgt, memory, pos, qpos, layer_params, norm_params,
                 return_intermediate=False):
    output = tgt
    intermediate = []
    for p in layer_params:
        output = _ref_layer(output, memory, pos, qpos, p)
        if return_intermediate:
            intermediate.append(_ref_ln(output, *norm_params))
    if norm_params is not None:
        output = _ref_ln(output, *norm_params)
        if return_intermediate:
            intermediate.pop()
            intermediate.append(output)
    if return_intermediate:
        return jnp.stack(intermediate)
    return output[None, ...]


# ---------------------------------------------------------------------------
if __name__ == "__main__":
    # L and S intentionally not tile-aligned so the sublane / key-mask paths are
    # exercised against the reference.
    B, L, S, D, Dff, NUM_LAYERS = 2, 10, 24, 32, 64, 2

    key = jax.random.PRNGKey(0)
    keys = iter(jax.random.split(key, 64))

    def rnd(shape, scale=0.1):
        return (scale * jax.random.normal(next(keys), shape)).astype(jnp.float32)

    layer_params = []
    for _ in range(NUM_LAYERS):
        layer_params.append(dict(
            w_sa=rnd((4, D, D)), b_sa=rnd((4, D), 0.01),
            w_ca=rnd((4, D, D)), b_ca=rnd((4, D), 0.01),
            w1=rnd((D, Dff)), b1=rnd((Dff,), 0.01),
            w2=rnd((Dff, D)), b2=rnd((D,), 0.01),
            gamma=jnp.ones((3, D), jnp.float32),
            beta=jnp.zeros((3, D), jnp.float32),
        ))
    norm_params = (jnp.ones((D,), jnp.float32), jnp.zeros((D,), jnp.float32))

    tgt = rnd((B, L, D), 1.0)
    memory = rnd((B, S, D), 1.0)
    pos = rnd((B, S, D), 0.5)
    query_pos = rnd((B, L, D), 0.5)

    # --- default path (return_intermediate=False, final norm fused) ---
    out = mamba_decoder(tgt, memory, pos, query_pos, layer_params,
                        norm_params=norm_params, return_intermediate=False)
    out = jax.block_until_ready(out)
    ref = _ref_decoder(tgt, memory, pos, query_pos, layer_params,
                       norm_params, return_intermediate=False)
    assert out.shape == (1, B, L, D), out.shape
    err = float(jnp.max(jnp.abs(out - ref)))
    # bf16 MXU inputs / bf16 invariant storage vs f32 reference -> loose tolerance.
    assert err < 5e-2, err

    # --- return_intermediate path ---
    out_i = mamba_decoder(tgt, memory, pos, query_pos, layer_params,
                          norm_params=norm_params, return_intermediate=True)
    out_i = jax.block_until_ready(out_i)
    ref_i = _ref_decoder(tgt, memory, pos, query_pos, layer_params,
                         norm_params, return_intermediate=True)
    assert out_i.shape == (NUM_LAYERS, B, L, D), out_i.shape
    err_i = float(jnp.max(jnp.abs(out_i - ref_i)))
    assert err_i < 5e-2, err_i

    print("KERNEL_OK")
</pallas_src>

<mosaic_0001>
module attributes {stable_mosaic.version = 11 : i64} {
  func.func @kernel(%arg0: i32, %arg1: i32, %arg2: memref<2x16x128xbf16, #tpu.memory_space<vmem>>, %arg3: memref<2x128x128xbf16, #tpu.memory_space<vmem>>, %arg4: memref<2x128x128xbf16, #tpu.memory_space<vmem>>, %arg5: memref<2x16x128xbf16, #tpu.memory_space<vmem>>, %arg6: memref<1x128x256xbf16, #tpu.memory_space<vmem>>, %arg7: memref<1x128x128xbf16, #tpu.memory_space<vmem>>, %arg8: memref<1x128x128xbf16, #tpu.memory_space<vmem>>, %arg9: memref<1x4x128xf32, #tpu.memory_space<vmem>>, %arg10: memref<1x4x128x128xbf16, #tpu.memory_space<vmem>>, %arg11: memref<1x4x128xf32, #tpu.memory_space<vmem>>, %arg12: memref<1x128x128xbf16, #tpu.memory_space<vmem>>, %arg13: memref<1x1x128xf32, #tpu.memory_space<vmem>>, %arg14: memref<1x128x128xbf16, #tpu.memory_space<vmem>>, %arg15: memref<1x1x128xf32, #tpu.memory_space<vmem>>, %arg16: memref<1x3x128xf32, #tpu.memory_space<vmem>>, %arg17: memref<1x3x128xf32, #tpu.memory_space<vmem>>, %arg18: memref<1x128xf32, #tpu.memory_space<vmem>>, %arg19: memref<1x128xf32, #tpu.memory_space<vmem>>, %arg20: memref<2x16x128xf32, #tpu.memory_space<vmem>>, %arg21: memref<2x16x128xf32, #tpu.memory_space<vmem>>) attributes {dimension_semantics = [#tpu.dimension_semantics<parallel>, #tpu.dimension_semantics<arbitrary>], iteration_bounds = array<i64: 1, 2>, scalar_prefetch = 0 : i64, scratch_operands = 1 : i64, tpu.core_type = #tpu.core_type<tc>, window_params = [{pipeline_mode = #tpu.pipeline_mode<synchronous>, transform_indices = @transform_0, window_bounds = array<i64: 2, 16, 128>}, {pipeline_mode = #tpu.pipeline_mode<synchronous>, transform_indices = @transform_1, window_bounds = array<i64: 2, 128, 128>}, {pipeline_mode = #tpu.pipeline_mode<synchronous>, transform_indices = @transform_2, window_bounds = array<i64: 2, 128, 128>}, {pipeline_mode = #tpu.pipeline_mode<synchronous>, transform_indices = @transform_3, window_bounds = array<i64: 2, 16, 128>}, {transform_indices = @transform_4, window_bounds = array<i64: 1, 128, 256>}, {transform_indices = @transform_5, window_bounds = array<i64: 1, 128, 128>}, {transform_indices = @transform_6, window_bounds = array<i64: 1, 128, 128>}, {transform_indices = @transform_7, window_bounds = array<i64: 1, 4, 128>}, {transform_indices = @transform_8, window_bounds = array<i64: 1, 4, 128, 128>}, {transform_indices = @transform_9, window_bounds = array<i64: 1, 4, 128>}, {transform_indices = @transform_10, window_bounds = array<i64: 1, 128, 128>}, {transform_indices = @transform_11, window_bounds = array<i64: 1, 1, 128>}, {transform_indices = @transform_12, window_bounds = array<i64: 1, 128, 128>}, {transform_indices = @transform_13, window_bounds = array<i64: 1, 1, 128>}, {transform_indices = @transform_14, window_bounds = array<i64: 1, 3, 128>}, {transform_indices = @transform_15, window_bounds = array<i64: 1, 3, 128>}, {pipeline_mode = #tpu.pipeline_mode<synchronous>, transform_indices = @transform_16, window_bounds = array<i64: 1, 128>}, {pipeline_mode = #tpu.pipeline_mode<synchronous>, transform_indices = @transform_17, window_bounds = array<i64: 1, 128>}, {transform_indices = @transform_18, window_bounds = array<i64: 2, 16, 128>}]} {
    %c0_i32 = arith.constant 0 : i32
    %0 = arith.cmpi eq, %arg1, %c0_i32 : i32
    %1 = arith.extui %0 : i1 to i32
    %c0_i32_0 = arith.constant 0 : i32
    %2 = arith.cmpi ne, %1, %c0_i32_0 : i32
    scf.if %2 {
      %c0_98 = arith.constant 0 : index
      %c0_99 = arith.constant 0 : index
      %c0_100 = arith.constant 0 : index
      %243 = vector.load %arg2[%c0_98, %c0_99, %c0_100] : memref<2x16x128xbf16, #tpu.memory_space<vmem>>, vector<2x16x128xbf16>
      %244 = arith.extf %243 : vector<2x16x128xbf16> to vector<2x16x128xf32>
      %c0_101 = arith.constant 0 : index
      %c0_102 = arith.constant 0 : index
      %c0_103 = arith.constant 0 : index
      %245 = vector.load %arg21[%c0_101, %c0_102, %c0_103] : memref<2x16x128xf32, #tpu.memory_space<vmem>>, vector<2x16x128xf32>
      tpu.vector_store %arg21[%c0_101, %c0_102, %c0_103], %244 {strides = array<i32>} : memref<2x16x128xf32, #tpu.memory_space<vmem>>, vector<2x16x128xf32>,
    } else {
    }
    %3 = tpu.iota {dimensions = array<i32: 2>} : vector<1x1x128xi32>
    %c32_i32 = arith.constant 32 : i32
    %4 = vector.broadcast %c32_i32 : i32 to vector<1x1x128xi32>
    %5 = arith.cmpi slt, %3, %4 : vector<1x1x128xi32>
    %6 = arith.extui %5 : vector<1x1x128xi1> to vector<1x1x128xi32>
    %7 = arith.sitofp %6 : vector<1x1x128xi32> to vector<1x1x128xf32>
    %8 = tpu.iota {dimensions = array<i32: 2>} : vector<1x1x16xi32>
    %c10_i32 = arith.constant 10 : i32
    %9 = vector.broadcast %c10_i32 : i32 to vector<1x1x16xi32>
    %10 = arith.cmpi slt, %8, %9 : vector<1x1x16xi32>
    %11 = tpu.iota {dimensions = array<i32: 2>} : vector<1x1x128xi32>
    %c24_i32 = arith.constant 24 : i32
    %12 = vector.broadcast %c24_i32 : i32 to vector<1x1x128xi32>
    %13 = arith.cmpi slt, %11, %12 : vector<1x1x128xi32>
    %c0 = arith.constant 0 : index
    %c0_1 = arith.constant 0 : index
    %c0_2 = arith.constant 0 : index
    %14 = vector.load %arg5[%c0, %c0_1, %c0_2] : memref<2x16x128xbf16, #tpu.memory_space<vmem>>, vector<2x16x128xbf16>
    %c0_3 = arith.constant 0 : index
    %c0_4 = arith.constant 0 : index
    %c0_5 = arith.constant 0 : index
    %15 = vector.load %arg16[%c0_3, %c0_4, %c0_5] : memref<1x3x128xf32, #tpu.memory_space<vmem>>, vector<1x3x128xf32>
    %16 = vector.shape_cast %15 : vector<1x3x128xf32> to vector<3x128xf32>
    %c0_6 = arith.constant 0 : index
    %c0_7 = arith.constant 0 : index
    %c0_8 = arith.constant 0 : index
    %17 = vector.load %arg17[%c0_6, %c0_7, %c0_8] : memref<1x3x128xf32, #tpu.memory_space<vmem>>, vector<1x3x128xf32>
    %18 = vector.shape_cast %17 : vector<1x3x128xf32> to vector<3x128xf32>
    %c0_9 = arith.constant 0 : index
    %c0_10 = arith.constant 0 : index
    %c0_11 = arith.constant 0 : index
    %19 = vector.load %arg9[%c0_9, %c0_10, %c0_11] : memref<1x4x128xf32, #tpu.memory_space<vmem>>, vector<1x4x128xf32>
    %20 = vector.shape_cast %19 : vector<1x4x128xf32> to vector<4x128xf32>
    %c0_12 = arith.constant 0 : index
    %c0_13 = arith.constant 0 : index
    %c0_14 = arith.constant 0 : index
    %21 = vector.load %arg11[%c0_12, %c0_13, %c0_14] : memref<1x4x128xf32, #tpu.memory_space<vmem>>, vector<1x4x128xf32>
    %22 = vector.shape_cast %21 : vector<1x4x128xf32> to vector<4x128xf32>
    %c0_15 = arith.constant 0 : index
    %c0_16 = arith.constant 0 : index
    %c0_17 = arith.constant 0 : index
    %23 = vector.load %arg21[%c0_15, %c0_16, %c0_17] : memref<2x16x128xf32, #tpu.memory_space<vmem>>, vector<2x16x128xf32>
    %24 = arith.truncf %23 : vector<2x16x128xf32> to vector<2x16x128xbf16>
    %25 = arith.addf %24, %14 : vector<2x16x128xbf16>
    %26 = vector.shape_cast %25 : vector<2x16x128xbf16> to vector<32x128xbf16>
    %c0_18 = arith.constant 0 : index
    %c0_19 = arith.constant 0 : index
    %c0_20 = arith.constant 0 : index
    %27 = vector.load %arg6[%c0_18, %c0_19, %c0_20] : memref<1x128x256xbf16, #tpu.memory_space<vmem>>, vector<1x128x256xbf16>
    %28 = vector.shape_cast %27 : vector<1x128x256xbf16> to vector<128x256xbf16>
    %cst = arith.constant dense<0.000000e+00> : vector<32x256xf32>
    %29 = tpu.matmul %26, %28, %cst {dimension_numbers = #tpu.dot_dimension_numbers<[1], [0], [0], [1], [0, 0, 1, 1], [], []>} : vector<32x128xbf16>, vector<128x256xbf16>, vector<32x256xf32> -> vector<32x256xf32>
    %30 = vector.extract_strided_slice %29 {offsets = [0, 0], sizes = [32, 128], strides = [1, 1]} : vector<32x256xf32> to vector<32x128xf32>
    %31 = vector.extract_strided_slice %20 {offsets = [0, 0], sizes = [1, 128], strides = [1, 1]} : vector<4x128xf32> to vector<1x128xf32>
    %32 = vector.broadcast %31 : vector<1x128xf32> to vector<32x128xf32>
    %33 = arith.addf %30, %32 : vector<32x128xf32>
    %34 = vector.shape_cast %33 : vector<32x128xf32> to vector<2x16x128xf32>
    %35 = arith.truncf %34 : vector<2x16x128xf32> to vector<2x16x128xbf16>
    %36 = vector.extract_strided_slice %29 {offsets = [0, 128], sizes = [32, 128], strides = [1, 1]} : vector<32x256xf32> to vector<32x128xf32>
    %37 = vector.extract_strided_slice %20 {offsets = [1, 0], sizes = [1, 128], strides = [1, 1]} : vector<4x128xf32> to vector<1x128xf32>
    %38 = vector.broadcast %37 : vector<1x128xf32> to vector<32x128xf32>
    %39 = arith.addf %36, %38 : vector<32x128xf32>
    %40 = vector.shape_cast %39 : vector<32x128xf32> to vector<2x16x128xf32>
    %41 = arith.truncf %40 : vector<2x16x128xf32> to vector<2x16x128xbf16>
    %42 = vector.shape_cast %24 : vector<2x16x128xbf16> to vector<32x128xbf16>
    %c0_21 = arith.constant 0 : index
    %c0_22 = arith.constant 0 : index
    %c0_23 = arith.constant 0 : index
    %43 = vector.load %arg7[%c0_21, %c0_22, %c0_23] : memref<1x128x128xbf16, #tpu.memory_space<vmem>>, vector<1x128x128xbf16>
    %44 = vector.shape_cast %43 : vector<1x128x128xbf16> to vector<128x128xbf16>
    %cst_24 = arith.constant dense<0.000000e+00> : vector<32x128xf32>
    %45 = tpu.matmul %42, %44, %cst_24 {dimension_numbers = #tpu.dot_dimension_numbers<[1], [0], [0], [1], [0, 0, 1, 1], [], []>} : vector<32x128xbf16>, vector<128x128xbf16>, vector<32x128xf32> -> vector<32x128xf32>
    %46 = vector.extract_strided_slice %20 {offsets = [2, 0], sizes = [1, 128], strides = [1, 1]} : vector<4x128xf32> to vector<1x128xf32>
    %47 = vector.broadcast %46 : vector<1x128xf32> to vector<32x128xf32>
    %48 = arith.addf %45, %47 : vector<32x128xf32>
    %49 = vector.shape_cast %48 : vector<32x128xf32> to vector<2x16x128xf32>
    %50 = arith.truncf %49 : vector<2x16x128xf32> to vector<2x16x128xbf16>
    "tpu.trace_start"() <{level = 10 : i32, message = "bld,bsd->bls"}> : () -> ()
    %cst_25 = arith.constant dense<0.000000e+00> : vector<2x16x16xf32>
    %51 = tpu.matmul %35, %41, %cst_25 {dimension_numbers = #tpu.dot_dimension_numbers<[2], [2], [1], [1], [0, 0, 0, 1, 1, 1], [0], [0]>} : vector<2x16x128xbf16>, vector<2x16x128xbf16>, vector<2x16x16xf32> -> vector<2x16x16xf32>
    "tpu.trace_stop"() : () -> ()
    %cst_26 = arith.constant 0.176776692 : f32
    %52 = vector.broadcast %cst_26 : f32 to vector<2x16x16xf32>
    %53 = arith.mulf %51, %52 : vector<2x16x16xf32>
    %cst_27 = arith.constant -1.000000e+30 : f32
    %54 = vector.shape_cast %10 : vector<1x1x16xi1> to vector<1x1x16xi1>
    %55 = vector.broadcast %54 : vector<1x1x16xi1> to vector<2x16x16xi1>
    %56 = vector.broadcast %cst_27 : f32 to vector<2x16x16xf32>
    %57 = arith.select %55, %53, %56 : vector<2x16x16xi1>, vector<2x16x16xf32>
    %cst_28 = arith.constant dense<0xFF800000> : vector<2x16xf32>
    %58 = vector.multi_reduction <maximumf>, %57, %cst_28 [2] : vector<2x16x16xf32> to vector<2x16xf32>
    %59 = vector.shape_cast %58 : vector<2x16xf32> to vector<2x16x1xf32>
    %60 = vector.broadcast %59 : vector<2x16x1xf32> to vector<2x16x16xf32>
    %61 = arith.subf %57, %60 : vector<2x16x16xf32>
    %62 = math.exp %61 : vector<2x16x16xf32>
    %cst_29 = arith.constant dense<0.000000e+00> : vector<2x16xf32>
    %63 = vector.multi_reduction <add>, %62, %cst_29 [2] : vector<2x16x16xf32> to vector<2x16xf32>
    %64 = vector.shape_cast %63 : vector<2x16xf32> to vector<2x16x1xf32>
    %65 = tpu.reciprocal %64 {approx = true} : vector<2x16x1xf32> -> vector<2x16x1xf32>
    %66 = vector.broadcast %65 : vector<2x16x1xf32> to vector<2x16x16xf32>
    %67 = arith.mulf %62, %66 : vector<2x16x16xf32>
    %68 = arith.truncf %67 : vector<2x16x16xf32> to vector<2x16x16xbf16>
    "tpu.trace_start"() <{level = 10 : i32, message = "bls,bsd->bld"}> : () -> ()
    %cst_30 = arith.constant dense<0.000000e+00> : vector<2x16x128xf32>
    %69 = tpu.matmul %68, %50, %cst_30 {dimension_numbers = #tpu.dot_dimension_numbers<[2], [1], [1], [2], [0, 0, 0, 1, 1, 2], [0], [0]>} : vector<2x16x16xbf16>, vector<2x16x128xbf16>, vector<2x16x128xf32> -> vector<2x16x128xf32>
    "tpu.trace_stop"() : () -> ()
    %70 = vector.shape_cast %69 : vector<2x16x128xf32> to vector<32x128xf32>
    %71 = arith.truncf %70 : vector<32x128xf32> to vector<32x128xbf16>
    %c0_31 = arith.constant 0 : index
    %c0_32 = arith.constant 0 : index
    %c0_33 = arith.constant 0 : index
    %72 = vector.load %arg8[%c0_31, %c0_32, %c0_33] : memref<1x128x128xbf16, #tpu.memory_space<vmem>>, vector<1x128x128xbf16>
    %73 = vector.shape_cast %72 : vector<1x128x128xbf16> to vector<128x128xbf16>
    %cst_34 = arith.constant dense<0.000000e+00> : vector<32x128xf32>
    %74 = tpu.matmul %71, %73, %cst_34 {dimension_numbers = #tpu.dot_dimension_numbers<[1], [0], [0], [1], [0, 0, 1, 1], [], []>} : vector<32x128xbf16>, vector<128x128xbf16>, vector<32x128xf32> -> vector<32x128xf32>
    %75 = vector.extract_strided_slice %20 {offsets = [3, 0], sizes = [1, 128], strides = [1, 1]} : vector<4x128xf32> to vector<1x128xf32>
    %76 = vector.broadcast %75 : vector<1x128xf32> to vector<32x128xf32>
    %77 = arith.addf %74, %76 : vector<32x128xf32>
    %78 = vector.shape_cast %77 : vector<32x128xf32> to vector<2x16x128xf32>
    %79 = arith.addf %23, %78 : vector<2x16x128xf32>
    %80 = vector.extract_strided_slice %16 {offsets = [0, 0], sizes = [1, 128], strides = [1, 1]} : vector<3x128xf32> to vector<1x128xf32>
    %81 = vector.extract_strided_slice %18 {offsets = [0, 0], sizes = [1, 128], strides = [1, 1]} : vector<3x128xf32> to vector<1x128xf32>
    %cst_35 = arith.constant dense<0.000000e+00> : vector<2x16xf32>
    %82 = vector.multi_reduction <add>, %79, %cst_35 [2] : vector<2x16x128xf32> to vector<2x16xf32>
    %83 = vector.shape_cast %82 : vector<2x16xf32> to vector<2x16x1xf32>
    %cst_36 = arith.constant 3.125000e-02 : f32
    %84 = vector.broadcast %cst_36 : f32 to vector<2x16x1xf32>
    %85 = arith.mulf %83, %84 : vector<2x16x1xf32>
    %86 = vector.broadcast %85 : vector<2x16x1xf32> to vector<2x16x128xf32>
    %87 = arith.subf %79, %86 : vector<2x16x128xf32>
    %88 = arith.mulf %87, %87 : vector<2x16x128xf32>
    %89 = vector.broadcast %7 : vector<1x1x128xf32> to vector<2x16x128xf32>
    %90 = arith.mulf %88, %89 : vector<2x16x128xf32>
    %cst_37 = arith.constant dense<0.000000e+00> : vector<2x16xf32>
    %91 = vector.multi_reduction <add>, %90, %cst_37 [2] : vector<2x16x128xf32> to vector<2x16xf32>
    %92 = vector.shape_cast %91 : vector<2x16xf32> to vector<2x16x1xf32>
    %cst_38 = arith.constant 3.125000e-02 : f32
    %93 = vector.broadcast %cst_38 : f32 to vector<2x16x1xf32>
    %94 = arith.mulf %92, %93 : vector<2x16x1xf32>
    %cst_39 = arith.constant 9.99999974E-6 : f32
    %95 = vector.broadcast %cst_39 : f32 to vector<2x16x1xf32>
    %96 = arith.addf %94, %95 : vector<2x16x1xf32>
    %97 = math.rsqrt %96 : vector<2x16x1xf32>
    %98 = vector.broadcast %97 : vector<2x16x1xf32> to vector<2x16x128xf32>
    %99 = arith.mulf %87, %98 : vector<2x16x128xf32>
    %100 = vector.shape_cast %80 : vector<1x128xf32> to vector<1x1x128xf32>
    %101 = vector.broadcast %100 : vector<1x1x128xf32> to vector<2x16x128xf32>
    %102 = arith.mulf %99, %101 : vector<2x16x128xf32>
    %103 = vector.shape_cast %81 : vector<1x128xf32> to vector<1x1x128xf32>
    %104 = vector.broadcast %103 : vector<1x1x128xf32> to vector<2x16x128xf32>
    %105 = arith.addf %102, %104 : vector<2x16x128xf32>
    %106 = arith.truncf %105 : vector<2x16x128xf32> to vector<2x16x128xbf16>
    %107 = arith.addf %106, %14 : vector<2x16x128xbf16>
    %108 = vector.shape_cast %107 : vector<2x16x128xbf16> to vector<32x128xbf16>
    %c0_40 = arith.constant 0 : index
    %c0_41 = arith.constant 0 : index
    %c0_42 = arith.constant 0 : index
    %c0_43 = arith.constant 0 : index
    %109 = vector.load %arg10[%c0_40, %c0_41, %c0_42, %c0_43] : memref<1x4x128x128xbf16, #tpu.memory_space<vmem>>, vector<1x1x128x128xbf16>
    %110 = vector.shape_cast %109 : vector<1x1x128x128xbf16> to vector<128x128xbf16>
    %cst_44 = arith.constant dense<0.000000e+00> : vector<32x128xf32>
    %111 = tpu.matmul %108, %110, %cst_44 {dimension_numbers = #tpu.dot_dimension_numbers<[1], [0], [0], [1], [0, 0, 1, 1], [], []>} : vector<32x128xbf16>, vector<128x128xbf16>, vector<32x128xf32> -> vector<32x128xf32>
    %112 = vector.extract_strided_slice %22 {offsets = [0, 0], sizes = [1, 128], strides = [1, 1]} : vector<4x128xf32> to vector<1x128xf32>
    %113 = vector.broadcast %112 : vector<1x128xf32> to vector<32x128xf32>
    %114 = arith.addf %111, %113 : vector<32x128xf32>
    %115 = vector.shape_cast %114 : vector<32x128xf32> to vector<2x16x128xf32>
    %116 = arith.truncf %115 : vector<2x16x128xf32> to vector<2x16x128xbf16>
    %c0_45 = arith.constant 0 : index
    %c0_46 = arith.constant 0 : index
    %c0_47 = arith.constant 0 : index
    %117 = vector.load %arg4[%c0_45, %c0_46, %c0_47] : memref<2x128x128xbf16, #tpu.memory_space<vmem>>, vector<2x128x128xbf16>
    %118 = vector.shape_cast %117 : vector<2x128x128xbf16> to vector<256x128xbf16>
    %c0_48 = arith.constant 0 : index
    %c1 = arith.constant 1 : index
    %c0_49 = arith.constant 0 : index
    %c0_50 = arith.constant 0 : index
    %119 = vector.load %arg10[%c0_48, %c1, %c0_49, %c0_50] : memref<1x4x128x128xbf16, #tpu.memory_space<vmem>>, vector<1x1x128x128xbf16>
    %120 = vector.shape_cast %119 : vector<1x1x128x128xbf16> to vector<128x128xbf16>
    %cst_51 = arith.constant dense<0.000000e+00> : vector<256x128xf32>
    %121 = tpu.matmul %118, %120, %cst_51 {dimension_numbers = #tpu.dot_dimension_numbers<[1], [0], [0], [1], [0, 0, 1, 1], [], []>} : vector<256x128xbf16>, vector<128x128xbf16>, vector<256x128xf32> -> vector<256x128xf32>
    %122 = vector.extract_strided_slice %22 {offsets = [1, 0], sizes = [1, 128], strides = [1, 1]} : vector<4x128xf32> to vector<1x128xf32>
    %123 = vector.broadcast %122 : vector<1x128xf32> to vector<256x128xf32>
    %124 = arith.addf %121, %123 : vector<256x128xf32>
    %125 = vector.shape_cast %124 : vector<256x128xf32> to vector<2x128x128xf32>
    %126 = arith.truncf %125 : vector<2x128x128xf32> to vector<2x128x128xbf16>
    %c0_52 = arith.constant 0 : index
    %c0_53 = arith.constant 0 : index
    %c0_54 = arith.constant 0 : index
    %127 = vector.load %arg3[%c0_52, %c0_53, %c0_54] : memref<2x128x128xbf16, #tpu.memory_space<vmem>>, vector<2x128x128xbf16>
    %128 = vector.shape_cast %127 : vector<2x128x128xbf16> to vector<256x128xbf16>
    %c0_55 = arith.constant 0 : index
    %c2 = arith.constant 2 : index
    %c0_56 = arith.constant 0 : index
    %c0_57 = arith.constant 0 : index
    %129 = vector.load %arg10[%c0_55, %c2, %c0_56, %c0_57] : memref<1x4x128x128xbf16, #tpu.memory_space<vmem>>, vector<1x1x128x128xbf16>
    %130 = vector.shape_cast %129 : vector<1x1x128x128xbf16> to vector<128x128xbf16>
    %cst_58 = arith.constant dense<0.000000e+00> : vector<256x128xf32>
    %131 = tpu.matmul %128, %130, %cst_58 {dimension_numbers = #tpu.dot_dimension_numbers<[1], [0], [0], [1], [0, 0, 1, 1], [], []>} : vector<256x128xbf16>, vector<128x128xbf16>, vector<256x128xf32> -> vector<256x128xf32>
    %132 = vector.extract_strided_slice %22 {offsets = [2, 0], sizes = [1, 128], strides = [1, 1]} : vector<4x128xf32> to vector<1x128xf32>
    %133 = vector.broadcast %132 : vector<1x128xf32> to vector<256x128xf32>
    %134 = arith.addf %131, %133 : vector<256x128xf32>
    %135 = vector.shape_cast %134 : vector<256x128xf32> to vector<2x128x128xf32>
    %136 = arith.truncf %135 : vector<2x128x128xf32> to vector<2x128x128xbf16>
    "tpu.trace_start"() <{level = 10 : i32, message = "bld,bsd->bls"}> : () -> ()
    %cst_59 = arith.constant dense<0.000000e+00> : vector<2x16x128xf32>
    %137 = tpu.matmul %116, %126, %cst_59 {dimension_numbers = #tpu.dot_dimension_numbers<[2], [2], [1], [1], [0, 0, 0, 1, 1, 1], [0], [0]>} : vector<2x16x128xbf16>, vector<2x128x128xbf16>, vector<2x16x128xf32> -> vector<2x16x128xf32>
    "tpu.trace_stop"() : () -> ()
    %cst_60 = arith.constant 0.176776692 : f32
    %138 = vector.broadcast %cst_60 : f32 to vector<2x16x128xf32>
    %139 = arith.mulf %137, %138 : vector<2x16x128xf32>
    %cst_61 = arith.constant -1.000000e+30 : f32
    %140 = vector.shape_cast %13 : vector<1x1x128xi1> to vector<1x1x128xi1>
    %141 = vector.broadcast %140 : vector<1x1x128xi1> to vector<2x16x128xi1>
    %142 = vector.broadcast %cst_61 : f32 to vector<2x16x128xf32>
    %143 = arith.select %141, %139, %142 : vector<2x16x128xi1>, vector<2x16x128xf32>
    %cst_62 = arith.constant dense<0xFF800000> : vector<2x16xf32>
    %144 = vector.multi_reduction <maximumf>, %143, %cst_62 [2] : vector<2x16x128xf32> to vector<2x16xf32>
    %145 = vector.shape_cast %144 : vector<2x16xf32> to vector<2x16x1xf32>
    %146 = vector.broadcast %145 : vector<2x16x1xf32> to vector<2x16x128xf32>
    %147 = arith.subf %143, %146 : vector<2x16x128xf32>
    %148 = math.exp %147 : vector<2x16x128xf32>
    %cst_63 = arith.constant dense<0.000000e+00> : vector<2x16xf32>
    %149 = vector.multi_reduction <add>, %148, %cst_63 [2] : vector<2x16x128xf32> to vector<2x16xf32>
    %150 = vector.shape_cast %149 : vector<2x16xf32> to vector<2x16x1xf32>
    %151 = tpu.reciprocal %150 {approx = true} : vector<2x16x1xf32> -> vector<2x16x1xf32>
    %152 = vector.broadcast %151 : vector<2x16x1xf32> to vector<2x16x128xf32>
    %153 = arith.mulf %148, %152 : vector<2x16x128xf32>
    %154 = arith.truncf %153 : vector<2x16x128xf32> to vector<2x16x128xbf16>
    "tpu.trace_start"() <{level = 10 : i32, message = "bls,bsd->bld"}> : () -> ()
    %cst_64 = arith.constant dense<0.000000e+00> : vector<2x16x128xf32>
    %155 = tpu.matmul %154, %136, %cst_64 {dimension_numbers = #tpu.dot_dimension_numbers<[2], [1], [1], [2], [0, 0, 0, 1, 1, 2], [0], [0]>} : vector<2x16x128xbf16>, vector<2x128x128xbf16>, vector<2x16x128xf32> -> vector<2x16x128xf32>
    "tpu.trace_stop"() : () -> ()
    %156 = vector.shape_cast %155 : vector<2x16x128xf32> to vector<32x128xf32>
    %157 = arith.truncf %156 : vector<32x128xf32> to vector<32x128xbf16>
    %c0_65 = arith.constant 0 : index
    %c3 = arith.constant 3 : index
    %c0_66 = arith.constant 0 : index
    %c0_67 = arith.constant 0 : index
    %158 = vector.load %arg10[%c0_65, %c3, %c0_66, %c0_67] : memref<1x4x128x128xbf16, #tpu.memory_space<vmem>>, vector<1x1x128x128xbf16>
    %159 = vector.shape_cast %158 : vector<1x1x128x128xbf16> to vector<128x128xbf16>
    %cst_68 = arith.constant dense<0.000000e+00> : vector<32x128xf32>
    %160 = tpu.matmul %157, %159, %cst_68 {dimension_numbers = #tpu.dot_dimension_numbers<[1], [0], [0], [1], [0, 0, 1, 1], [], []>} : vector<32x128xbf16>, vector<128x128xbf16>, vector<32x128xf32> -> vector<32x128xf32>
    %161 = vector.extract_strided_slice %22 {offsets = [3, 0], sizes = [1, 128], strides = [1, 1]} : vector<4x128xf32> to vector<1x128xf32>
    %162 = vector.broadcast %161 : vector<1x128xf32> to vector<32x128xf32>
    %163 = arith.addf %160, %162 : vector<32x128xf32>
    %164 = vector.shape_cast %163 : vector<32x128xf32> to vector<2x16x128xf32>
    %165 = arith.addf %105, %164 : vector<2x16x128xf32>
    %166 = vector.extract_strided_slice %16 {offsets = [1, 0], sizes = [1, 128], strides = [1, 1]} : vector<3x128xf32> to vector<1x128xf32>
    %167 = vector.extract_strided_slice %18 {offsets = [1, 0], sizes = [1, 128], strides = [1, 1]} : vector<3x128xf32> to vector<1x128xf32>
    %cst_69 = arith.constant dense<0.000000e+00> : vector<2x16xf32>
    %168 = vector.multi_reduction <add>, %165, %cst_69 [2] : vector<2x16x128xf32> to vector<2x16xf32>
    %169 = vector.shape_cast %168 : vector<2x16xf32> to vector<2x16x1xf32>
    %cst_70 = arith.constant 3.125000e-02 : f32
    %170 = vector.broadcast %cst_70 : f32 to vector<2x16x1xf32>
    %171 = arith.mulf %169, %170 : vector<2x16x1xf32>
    %172 = vector.broadcast %171 : vector<2x16x1xf32> to vector<2x16x128xf32>
    %173 = arith.subf %165, %172 : vector<2x16x128xf32>
    %174 = arith.mulf %173, %173 : vector<2x16x128xf32>
    %175 = vector.broadcast %7 : vector<1x1x128xf32> to vector<2x16x128xf32>
    %176 = arith.mulf %174, %175 : vector<2x16x128xf32>
    %cst_71 = arith.constant dense<0.000000e+00> : vector<2x16xf32>
    %177 = vector.multi_reduction <add>, %176, %cst_71 [2] : vector<2x16x128xf32> to vector<2x16xf32>
    %178 = vector.shape_cast %177 : vector<2x16xf32> to vector<2x16x1xf32>
    %cst_72 = arith.constant 3.125000e-02 : f32
    %179 = vector.broadcast %cst_72 : f32 to vector<2x16x1xf32>
    %180 = arith.mulf %178, %179 : vector<2x16x1xf32>
    %cst_73 = arith.constant 9.99999974E-6 : f32
    %181 = vector.broadcast %cst_73 : f32 to vector<2x16x1xf32>
    %182 = arith.addf %180, %181 : vector<2x16x1xf32>
    %183 = math.rsqrt %182 : vector<2x16x1xf32>
    %184 = vector.broadcast %183 : vector<2x16x1xf32> to vector<2x16x128xf32>
    %185 = arith.mulf %173, %184 : vector<2x16x128xf32>
    %186 = vector.shape_cast %166 : vector<1x128xf32> to vector<1x1x128xf32>
    %187 = vector.broadcast %186 : vector<1x1x128xf32> to vector<2x16x128xf32>
    %188 = arith.mulf %185, %187 : vector<2x16x128xf32>
    %189 = vector.shape_cast %167 : vector<1x128xf32> to vector<1x1x128xf32>
    %190 = vector.broadcast %189 : vector<1x1x128xf32> to vector<2x16x128xf32>
    %191 = arith.addf %188, %190 : vector<2x16x128xf32>
    %192 = arith.truncf %191 : vector<2x16x128xf32> to vector<2x16x128xbf16>
    %193 = vector.shape_cast %192 : vector<2x16x128xbf16> to vector<32x128xbf16>
    %c0_74 = arith.constant 0 : index
    %c0_75 = arith.constant 0 : index
    %c0_76 = arith.constant 0 : index
    %194 = vector.load %arg12[%c0_74, %c0_75, %c0_76] : memref<1x128x128xbf16, #tpu.memory_space<vmem>>, vector<1x128x128xbf16>
    %195 = vector.shape_cast %194 : vector<1x128x128xbf16> to vector<128x128xbf16>
    %cst_77 = arith.constant dense<0.000000e+00> : vector<32x128xf32>
    %196 = tpu.matmul %193, %195, %cst_77 {dimension_numbers = #tpu.dot_dimension_numbers<[1], [0], [0], [1], [0, 0, 1, 1], [], []>} : vector<32x128xbf16>, vector<128x128xbf16>, vector<32x128xf32> -> vector<32x128xf32>
    %c0_78 = arith.constant 0 : index
    %c0_79 = arith.constant 0 : index
    %c0_80 = arith.constant 0 : index
    %197 = vector.load %arg13[%c0_78, %c0_79, %c0_80] : memref<1x1x128xf32, #tpu.memory_space<vmem>>, vector<1x1x128xf32>
    %198 = vector.shape_cast %197 : vector<1x1x128xf32> to vector<1x128xf32>
    %199 = vector.broadcast %198 : vector<1x128xf32> to vector<32x128xf32>
    %200 = arith.addf %196, %199 : vector<32x128xf32>
    %cst_81 = arith.constant 0.000000e+00 : f32
    %201 = vector.broadcast %cst_81 : f32 to vector<32x128xf32>
    %202 = arith.maximumf %200, %201 : vector<32x128xf32>
    %203 = arith.truncf %202 : vector<32x128xf32> to vector<32x128xbf16>
    %c0_82 = arith.constant 0 : index
    %c0_83 = arith.constant 0 : index
    %c0_84 = arith.constant 0 : index
    %204 = vector.load %arg14[%c0_82, %c0_83, %c0_84] : memref<1x128x128xbf16, #tpu.memory_space<vmem>>, vector<1x128x128xbf16>
    %205 = vector.shape_cast %204 : vector<1x128x128xbf16> to vector<128x128xbf16>
    %cst_85 = arith.constant dense<0.000000e+00> : vector<32x128xf32>
    %206 = tpu.matmul %203, %205, %cst_85 {dimension_numbers = #tpu.dot_dimension_numbers<[1], [0], [0], [1], [0, 0, 1, 1], [], []>} : vector<32x128xbf16>, vector<128x128xbf16>, vector<32x128xf32> -> vector<32x128xf32>
    %c0_86 = arith.constant 0 : index
    %c0_87 = arith.constant 0 : index
    %c0_88 = arith.constant 0 : index
    %207 = vector.load %arg15[%c0_86, %c0_87, %c0_88] : memref<1x1x128xf32, #tpu.memory_space<vmem>>, vector<1x1x128xf32>
    %208 = vector.shape_cast %207 : vector<1x1x128xf32> to vector<1x128xf32>
    %209 = vector.broadcast %208 : vector<1x128xf32> to vector<32x128xf32>
    %210 = arith.addf %206, %209 : vector<32x128xf32>
    %211 = vector.shape_cast %210 : vector<32x128xf32> to vector<2x16x128xf32>
    %212 = arith.addf %191, %211 : vector<2x16x128xf32>
    %213 = vector.extract_strided_slice %16 {offsets = [2, 0], sizes = [1, 128], strides = [1, 1]} : vector<3x128xf32> to vector<1x128xf32>
    %214 = vector.extract_strided_slice %18 {offsets = [2, 0], sizes = [1, 128], strides = [1, 1]} : vector<3x128xf32> to vector<1x128xf32>
    %cst_89 = arith.constant dense<0.000000e+00> : vector<2x16xf32>
    %215 = vector.multi_reduction <add>, %212, %cst_89 [2] : vector<2x16x128xf32> to vector<2x16xf32>
    %216 = vector.shape_cast %215 : vector<2x16xf32> to vector<2x16x1xf32>
    %cst_90 = arith.constant 3.125000e-02 : f32
    %217 = vector.broadcast %cst_90 : f32 to vector<2x16x1xf32>
    %218 = arith.mulf %216, %217 : vector<2x16x1xf32>
    %219 = vector.broadcast %218 : vector<2x16x1xf32> to vector<2x16x128xf32>
    %220 = arith.subf %212, %219 : vector<2x16x128xf32>
    %221 = arith.mulf %220, %220 : vector<2x16x128xf32>
    %222 = vector.broadcast %7 : vector<1x1x128xf32> to vector<2x16x128xf32>
    %223 = arith.mulf %221, %222 : vector<2x16x128xf32>
    %cst_91 = arith.constant dense<0.000000e+00> : vector<2x16xf32>
    %224 = vector.multi_reduction <add>, %223, %cst_91 [2] : vector<2x16x128xf32> to vector<2x16xf32>
    %225 = vector.shape_cast %224 : vector<2x16xf32> to vector<2x16x1xf32>
    %cst_92 = arith.constant 3.125000e-02 : f32
    %226 = vector.broadcast %cst_92 : f32 to vector<2x16x1xf32>
    %227 = arith.mulf %225, %226 : vector<2x16x1xf32>
    %cst_93 = arith.constant 9.99999974E-6 : f32
    %228 = vector.broadcast %cst_93 : f32 to vector<2x16x1xf32>
    %229 = arith.addf %227, %228 : vector<2x16x1xf32>
    %230 = math.rsqrt %229 : vector<2x16x1xf32>
    %231 = vector.broadcast %230 : vector<2x16x1xf32> to vector<2x16x128xf32>
    %232 = arith.mulf %220, %231 : vector<2x16x128xf32>
    %233 = vector.shape_cast %213 : vector<1x128xf32> to vector<1x1x128xf32>
    %234 = vector.broadcast %233 : vector<1x1x128xf32> to vector<2x16x128xf32>
    %235 = arith.mulf %232, %234 : vector<2x16x128xf32>
    %236 = vector.shape_cast %214 : vector<1x128xf32> to vector<1x1x128xf32>
    %237 = vector.broadcast %236 : vector<1x1x128xf32> to vector<2x16x128xf32>
    %238 = arith.addf %235, %237 : vector<2x16x128xf32>
    %c0_94 = arith.constant 0 : index
    %c0_95 = arith.constant 0 : index
    %c0_96 = arith.constant 0 : index
    %239 = vector.load %arg21[%c0_94, %c0_95, %c0_96] : memref<2x16x128xf32, #tpu.memory_space<vmem>>, vector<2x16x128xf32>
    tpu.vector_store %arg21[%c0_94, %c0_95, %c0_96], %238 {strides = array<i32>} : memref<2x16x128xf32, #tpu.memory_space<vmem>>, vector<2x16x128xf32>,
    %c1_i32 = arith.constant 1 : i32
    %240 = arith.cmpi eq, %arg1, %c1_i32 : i32
    %241 = arith.extui %240 : i1 to i32
    %c0_i32_97 = arith.constant 0 : i32
    %242 = arith.cmpi ne, %241, %c0_i32_97 : i32
    scf.if %242 {
      %c0_98 = arith.constant 0 : index
      %c0_99 = arith.constant 0 : index
      %243 = vector.load %arg18[%c0_98, %c0_99] : memref<1x128xf32, #tpu.memory_space<vmem>>, vector<1x128xf32>
      %c0_100 = arith.constant 0 : index
      %c0_101 = arith.constant 0 : index
      %244 = vector.load %arg19[%c0_100, %c0_101] : memref<1x128xf32, #tpu.memory_space<vmem>>, vector<1x128xf32>
      %cst_102 = arith.constant dense<0.000000e+00> : vector<2x16xf32>
      %245 = vector.multi_reduction <add>, %238, %cst_102 [2] : vector<2x16x128xf32> to vector<2x16xf32>
      %246 = vector.shape_cast %245 : vector<2x16xf32> to vector<2x16x1xf32>
      %cst_103 = arith.constant 3.125000e-02 : f32
      %247 = vector.broadcast %cst_103 : f32 to vector<2x16x1xf32>
      %248 = arith.mulf %246, %247 : vector<2x16x1xf32>
      %249 = vector.broadcast %248 : vector<2x16x1xf32> to vector<2x16x128xf32>
      %250 = arith.subf %238, %249 : vector<2x16x128xf32>
      %251 = arith.mulf %250, %250 : vector<2x16x128xf32>
      %252 = vector.broadcast %7 : vector<1x1x128xf32> to vector<2x16x128xf32>
      %253 = arith.mulf %251, %252 : vector<2x16x128xf32>
      %cst_104 = arith.constant dense<0.000000e+00> : vector<2x16xf32>
      %254 = vector.multi_reduction <add>, %253, %cst_104 [2] : vector<2x16x128xf32> to vector<2x16xf32>
      %255 = vector.shape_cast %254 : vector<2x16xf32> to vector<2x16x1xf32>
      %cst_105 = arith.constant 3.125000e-02 : f32
      %256 = vector.broadcast %cst_105 : f32 to vector<2x16x1xf32>
      %257 = arith.mulf %255, %256 : vector<2x16x1xf32>
      %cst_106 = arith.constant 9.99999974E-6 : f32
      %258 = vector.broadcast %cst_106 : f32 to vector<2x16x1xf32>
      %259 = arith.addf %257, %258 : vector<2x16x1xf32>
      %260 = math.rsqrt %259 : vector<2x16x1xf32>
      %261 = vector.broadcast %260 : vector<2x16x1xf32> to vector<2x16x128xf32>
      %262 = arith.mulf %250, %261 : vector<2x16x128xf32>
      %263 = vector.shape_cast %243 : vector<1x128xf32> to vector<1x1x128xf32>
      %264 = vector.broadcast %263 : vector<1x1x128xf32> to vector<2x16x128xf32>
      %265 = arith.mulf %262, %264 : vector<2x16x128xf32>
      %266 = vector.shape_cast %244 : vector<1x128xf32> to vector<1x1x128xf32>
      %267 = vector.broadcast %266 : vector<1x1x128xf32> to vector<2x16x128xf32>
      %268 = arith.addf %265, %267 : vector<2x16x128xf32>
      %c0_107 = arith.constant 0 : index
      %c0_108 = arith.constant 0 : index
      %c0_109 = arith.constant 0 : index
      %269 = vector.load %arg20[%c0_107, %c0_108, %c0_109] : memref<2x16x128xf32, #tpu.memory_space<vmem>>, vector<2x16x128xf32>
      tpu.vector_store %arg20[%c0_107, %c0_108, %c0_109], %268 {strides = array<i32>} : memref<2x16x128xf32, #tpu.memory_space<vmem>>, vector<2x16x128xf32>,
    } else {
    }
    return
  }
  func.func @transform_0(%arg0: i32, %arg1: i32) -> (i32, i32, i32) {
    %c0_i32 = arith.constant 0 : i32
    %c0_i32_0 = arith.constant 0 : i32
    %c0_i32_1 = arith.constant 0 : i32
    return %arg0, %c0_i32, %c0_i32_0 : i32, i32, i32
  }
  func.func @transform_1(%arg0: i32, %arg1: i32) -> (i32, i32, i32) {
    %c0_i32 = arith.constant 0 : i32
    %c0_i32_0 = arith.constant 0 : i32
    %c0_i32_1 = arith.constant 0 : i32
    return %arg0, %c0_i32, %c0_i32_0 : i32, i32, i32
  }
  func.func @transform_2(%arg0: i32, %arg1: i32) -> (i32, i32, i32) {
    %c0_i32 = arith.constant 0 : i32
    %c0_i32_0 = arith.constant 0 : i32
    %c0_i32_1 = arith.constant 0 : i32
    return %arg0, %c0_i32, %c0_i32_0 : i32, i32, i32
  }
  func.func @transform_3(%arg0: i32, %arg1: i32) -> (i32, i32, i32) {
    %c0_i32 = arith.constant 0 : i32
    %c0_i32_0 = arith.constant 0 : i32
    %c0_i32_1 = arith.constant 0 : i32
    return %arg0, %c0_i32, %c0_i32_0 : i32, i32, i32
  }
  func.func @transform_4(%arg0: i32, %arg1: i32) -> (i32, i32, i32) {
    %c0_i32 = arith.constant 0 : i32
    %c0_i32_0 = arith.constant 0 : i32
    %c0_i32_1 = arith.constant 0 : i32
    return %arg1, %c0_i32, %c0_i32_0 : i32, i32, i32
  }
  func.func @transform_5(%arg0: i32, %arg1: i32) -> (i32, i32, i32) {
    %c0_i32 = arith.constant 0 : i32
    %c0_i32_0 = arith.constant 0 : i32
    %c0_i32_1 = arith.constant 0 : i32
    return %arg1, %c0_i32, %c0_i32_0 : i32, i32, i32
  }
  func.func @transform_6(%arg0: i32, %arg1: i32) -> (i32, i32, i32) {
    %c0_i32 = arith.constant 0 : i32
    %c0_i32_0 = arith.constant 0 : i32
    %c0_i32_1 = arith.constant 0 : i32
    return %arg1, %c0_i32, %c0_i32_0 : i32, i32, i32
  }
  func.func @transform_7(%arg0: i32, %arg1: i32) -> (i32, i32, i32) {
    %c0_i32 = arith.constant 0 : i32
    %c0_i32_0 = arith.constant 0 : i32
    %c0_i32_1 = arith.constant 0 : i32
    return %arg1, %c0_i32, %c0_i32_0 : i32, i32, i32
  }
  func.func @transform_8(%arg0: i32, %arg1: i32) -> (i32, i32, i32, i32) {
    %c0_i32 = arith.constant 0 : i32
    %c0_i32_0 = arith.constant 0 : i32
    %c0_i32_1 = arith.constant 0 : i32
    %c0_i32_2 = arith.constant 0 : i32
    return %arg1, %c0_i32, %c0_i32_0, %c0_i32_1 : i32, i32, i32, i32
  }
  func.func @transform_9(%arg0: i32, %arg1: i32) -> (i32, i32, i32) {
    %c0_i32 = arith.constant 0 : i32
    %c0_i32_0 = arith.constant 0 : i32
    %c0_i32_1 = arith.constant 0 : i32
    return %arg1, %c0_i32, %c0_i32_0 : i32, i32, i32
  }
  func.func @transform_10(%arg0: i32, %arg1: i32) -> (i32, i32, i32) {
    %c0_i32 = arith.constant 0 : i32
    %c0_i32_0 = arith.constant 0 : i32
    %c0_i32_1 = arith.constant 0 : i32
    return %arg1, %c0_i32, %c0_i32_0 : i32, i32, i32
  }
  func.func @transform_11(%arg0: i32, %arg1: i32) -> (i32, i32, i32) {
    %c0_i32 = arith.constant 0 : i32
    %c0_i32_0 = arith.constant 0 : i32
    %c0_i32_1 = arith.constant 0 : i32
    return %arg1, %c0_i32, %c0_i32_0 : i32, i32, i32
  }
  func.func @transform_12(%arg0: i32, %arg1: i32) -> (i32, i32, i32) {
    %c0_i32 = arith.constant 0 : i32
    %c0_i32_0 = arith.constant 0 : i32
    %c0_i32_1 = arith.constant 0 : i32
    return %arg1, %c0_i32, %c0_i32_0 : i32, i32, i32
  }
  func.func @transform_13(%arg0: i32, %arg1: i32) -> (i32, i32, i32) {
    %c0_i32 = arith.constant 0 : i32
    %c0_i32_0 = arith.constant 0 : i32
    %c0_i32_1 = arith.constant 0 : i32
    return %arg1, %c0_i32, %c0_i32_0 : i32, i32, i32
  }
  func.func @transform_14(%arg0: i32, %arg1: i32) -> (i32, i32, i32) {
    %c0_i32 = arith.constant 0 : i32
    %c0_i32_0 = arith.constant 0 : i32
    %c0_i32_1 = arith.constant 0 : i32
    return %arg1, %c0_i32, %c0_i32_0 : i32, i32, i32
  }
  func.func @transform_15(%arg0: i32, %arg1: i32) -> (i32, i32, i32) {
    %c0_i32 = arith.constant 0 : i32
    %c0_i32_0 = arith.constant 0 : i32
    %c0_i32_1 = arith.constant 0 : i32
    return %arg1, %c0_i32, %c0_i32_0 : i32, i32, i32
  }
  func.func @transform_16(%arg0: i32, %arg1: i32) -> (i32, i32) {
    %c0_i32 = arith.constant 0 : i32
    %c0_i32_0 = arith.constant 0 : i32
    %c0_i32_1 = arith.constant 0 : i32
    return %c0_i32, %c0_i32_0 : i32, i32
  }
  func.func @transform_17(%arg0: i32, %arg1: i32) -> (i32, i32) {
    %c0_i32 = arith.constant 0 : i32
    %c0_i32_0 = arith.constant 0 : i32
    %c0_i32_1 = arith.constant 0 : i32
    return %c0_i32, %c0_i32_0 : i32, i32
  }
  func.func @transform_18(%arg0: i32, %arg1: i32) -> (i32, i32, i32) {
    %c0_i32 = arith.constant 0 : i32
    %c0_i32_0 = arith.constant 0 : i32
    %c0_i32_1 = arith.constant 0 : i32
    return %arg0, %c0_i32, %c0_i32_0 : i32, i32, i32
  }
}

</mosaic_0001>

<llo_original>
// kernel: tpu_custom_call.1
$region0: #{tpu_custom_call.1}
  #allocation0 [shape = 'u32[]', space=smem, size = 0x4, offset = 0x4, fixed_abs, tag = 'smem constant byte address 0x4 - core index']
  #allocation1 [shape = 'u32[144,128]{1,0:T(1,128)}', space=vmem, size = 0x12000, scoped, tag = 'internal scratch']
  #allocation2 [shape = 'f32[2,16,128]{2,1,0:T(8,128)}', space=vmem, size = 0x4000, scoped, tag = 'scratch operand']
  %s0 = inlined_call_operand.vmem [shape: bf16[2,16,128], index: 0, kind: input, shape index: {}]
  %s1 = inlined_call_operand.hbm [shape: bf16[2,128,128], index: 1, kind: input, shape index: {}]
  %s2 = inlined_call_operand.hbm [shape: bf16[2,128,128], index: 2, kind: input, shape index: {}]
  %s3 = inlined_call_operand.vmem [shape: bf16[2,16,128], index: 3, kind: input, shape index: {}]
  %s4 = inlined_call_operand.hbm [shape: bf16[2,128,256], index: 4, kind: input, shape index: {}]
  %s5 = inlined_call_operand.hbm [shape: bf16[2,128,128], index: 5, kind: input, shape index: {}]
  %s6 = inlined_call_operand.hbm [shape: bf16[2,128,128], index: 6, kind: input, shape index: {}]
  %s7 = inlined_call_operand.vmem [shape: f32[2,4,128], index: 7, kind: input, shape index: {}]
  %s8 = inlined_call_operand.hbm [shape: bf16[2,4,128,128], index: 8, kind: input, shape index: {}]
  %s9 = inlined_call_operand.hbm [shape: f32[2,4,128], index: 9, kind: input, shape index: {}]
  %s10 = inlined_call_operand.hbm [shape: bf16[2,128,128], index: 10, kind: input, shape index: {}]
  %s11 = inlined_call_operand.hbm [shape: f32[2,1,128], index: 11, kind: input, shape index: {}]
  %s12 = inlined_call_operand.hbm [shape: bf16[2,128,128], index: 12, kind: input, shape index: {}]
  %s13 = inlined_call_operand.hbm [shape: f32[2,1,128], index: 13, kind: input, shape index: {}]
  %s14 = inlined_call_operand.vmem [shape: f32[2,3,128], index: 14, kind: input, shape index: {}]
  %s15 = inlined_call_operand.vmem [shape: f32[2,3,128], index: 15, kind: input, shape index: {}]
  %s16 = inlined_call_operand.vmem [shape: f32[1,128], index: 16, kind: input, shape index: {}]
  %s17 = inlined_call_operand.vmem [shape: f32[1,128], index: 17, kind: input, shape index: {}]
  %s18 = inlined_call_operand.hbm [shape: f32[2,16,128], index: 18, kind: output, shape index: {}]
  %s19 = sld [smem:[#allocation0]]
  $region157: #{tpu_custom_call.1} parent=0
    _
  %s21 = ssub.s32 1, %s19
  %s22 = scalar_select 0, %s21, %s19
  $region1: #{tpu_custom_call.1} parent=0
    #allocation3 [shape = 'u8[65536]{0}', space=vmem, size = 0x10000, scoped, tag = 'input window, operand 1, single buffered']
    #allocation4 [shape = 's32[2]{0}', space=sflag, size = 0x8, scoped, tag = 'scoped memory for tpu_custom_call.1']
    #allocation5 [shape = 's32[2]{0}', space=sflag, size = 0x8, scoped, tag = 'scoped memory for tpu_custom_call.1']
    #allocation6 [shape = 'u8[65536]{0}', space=vmem, size = 0x10000, scoped, tag = 'input window, operand 2, single buffered']
    #allocation7 [shape = 's32[1]{0}', space=sflag, size = 0x4, scoped, tag = 'scoped memory for tpu_custom_call.1']
    #allocation8 [shape = 'u8[131072]{0}', space=vmem, size = 0x20000, scoped, tag = 'input window, operand 4']
    #allocation9 [shape = 'u8[65536]{0}', space=vmem, size = 0x10000, scoped, tag = 'input window, operand 5']
    #allocation10 [shape = 'u8[65536]{0}', space=vmem, size = 0x10000, scoped, tag = 'input window, operand 6']
    #allocation11 [shape = 'u8[262144]{0}', space=vmem, size = 0x40000, scoped, tag = 'input window, operand 8']
    #allocation12 [shape = 'u8[4096]{0}', space=vmem, size = 0x1000, scoped, tag = 'input window, operand 9']
    #allocation13 [shape = 'u8[65536]{0}', space=vmem, size = 0x10000, scoped, tag = 'input window, operand 10']
    #allocation14 [shape = 'u8[1024]{0}', space=vmem, size = 0x400, scoped, tag = 'input window, operand 11']
    #allocation15 [shape = 'u8[65536]{0}', space=vmem, size = 0x10000, scoped, tag = 'input window, operand 12']
    #allocation16 [shape = 'u8[1024]{0}', space=vmem, size = 0x400, scoped, tag = 'input window, operand 13']
    #allocation17 [shape = 'u8[16384]{0}', space=vmem, size = 0x4000, scoped, tag = 'output window, operand 0, single buffered']
    %23 = vsyncpa [#allocation4], 0
    %24 = vsyncpa [#allocation7], 0
    %25 = vsyncpa [#allocation5], 0
    loop: start=0, step=1, limit=4
    $region2: #{tpu_custom_call.1} parent=1 // loop_pre_header
      _
    $region3: #{tpu_custom_call.1} parent=1 // loop_header
      %s27 = sphi 0, %s31
      %p28 = scmp.ge.s32.totalorder %s27, 4
      %s34 = sphi 0, %s46
      %s35 = sphi 0, %s42
      %s36 = sphi 0, %s34
      %s37 = sphi 0, %s35
      %s38 = sphi 0, %s36
      %s39 = sphi 0, %s37
      %s49 = sphi 0, %s51
      %s52 = sphi 0, %s49
      %s53 = sphi 0, %s52
      %s69 = sphi 0, %s53
      %s75 = sphi 0, %s77
      %s78 = sphi 0, %s75
      %s79 = sphi 0, %s78
      %s95 = sphi 0, %s79
      %s101 = sphi 0, %s103
      %s104 = sphi 0, %s101
      %s105 = sphi 0, %s104
      %s121 = sphi 0, %s105
      %s127 = sphi 0, %s129
      %s130 = sphi 0, %s127
      %s131 = sphi 0, %s130
      %s147 = sphi 0, %s131
      %s153 = sphi 0, %s155
      %s156 = sphi 0, %s153
      %s157 = sphi 0, %s156
      %s173 = sphi 0, %s157
      %s179 = sphi 0, %s181
      %s182 = sphi 0, %s179
      %s183 = sphi 0, %s182
      %s199 = sphi 0, %s183
      %s205 = sphi 0, %s207
      %s208 = sphi 0, %s205
      %s209 = sphi 0, %s208
      %s225 = sphi 0, %s209
      %s231 = sphi 0, %s233
      %s234 = sphi 0, %s231
      %s235 = sphi 0, %s234
      %s251 = sphi 0, %s235
      %s257 = sphi 0, %s259
      %s260 = sphi 0, %s257
      %s261 = sphi 0, %s260
      %s277 = sphi 0, %s261
      %s283 = sphi 0, %s285
      %s286 = sphi 0, %s283
      %s287 = sphi 0, %s286
      %s303 = sphi 0, %s287
      %s309 = sphi 0, %s311
      %s312 = sphi 0, %s309
      %s313 = sphi 0, %s312
      %s329 = sphi 0, %s313
      %s335 = sphi 0, %s337
      %s338 = sphi 0, %s335
      %s339 = sphi 0, %s338
      %s355 = sphi 0, %s339
      %s361 = sphi 0, %s363
      %s364 = sphi 0, %s361
      %s365 = sphi 0, %s364
      %s381 = sphi 0, %s365
      %s387 = sphi 0, %s389
      %s390 = sphi 0, %s387
      %s391 = sphi 0, %s390
      %s407 = sphi 0, %s391
      %s413 = sphi 0, %s415
      %s416 = sphi 0, %s413
      %s417 = sphi 0, %s416
      %s433 = sphi 0, %s417
      %s439 = sphi 0, %s441
      %s442 = sphi 0, %s439
      %s443 = sphi 0, %s442
      %s459 = sphi 0, %s443
      %s463 = sphi 0, %s463
      %s465 = sphi 0, %s463
      %s466 = sphi 0, %s465
      %s480 = sphi 0, %s466
      %s484 = sphi 0, %s484
      %s486 = sphi 0, %s484
      %s487 = sphi 0, %s486
      %s501 = sphi 0, %s487
      %s507 = sphi 0, %s509
      %s510 = sphi 0, %s507
      %s511 = sphi 0, %s510
      %s527 = sphi 0, %s511
    $region4: #{tpu_custom_call.1} parent=1 // loop_header_branch
      %30 = sbr.rel (%p28) target = $region8
    $region5: #{tpu_custom_call.1} parent=1 // loop_body
      %s32 = ssub.s32 %s27, 1
      %s33 = ssub.s32 %s27, 2
      %s40 = sadd.s32 1, %s35
      %p41 = scmp.ge.s32.totalorder %s40, 2
      %s42 = scalar_select %p41, 0, %s40
      %s43 = sadd.s32 1, %s34
      %s44 = scalar_select %p41, %s43, %s34
      %p45 = scmp.ge.s32.totalorder %s44, 1
      %s46 = scalar_select %p45, 0, %s44
      %s47 = ssub.s32 %s34, %s46
      %p48 = scmp.eq.s32.totalorder %s47, 0
      %s50 = sadd.s32 %s49, 1
      %s51 = scalar_select %p48, %s49, %s50
      %p54 = pneg %p48
      %p55 = scmp.eq.s32.totalorder %s27, 1
      %p56 = por %p54, %p55
      %p57 = scmp.ne.s32.totalorder %s49, %s52
      %p58 = scmp.eq.s32.totalorder %s27, 0
      %p59 = por %p57, %p58
      %p60 = scmp.ne.s32.totalorder %s49, %s52
      %p61 = scmp.eq.s32.totalorder %s32, 1
      %p62 = por %p60, %p61
      %p63 = scmp.ne.s32.totalorder %s52, %s53
      %p64 = scmp.eq.s32.totalorder %s32, 0
      %p65 = por %p63, %p64
      %p66 = scmp.ne.s32.totalorder %s52, %s53
      %p67 = scmp.eq.s32.totalorder %s33, 1
      %p68 = por %p66, %p67
      %p70 = scmp.ne.s32.totalorder %s53, %s69
      %p71 = scmp.eq.s32.totalorder %s33, 0
      %p72 = por %p70, %p71
      %s73 = ssub.s32 %s34, %s46
      %p74 = scmp.eq.s32.totalorder %s73, 0
      %s76 = sadd.s32 %s75, 1
      %s77 = scalar_select %p74, %s75, %s76
      %p80 = pneg %p74
      %p81 = scmp.eq.s32.totalorder %s27, 1
      %p82 = por %p80, %p81
      %p83 = scmp.ne.s32.totalorder %s75, %s78
      %p84 = scmp.eq.s32.totalorder %s27, 0
      %p85 = por %p83, %p84
      %p86 = scmp.ne.s32.totalorder %s75, %s78
      %p87 = scmp.eq.s32.totalorder %s32, 1
      %p88 = por %p86, %p87
      %p89 = scmp.ne.s32.totalorder %s78, %s79
      %p90 = scmp.eq.s32.totalorder %s32, 0
      %p91 = por %p89, %p90
      %p92 = scmp.ne.s32.totalorder %s78, %s79
      %p93 = scmp.eq.s32.totalorder %s33, 1
      %p94 = por %p92, %p93
      %p96 = scmp.ne.s32.totalorder %s79, %s95
      %p97 = scmp.eq.s32.totalorder %s33, 0
      %p98 = por %p96, %p97
      %s99 = ssub.s32 %s34, %s46
      %p100 = scmp.eq.s32.totalorder %s99, 0
      %s102 = sadd.s32 %s101, 1
      %s103 = scalar_select %p100, %s101, %s102
      %p106 = pneg %p100
      %p107 = scmp.eq.s32.totalorder %s27, 1
      %p108 = por %p106, %p107
      %p109 = scmp.ne.s32.totalorder %s101, %s104
      %p110 = scmp.eq.s32.totalorder %s27, 0
      %p111 = por %p109, %p110
      %p112 = scmp.ne.s32.totalorder %s101, %s104
      %p113 = scmp.eq.s32.totalorder %s32, 1
      %p114 = por %p112, %p113
      %p115 = scmp.ne.s32.totalorder %s104, %s105
      %p116 = scmp.eq.s32.totalorder %s32, 0
      %p117 = por %p115, %p116
      %p118 = scmp.ne.s32.totalorder %s104, %s105
      %p119 = scmp.eq.s32.totalorder %s33, 1
      %p120 = por %p118, %p119
      %p122 = scmp.ne.s32.totalorder %s105, %s121
      %p123 = scmp.eq.s32.totalorder %s33, 0
      %p124 = por %p122, %p123
      %s125 = ssub.s32 %s34, %s46
      %p126 = scmp.eq.s32.totalorder %s125, 0
      %s128 = sadd.s32 %s127, 1
      %s129 = scalar_select %p126, %s127, %s128
      %p132 = pneg %p126
      %p133 = scmp.eq.s32.totalorder %s27, 1
      %p134 = por %p132, %p133
      %p135 = scmp.ne.s32.totalorder %s127, %s130
      %p136 = scmp.eq.s32.totalorder %s27, 0
      %p137 = por %p135, %p136
      %p138 = scmp.ne.s32.totalorder %s127, %s130
      %p139 = scmp.eq.s32.totalorder %s32, 1
      %p140 = por %p138, %p139
      %p141 = scmp.ne.s32.totalorder %s130, %s131
      %p142 = scmp.eq.s32.totalorder %s32, 0
      %p143 = por %p141, %p142
      %p144 = scmp.ne.s32.totalorder %s130, %s131
      %p145 = scmp.eq.s32.totalorder %s33, 1
      %p146 = por %p144, %p145
      %p148 = scmp.ne.s32.totalorder %s131, %s147
      %p149 = scmp.eq.s32.totalorder %s33, 0
      %p150 = por %p148, %p149
      %s151 = ssub.s32 %s35, %s42
      %p152 = scmp.eq.s32.totalorder %s151, 0
      %s154 = sadd.s32 %s153, 1
      %s155 = scalar_select %p152, %s153, %s154
      %p158 = pneg %p152
      %p159 = scmp.eq.s32.totalorder %s27, 1
      %p160 = por %p158, %p159
      %p161 = scmp.ne.s32.totalorder %s153, %s156
      %p162 = scmp.eq.s32.totalorder %s27, 0
      %p163 = por %p161, %p162
      %p164 = scmp.ne.s32.totalorder %s153, %s156
      %p165 = scmp.eq.s32.totalorder %s32, 1
      %p166 = por %p164, %p165
      %p167 = scmp.ne.s32.totalorder %s156, %s157
      %p168 = scmp.eq.s32.totalorder %s32, 0
      %p169 = por %p167, %p168
      %p170 = scmp.ne.s32.totalorder %s156, %s157
      %p171 = scmp.eq.s32.totalorder %s33, 1
      %p172 = por %p170, %p171
      %p174 = scmp.ne.s32.totalorder %s157, %s173
      %p175 = scmp.eq.s32.totalorder %s33, 0
      %p176 = por %p174, %p175
      %s177 = ssub.s32 %s35, %s42
      %p178 = scmp.eq.s32.totalorder %s177, 0
      %s180 = sadd.s32 %s179, 1
      %s181 = scalar_select %p178, %s179, %s180
      %p184 = pneg %p178
      %p185 = scmp.eq.s32.totalorder %s27, 1
      %p186 = por %p184, %p185
      %p187 = scmp.ne.s32.totalorder %s179, %s182
      %p188 = scmp.eq.s32.totalorder %s27, 0
      %p189 = por %p187, %p188
      %p190 = scmp.ne.s32.totalorder %s179, %s182
      %p191 = scmp.eq.s32.totalorder %s32, 1
      %p192 = por %p190, %p191
      %p193 = scmp.ne.s32.totalorder %s182, %s183
      %p194 = scmp.eq.s32.totalorder %s32, 0
      %p195 = por %p193, %p194
      %p196 = scmp.ne.s32.totalorder %s182, %s183
      %p197 = scmp.eq.s32.totalorder %s33, 1
      %p198 = por %p196, %p197
      %p200 = scmp.ne.s32.totalorder %s183, %s199
      %p201 = scmp.eq.s32.totalorder %s33, 0
      %p202 = por %p200, %p201
      %s203 = ssub.s32 %s35, %s42
      %p204 = scmp.eq.s32.totalorder %s203, 0
      %s206 = sadd.s32 %s205, 1
      %s207 = scalar_select %p204, %s205, %s206
      %p210 = pneg %p204
      %p211 = scmp.eq.s32.totalorder %s27, 1
      %p212 = por %p210, %p211
      %p213 = scmp.ne.s32.totalorder %s205, %s208
      %p214 = scmp.eq.s32.totalorder %s27, 0
      %p215 = por %p213, %p214
      %p216 = scmp.ne.s32.totalorder %s205, %s208
      %p217 = scmp.eq.s32.totalorder %s32, 1
      %p218 = por %p216, %p217
      %p219 = scmp.ne.s32.totalorder %s208, %s209
      %p220 = scmp.eq.s32.totalorder %s32, 0
      %p221 = por %p219, %p220
      %p222 = scmp.ne.s32.totalorder %s208, %s209
      %p223 = scmp.eq.s32.totalorder %s33, 1
      %p224 = por %p222, %p223
      %p226 = scmp.ne.s32.totalorder %s209, %s225
      %p227 = scmp.eq.s32.totalorder %s33, 0
      %p228 = por %p226, %p227
      %s229 = ssub.s32 %s35, %s42
      %p230 = scmp.eq.s32.totalorder %s229, 0
      %s232 = sadd.s32 %s231, 1
      %s233 = scalar_select %p230, %s231, %s232
      %p236 = pneg %p230
      %p237 = scmp.eq.s32.totalorder %s27, 1
      %p238 = por %p236, %p237
      %p239 = scmp.ne.s32.totalorder %s231, %s234
      %p240 = scmp.eq.s32.totalorder %s27, 0
      %p241 = por %p239, %p240
      %p242 = scmp.ne.s32.totalorder %s231, %s234
      %p243 = scmp.eq.s32.totalorder %s32, 1
      %p244 = por %p242, %p243
      %p245 = scmp.ne.s32.totalorder %s234, %s235
      %p246 = scmp.eq.s32.totalorder %s32, 0
      %p247 = por %p245, %p246
      %p248 = scmp.ne.s32.totalorder %s234, %s235
      %p249 = scmp.eq.s32.totalorder %s33, 1
      %p250 = por %p248, %p249
      %p252 = scmp.ne.s32.totalorder %s235, %s251
      %p253 = scmp.eq.s32.totalorder %s33, 0
      %p254 = por %p252, %p253
      %s255 = ssub.s32 %s35, %s42
      %p256 = scmp.eq.s32.totalorder %s255, 0
      %s258 = sadd.s32 %s257, 1
      %s259 = scalar_select %p256, %s257, %s258
      %p262 = pneg %p256
      %p263 = scmp.eq.s32.totalorder %s27, 1
      %p264 = por %p262, %p263
      %p265 = scmp.ne.s32.totalorder %s257, %s260
      %p266 = scmp.eq.s32.totalorder %s27, 0
      %p267 = por %p265, %p266
      %p268 = scmp.ne.s32.totalorder %s257, %s260
      %p269 = scmp.eq.s32.totalorder %s32, 1
      %p270 = por %p268, %p269
      %p271 = scmp.ne.s32.totalorder %s260, %s261
      %p272 = scmp.eq.s32.totalorder %s32, 0
      %p273 = por %p271, %p272
      %p274 = scmp.ne.s32.totalorder %s260, %s261
      %p275 = scmp.eq.s32.totalorder %s33, 1
      %p276 = por %p274, %p275
      %p278 = scmp.ne.s32.totalorder %s261, %s277
      %p279 = scmp.eq.s32.totalorder %s33, 0
      %p280 = por %p278, %p279
      %s281 = ssub.s32 %s35, %s42
      %p282 = scmp.eq.s32.totalorder %s281, 0
      %s284 = sadd.s32 %s283, 1
      %s285 = scalar_select %p282, %s283, %s284
      %p288 = pneg %p282
      %p289 = scmp.eq.s32.totalorder %s27, 1
      %p290 = por %p288, %p289
      %p291 = scmp.ne.s32.totalorder %s283, %s286
      %p292 = scmp.eq.s32.totalorder %s27, 0
      %p293 = por %p291, %p292
      %p294 = scmp.ne.s32.totalorder %s283, %s286
      %p295 = scmp.eq.s32.totalorder %s32, 1
      %p296 = por %p294, %p295
      %p297 = scmp.ne.s32.totalorder %s286, %s287
      %p298 = scmp.eq.s32.totalorder %s32, 0
      %p299 = por %p297, %p298
      %p300 = scmp.ne.s32.totalorder %s286, %s287
      %p301 = scmp.eq.s32.totalorder %s33, 1
      %p302 = por %p300, %p301
      %p304 = scmp.ne.s32.totalorder %s287, %s303
      %p305 = scmp.eq.s32.totalorder %s33, 0
      %p306 = por %p304, %p305
      %s307 = ssub.s32 %s35, %s42
      %p308 = scmp.eq.s32.totalorder %s307, 0
      %s310 = sadd.s32 %s309, 1
      %s311 = scalar_select %p308, %s309, %s310
      %p314 = pneg %p308
      %p315 = scmp.eq.s32.totalorder %s27, 1
      %p316 = por %p314, %p315
      %p317 = scmp.ne.s32.totalorder %s309, %s312
      %p318 = scmp.eq.s32.totalorder %s27, 0
      %p319 = por %p317, %p318
      %p320 = scmp.ne.s32.totalorder %s309, %s312
      %p321 = scmp.eq.s32.totalorder %s32, 1
      %p322 = por %p320, %p321
      %p323 = scmp.ne.s32.totalorder %s312, %s313
      %p324 = scmp.eq.s32.totalorder %s32, 0
      %p325 = por %p323, %p324
      %p326 = scmp.ne.s32.totalorder %s312, %s313
      %p327 = scmp.eq.s32.totalorder %s33, 1
      %p328 = por %p326, %p327
      %p330 = scmp.ne.s32.totalorder %s313, %s329
      %p331 = scmp.eq.s32.totalorder %s33, 0
      %p332 = por %p330, %p331
      %s333 = ssub.s32 %s35, %s42
      %p334 = scmp.eq.s32.totalorder %s333, 0
      %s336 = sadd.s32 %s335, 1
      %s337 = scalar_select %p334, %s335, %s336
      %p340 = pneg %p334
      %p341 = scmp.eq.s32.totalorder %s27, 1
      %p342 = por %p340, %p341
      %p343 = scmp.ne.s32.totalorder %s335, %s338
      %p344 = scmp.eq.s32.totalorder %s27, 0
      %p345 = por %p343, %p344
      %p346 = scmp.ne.s32.totalorder %s335, %s338
      %p347 = scmp.eq.s32.totalorder %s32, 1
      %p348 = por %p346, %p347
      %p349 = scmp.ne.s32.totalorder %s338, %s339
      %p350 = scmp.eq.s32.totalorder %s32, 0
      %p351 = por %p349, %p350
      %p352 = scmp.ne.s32.totalorder %s338, %s339
      %p353 = scmp.eq.s32.totalorder %s33, 1
      %p354 = por %p352, %p353
      %p356 = scmp.ne.s32.totalorder %s339, %s355
      %p357 = scmp.eq.s32.totalorder %s33, 0
      %p358 = por %p356, %p357
      %s359 = ssub.s32 %s35, %s42
      %p360 = scmp.eq.s32.totalorder %s359, 0
      %s362 = sadd.s32 %s361, 1
      %s363 = scalar_select %p360, %s361, %s362
      %p366 = pneg %p360
      %p367 = scmp.eq.s32.totalorder %s27, 1
      %p368 = por %p366, %p367
      %p369 = scmp.ne.s32.totalorder %s361, %s364
      %p370 = scmp.eq.s32.totalorder %s27, 0
      %p371 = por %p369, %p370
      %p372 = scmp.ne.s32.totalorder %s361, %s364
      %p373 = scmp.eq.s32.totalorder %s32, 1
      %p374 = por %p372, %p373
      %p375 = scmp.ne.s32.totalorder %s364, %s365
      %p376 = scmp.eq.s32.totalorder %s32, 0
      %p377 = por %p375, %p376
      %p378 = scmp.ne.s32.totalorder %s364, %s365
      %p379 = scmp.eq.s32.totalorder %s33, 1
      %p380 = por %p378, %p379
      %p382 = scmp.ne.s32.totalorder %s365, %s381
      %p383 = scmp.eq.s32.totalorder %s33, 0
      %p384 = por %p382, %p383
      %s385 = ssub.s32 %s35, %s42
      %p386 = scmp.eq.s32.totalorder %s385, 0
      %s388 = sadd.s32 %s387, 1
      %s389 = scalar_select %p386, %s387, %s388
      %p392 = pneg %p386
      %p393 = scmp.eq.s32.totalorder %s27, 1
      %p394 = por %p392, %p393
      %p395 = scmp.ne.s32.totalorder %s387, %s390
      %p396 = scmp.eq.s32.totalorder %s27, 0
      %p397 = por %p395, %p396
      %p398 = scmp.ne.s32.totalorder %s387, %s390
      %p399 = scmp.eq.s32.totalorder %s32, 1
      %p400 = por %p398, %p399
      %p401 = scmp.ne.s32.totalorder %s390, %s391
      %p402 = scmp.eq.s32.totalorder %s32, 0
      %p403 = por %p401, %p402
      %p404 = scmp.ne.s32.totalorder %s390, %s391
      %p405 = scmp.eq.s32.totalorder %s33, 1
      %p406 = por %p404, %p405
      %p408 = scmp.ne.s32.totalorder %s391, %s407
      %p409 = scmp.eq.s32.totalorder %s33, 0
      %p410 = por %p408, %p409
      %s411 = ssub.s32 %s35, %s42
      %p412 = scmp.eq.s32.totalorder %s411, 0
      %s414 = sadd.s32 %s413, 1
      %s415 = scalar_select %p412, %s413, %s414
      %p418 = pneg %p412
      %p419 = scmp.eq.s32.totalorder %s27, 1
      %p420 = por %p418, %p419
      %p421 = scmp.ne.s32.totalorder %s413, %s416
      %p422 = scmp.eq.s32.totalorder %s27, 0
      %p423 = por %p421, %p422
      %p424 = scmp.ne.s32.totalorder %s413, %s416
      %p425 = scmp.eq.s32.totalorder %s32, 1
      %p426 = por %p424, %p425
      %p427 = scmp.ne.s32.totalorder %s416, %s417
      %p428 = scmp.eq.s32.totalorder %s32, 0
      %p429 = por %p427, %p428
      %p430 = scmp.ne.s32.totalorder %s416, %s417
      %p431 = scmp.eq.s32.totalorder %s33, 1
      %p432 = por %p430, %p431
      %p434 = scmp.ne.s32.totalorder %s417, %s433
      %p435 = scmp.eq.s32.totalorder %s33, 0
      %p436 = por %p434, %p435
      %s437 = ssub.s32 %s35, %s42
      %p438 = scmp.eq.s32.totalorder %s437, 0
      %s440 = sadd.s32 %s439, 1
      %s441 = scalar_select %p438, %s439, %s440
      %p444 = pneg %p438
      %p445 = scmp.eq.s32.totalorder %s27, 1
      %p446 = por %p444, %p445
      %p447 = scmp.ne.s32.totalorder %s439, %s442
      %p448 = scmp.eq.s32.totalorder %s27, 0
      %p449 = por %p447, %p448
      %p450 = scmp.ne.s32.totalorder %s439, %s442
      %p451 = scmp.eq.s32.totalorder %s32, 1
      %p452 = por %p450, %p451
      %p453 = scmp.ne.s32.totalorder %s442, %s443
      %p454 = scmp.eq.s32.totalorder %s32, 0
      %p455 = por %p453, %p454
      %p456 = scmp.ne.s32.totalorder %s442, %s443
      %p457 = scmp.eq.s32.totalorder %s33, 1
      %p458 = por %p456, %p457
      %p460 = scmp.ne.s32.totalorder %s443, %s459
      %p461 = scmp.eq.s32.totalorder %s33, 0
      %p462 = por %p460, %p461
      %s464 = sadd.s32 %s463, 1
      %p467 = scmp.eq.s32.totalorder %s27, 1
      %p468 = scmp.ne.s32.totalorder %s463, %s465
      %p469 = scmp.eq.s32.totalorder %s27, 0
      %p470 = por %p468, %p469
      %p471 = scmp.ne.s32.totalorder %s463, %s465
      %p472 = scmp.eq.s32.totalorder %s32, 1
      %p473 = por %p471, %p472
      %p474 = scmp.ne.s32.totalorder %s465, %s466
      %p475 = scmp.eq.s32.totalorder %s32, 0
      %p476 = por %p474, %p475
      %p477 = scmp.ne.s32.totalorder %s465, %s466
      %p478 = scmp.eq.s32.totalorder %s33, 1
      %p479 = por %p477, %p478
      %p481 = scmp.ne.s32.totalorder %s466, %s480
      %p482 = scmp.eq.s32.totalorder %s33, 0
      %p483 = por %p481, %p482
      %s485 = sadd.s32 %s484, 1
      %p488 = scmp.eq.s32.totalorder %s27, 1
      %p489 = scmp.ne.s32.totalorder %s484, %s486
      %p490 = scmp.eq.s32.totalorder %s27, 0
      %p491 = por %p489, %p490
      %p492 = scmp.ne.s32.totalorder %s484, %s486
      %p493 = scmp.eq.s32.totalorder %s32, 1
      %p494 = por %p492, %p493
      %p495 = scmp.ne.s32.totalorder %s486, %s487
      %p496 = scmp.eq.s32.totalorder %s32, 0
      %p497 = por %p495, %p496
      %p498 = scmp.ne.s32.totalorder %s486, %s487
      %p499 = scmp.eq.s32.totalorder %s33, 1
      %p500 = por %p498, %p499
      %p502 = scmp.ne.s32.totalorder %s487, %s501
      %p503 = scmp.eq.s32.totalorder %s33, 0
      %p504 = por %p502, %p503
      %s505 = ssub.s32 %s34, %s46
      %p506 = scmp.eq.s32.totalorder %s505, 0
      %s508 = sadd.s32 %s507, 1
      %s509 = scalar_select %p506, %s507, %s508
      %p512 = pneg %p506
      %p513 = scmp.eq.s32.totalorder %s27, 1
      %p514 = por %p512, %p513
      %p515 = scmp.ne.s32.totalorder %s507, %s510
      %p516 = scmp.eq.s32.totalorder %s27, 0
      %p517 = por %p515, %p516
      %p518 = scmp.ne.s32.totalorder %s507, %s510
      %p519 = scmp.eq.s32.totalorder %s32, 1
      %p520 = por %p518, %p519
      %p521 = scmp.ne.s32.totalorder %s510, %s511
      %p522 = scmp.eq.s32.totalorder %s32, 0
      %p523 = por %p521, %p522
      %p524 = scmp.ne.s32.totalorder %s510, %s511
      %p525 = scmp.eq.s32.totalorder %s33, 1
      %p526 = por %p524, %p525
      %p528 = scmp.ne.s32.totalorder %s511, %s527
      %p529 = scmp.eq.s32.totalorder %s33, 0
      %p530 = por %p528, %p529
      %p531 = scmp.le.s32.totalorder 1, %s27
      %p532 = scmp.lt.s32.totalorder %s27, 3
      %p533 = pnand %p531, %p532
      %p534 = pneg %p533
      // Predicated region
      $region9: #{tpu_custom_call.1} parent=5 // pred_check
        _
      $region10: #{tpu_custom_call.1} parent=5 // pred_check_branch
        %536 = sbr.rel (%p533) target = $region12
      $region11: #{tpu_custom_call.1} parent=5 // pred_region
        %s537 = ssub.s32 %s27, 1
        // Predicated region
        $region13: #{tpu_custom_call.1} parent=11 // pred_check
          %p538 = pneg %p65
        $region14: #{tpu_custom_call.1} parent=11 // pred_check_branch
          %540 = sbr.rel (%p538) target = $region16
        $region15: #{tpu_custom_call.1} parent=11 // pred_region
          %s541 = smul.u32 2, %s36
          %p542 = scmp.lt.s32.totalorder %s541, 1
          %s543 = scalar_select %p542, %s541, 1
          %s544 = smul.addr %s543, 2
          %s545 = smul.addr %s544, 4
          %s546 = scalar_lea.vmem %s0, %s545
          %s547 = smul.u32 2, %s36
        $region16: #{tpu_custom_call.1} parent=11 // pred_fallthru
          _
        // Predicated region
        $region17: #{tpu_custom_call.1} parent=11 // pred_check
          %p548 = pneg %p91
        $region18: #{tpu_custom_call.1} parent=11 // pred_check_branch
          %550 = sbr.rel (%p548) target = $region20
        $region19: #{tpu_custom_call.1} parent=11 // pred_region
          %s551 = smul.u32 2, %s36
          %s553 = ssub.s32 2048, 2048
          %554 = vsyncadd [#allocation4], %s553
          %s555 = smul.addr %s551, 16
          %s556 = smul.addr %s555, 64
          %s557 = scalar_lea.hbm %s1, %s556
          %s558 = sshll.u32 [#allocation3], 4
          %s559 = int_to_ptr.vmem [resolvable:$true] %s558
          %564 = dma.hbm_to_vmem [thread:$0]  %s557, 2048, %s559, [#allocation4], 64, 64, 4
        $region20: #{tpu_custom_call.1} parent=11 // pred_fallthru
          _
        // Predicated region
        $region21: #{tpu_custom_call.1} parent=11 // pred_check
          %p565 = pneg %p117
        $region22: #{tpu_custom_call.1} parent=11 // pred_check_branch
          %567 = sbr.rel (%p565) target = $region24
        $region23: #{tpu_custom_call.1} parent=11 // pred_region
          %s568 = smul.u32 2, %s36
          %s570 = ssub.s32 2048, 2048
          %571 = vsyncadd [#allocation7], %s570
          %s572 = smul.addr %s568, 16
          %s573 = smul.addr %s572, 64
          %s574 = scalar_lea.hbm %s2, %s573
          %s575 = sshll.u32 [#allocation6], 4
          %s576 = int_to_ptr.vmem [resolvable:$true] %s575
          %581 = dma.hbm_to_vmem [thread:$0]  %s574, 2048, %s576, [#allocation7], 64, 64, 4
        $region24: #{tpu_custom_call.1} parent=11 // pred_fallthru
          _
        // Predicated region
        $region25: #{tpu_custom_call.1} parent=11 // pred_check
          %p582 = pneg %p143
        $region26: #{tpu_custom_call.1} parent=11 // pred_check_branch
          %584 = sbr.rel (%p582) target = $region28
        $region27: #{tpu_custom_call.1} parent=11 // pred_region
          %s585 = smul.u32 2, %s36
          %p586 = scmp.lt.s32.totalorder %s585, 1
          %s587 = scalar_select %p586, %s585, 1
          %s588 = smul.addr %s587, 2
          %s589 = smul.addr %s588, 4
          %s590 = scalar_lea.vmem %s3, %s589
          %s591 = smul.u32 2, %s36
        $region28: #{tpu_custom_call.1} parent=11 // pred_fallthru
          _
        // Predicated region
        $region29: #{tpu_custom_call.1} parent=11 // pred_check
          %p592 = pneg %p476
        $region30: #{tpu_custom_call.1} parent=11 // pred_check_branch
          %594 = sbr.rel (%p592) target = $region32
        $region31: #{tpu_custom_call.1} parent=11 // pred_region
          _
        $region32: #{tpu_custom_call.1} parent=11 // pred_fallthru
          _
        // Predicated region
        $region33: #{tpu_custom_call.1} parent=11 // pred_check
          %p595 = pneg %p497
        $region34: #{tpu_custom_call.1} parent=11 // pred_check_branch
          %597 = sbr.rel (%p595) target = $region36
        $region35: #{tpu_custom_call.1} parent=11 // pred_region
          _
        $region36: #{tpu_custom_call.1} parent=11 // pred_fallthru
          _
      $region12: #{tpu_custom_call.1} parent=5 // pred_fallthru
        _
      %p598 = scmp.lt.s32.totalorder %s27, 2
      // Predicated region
      $region37: #{tpu_custom_call.1} parent=5 // pred_check
        %p599 = pneg %p598
      $region38: #{tpu_custom_call.1} parent=5 // pred_check_branch
        %601 = sbr.rel (%p599) target = $region40
      $region39: #{tpu_custom_call.1} parent=5 // pred_region
        // Predicated region
        $region41: #{tpu_custom_call.1} parent=39 // pred_check
          %p602 = pneg %p163
        $region42: #{tpu_custom_call.1} parent=39 // pred_check_branch
          %604 = sbr.rel (%p602) target = $region44
        $region43: #{tpu_custom_call.1} parent=39 // pred_region
          %s605 = sand.u32 %s27, 1
          %s606 = scalar_lea.sflag [#allocation4], %s605
          %s607 = sand.u32 %s153, 1
          %s608 = smul.addr %s607, 128
          %s609 = scalar_lea.vmem [#allocation8], %s608
          %s611 = ssub.s32 2048, 2048
          %612 = vsyncadd %s606, %s611
          %s613 = smul.addr %s35, 32
          %s614 = smul.addr %s613, 64
          %s615 = scalar_lea.hbm %s4, %s614
          %s616 = sshll.u32 %s609, 4
          %s617 = int_to_ptr.vmem [resolvable:$true] %s616
          %622 = dma.hbm_to_vmem [thread:$0]  %s615, 2048, %s617, %s606, 128, 128, 8
        $region44: #{tpu_custom_call.1} parent=39 // pred_fallthru
          _
        // Predicated region
        $region45: #{tpu_custom_call.1} parent=39 // pred_check
          %p623 = pneg %p189
        $region46: #{tpu_custom_call.1} parent=39 // pred_check_branch
          %625 = sbr.rel (%p623) target = $region48
        $region47: #{tpu_custom_call.1} parent=39 // pred_region
          %s626 = sand.u32 %s27, 1
          %s627 = scalar_lea.sflag [#allocation4], %s626
          %s628 = sand.u32 %s179, 1
          %s629 = smul.addr %s628, 64
          %s630 = scalar_lea.vmem [#allocation9], %s629
          %s632 = ssub.s32 1024, 1024
          %633 = vsyncadd %s627, %s632
          %s634 = smul.addr %s35, 16
          %s635 = smul.addr %s634, 64
          %s636 = scalar_lea.hbm %s5, %s635
          %s637 = sshll.u32 %s630, 4
          %s638 = int_to_ptr.vmem [resolvable:$true] %s637
          %643 = dma.hbm_to_vmem [thread:$0]  %s636, 1024, %s638, %s627, 64, 64, 4
        $region48: #{tpu_custom_call.1} parent=39 // pred_fallthru
          _
        // Predicated region
        $region49: #{tpu_custom_call.1} parent=39 // pred_check
          %p644 = pneg %p215
        $region50: #{tpu_custom_call.1} parent=39 // pred_check_branch
          %646 = sbr.rel (%p644) target = $region52
        $region51: #{tpu_custom_call.1} parent=39 // pred_region
          %s647 = sand.u32 %s27, 1
          %s648 = scalar_lea.sflag [#allocation4], %s647
          %s649 = sand.u32 %s205, 1
          %s650 = smul.addr %s649, 64
          %s651 = scalar_lea.vmem [#allocation10], %s650
          %s653 = ssub.s32 1024, 1024
          %654 = vsyncadd %s648, %s653
          %s655 = smul.addr %s35, 16
          %s656 = smul.addr %s655, 64
          %s657 = scalar_lea.hbm %s6, %s656
          %s658 = sshll.u32 %s651, 4
          %s659 = int_to_ptr.vmem [resolvable:$true] %s658
          %664 = dma.hbm_to_vmem [thread:$0]  %s657, 1024, %s659, %s648, 64, 64, 4
        $region52: #{tpu_custom_call.1} parent=39 // pred_fallthru
          _
        // Predicated region
        $region53: #{tpu_custom_call.1} parent=39 // pred_check
          %p665 = pneg %p241
        $region54: #{tpu_custom_call.1} parent=39 // pred_check_branch
          %667 = sbr.rel (%p665) target = $region56
        $region55: #{tpu_custom_call.1} parent=39 // pred_region
          %p668 = scmp.lt.s32.totalorder %s35, 1
          %s669 = scalar_select %p668, %s35, 1
          %s670 = smul.addr %s669, 4
          %s671 = scalar_lea.vmem %s7, %s670
        $region56: #{tpu_custom_call.1} parent=39 // pred_fallthru
          _
        // Predicated region
        $region57: #{tpu_custom_call.1} parent=39 // pred_check
          %p672 = pneg %p267
        $region58: #{tpu_custom_call.1} parent=39 // pred_check_branch
          %674 = sbr.rel (%p672) target = $region60
        $region59: #{tpu_custom_call.1} parent=39 // pred_region
          %s675 = sand.u32 %s27, 1
          %s676 = scalar_lea.sflag [#allocation4], %s675
          %s677 = sand.u32 %s257, 1
          %s678 = smul.addr %s677, 256
          %s679 = scalar_lea.vmem [#allocation11], %s678
          %s681 = ssub.s32 4096, 4096
          %682 = vsyncadd %s676, %s681
          %s683 = smul.addr %s35, 64
          %s684 = smul.addr %s683, 64
          %s685 = scalar_lea.hbm %s8, %s684
          %s686 = sshll.u32 %s679, 4
          %s687 = int_to_ptr.vmem [resolvable:$true] %s686
          %692 = dma.hbm_to_vmem [thread:$0]  %s685, 4096, %s687, %s676, 64, 64, 4
        $region60: #{tpu_custom_call.1} parent=39 // pred_fallthru
          _
        // Predicated region
        $region61: #{tpu_custom_call.1} parent=39 // pred_check
          %p693 = pneg %p293
        $region62: #{tpu_custom_call.1} parent=39 // pred_check_branch
          %695 = sbr.rel (%p693) target = $region64
        $region63: #{tpu_custom_call.1} parent=39 // pred_region
          %s696 = sand.u32 %s27, 1
          %s697 = scalar_lea.sflag [#allocation4], %s696
          %s698 = sand.u32 %s283, 1
          %s699 = smul.addr %s698, 4
          %s700 = scalar_lea.vmem [#allocation12], %s699
          %s702 = ssub.s32 64, 64
          %703 = vsyncadd %s697, %s702
          %s704 = smul.addr %s35, 64
          %s705 = scalar_lea.hbm %s9, %s704
          %s707 = sshll.u32 %s700, 4
          %s708 = int_to_ptr.vmem [resolvable:$true] %s707
          %710 = dma.hbm_to_vmem [thread:$0]  %s705, 64, %s708, %s697
        $region64: #{tpu_custom_call.1} parent=39 // pred_fallthru
          _
        // Predicated region
        $region65: #{tpu_custom_call.1} parent=39 // pred_check
          %p711 = pneg %p319
        $region66: #{tpu_custom_call.1} parent=39 // pred_check_branch
          %713 = sbr.rel (%p711) target = $region68
        $region67: #{tpu_custom_call.1} parent=39 // pred_region
          %s714 = sand.u32 %s27, 1
          %s715 = scalar_lea.sflag [#allocation4], %s714
          %s716 = sand.u32 %s309, 1
          %s717 = smul.addr %s716, 64
          %s718 = scalar_lea.vmem [#allocation13], %s717
          %s720 = ssub.s32 1024, 1024
          %721 = vsyncadd %s715, %s720
          %s722 = smul.addr %s35, 16
          %s723 = smul.addr %s722, 64
          %s724 = scalar_lea.hbm %s10, %s723
          %s725 = sshll.u32 %s718, 4
          %s726 = int_to_ptr.vmem [resolvable:$true] %s725
          %731 = dma.hbm_to_vmem [thread:$0]  %s724, 1024, %s726, %s715, 64, 64, 4
        $region68: #{tpu_custom_call.1} parent=39 // pred_fallthru
          _
        // Predicated region
        $region69: #{tpu_custom_call.1} parent=39 // pred_check
          %p732 = pneg %p345
        $region70: #{tpu_custom_call.1} parent=39 // pred_check_branch
          %734 = sbr.rel (%p732) target = $region72
        $region71: #{tpu_custom_call.1} parent=39 // pred_region
          %s735 = sand.u32 %s27, 1
          %s736 = scalar_lea.sflag [#allocation4], %s735
          %s737 = sand.u32 %s335, 1
          %s738 = scalar_lea.vmem [#allocation14], %s737
          %s740 = ssub.s32 16, 16
          %741 = vsyncadd %s736, %s740
          %s742 = smul.addr %s35, 16
          %s743 = scalar_lea.hbm %s11, %s742
          %s745 = sshll.u32 %s738, 4
          %s746 = int_to_ptr.vmem [resolvable:$true] %s745
          %748 = dma.hbm_to_vmem [thread:$0]  %s743, 16, %s746, %s736
        $region72: #{tpu_custom_call.1} parent=39 // pred_fallthru
          _
        // Predicated region
        $region73: #{tpu_custom_call.1} parent=39 // pred_check
          %p749 = pneg %p371
        $region74: #{tpu_custom_call.1} parent=39 // pred_check_branch
          %751 = sbr.rel (%p749) target = $region76
        $region75: #{tpu_custom_call.1} parent=39 // pred_region
          %s752 = sand.u32 %s27, 1
          %s753 = scalar_lea.sflag [#allocation4], %s752
          %s754 = sand.u32 %s361, 1
          %s755 = smul.addr %s754, 64
          %s756 = scalar_lea.vmem [#allocation15], %s755
          %s758 = ssub.s32 1024, 1024
          %759 = vsyncadd %s753, %s758
          %s760 = smul.addr %s35, 16
          %s761 = smul.addr %s760, 64
          %s762 = scalar_lea.hbm %s12, %s761
          %s763 = sshll.u32 %s756, 4
          %s764 = int_to_ptr.vmem [resolvable:$true] %s763
          %769 = dma.hbm_to_vmem [thread:$0]  %s762, 1024, %s764, %s753, 64, 64, 4
        $region76: #{tpu_custom_call.1} parent=39 // pred_fallthru
          _
        // Predicated region
        $region77: #{tpu_custom_call.1} parent=39 // pred_check
          %p770 = pneg %p397
        $region78: #{tpu_custom_call.1} parent=39 // pred_check_branch
          %772 = sbr.rel (%p770) target = $region80
        $region79: #{tpu_custom_call.1} parent=39 // pred_region
          %s773 = sand.u32 %s27, 1
          %s774 = scalar_lea.sflag [#allocation4], %s773
          %s775 = sand.u32 %s387, 1
          %s776 = scalar_lea.vmem [#allocation16], %s775
          %s778 = ssub.s32 16, 16
          %779 = vsyncadd %s774, %s778
          %s780 = smul.addr %s35, 16
          %s781 = scalar_lea.hbm %s13, %s780
          %s783 = sshll.u32 %s776, 4
          %s784 = int_to_ptr.vmem [resolvable:$true] %s783
          %786 = dma.hbm_to_vmem [thread:$0]  %s781, 16, %s784, %s774
        $region80: #{tpu_custom_call.1} parent=39 // pred_fallthru
          _
        // Predicated region
        $region81: #{tpu_custom_call.1} parent=39 // pred_check
          %p787 = pneg %p423
        $region82: #{tpu_custom_call.1} parent=39 // pred_check_branch
          %789 = sbr.rel (%p787) target = $region84
        $region83: #{tpu_custom_call.1} parent=39 // pred_region
          %p790 = scmp.lt.s32.totalorder %s35, 1
          %s791 = scalar_select %p790, %s35, 1
          %s792 = smul.addr %s791, 4
          %s793 = scalar_lea.vmem %s14, %s792
        $region84: #{tpu_custom_call.1} parent=39 // pred_fallthru
          _
        // Predicated region
        $region85: #{tpu_custom_call.1} parent=39 // pred_check
          %p794 = pneg %p449
        $region86: #{tpu_custom_call.1} parent=39 // pred_check_branch
          %796 = sbr.rel (%p794) target = $region88
        $region87: #{tpu_custom_call.1} parent=39 // pred_region
          %p797 = scmp.lt.s32.totalorder %s35, 1
          %s798 = scalar_select %p797, %s35, 1
          %s799 = smul.addr %s798, 4
          %s800 = scalar_lea.vmem %s15, %s799
        $region88: #{tpu_custom_call.1} parent=39 // pred_fallthru
          _
      $region40: #{tpu_custom_call.1} parent=5 // pred_fallthru
        _
      %p801 = scmp.le.s32.totalorder 1, %s27
      %p802 = scmp.lt.s32.totalorder %s27, 3
      %p803 = pnand %p801, %p802
      %p804 = pneg %p803
      // Predicated region
      $region89: #{tpu_custom_call.1} parent=5 // pred_check
        _
      $region90: #{tpu_custom_call.1} parent=5 // pred_check_branch
        %806 = sbr.rel (%p803) target = $region92
      $region91: #{tpu_custom_call.1} parent=5 // pred_region
        %s807 = ssub.s32 %s27, 1
        // Predicated region
        $region93: #{tpu_custom_call.1} parent=91 // pred_check
          %p808 = pneg %p91
        $region94: #{tpu_custom_call.1} parent=91 // pred_check_branch
          %810 = sbr.rel (%p808) target = $region96
        $region95: #{tpu_custom_call.1} parent=91 // pred_region
          %811 = dma.done [#allocation4], 2048
        $region96: #{tpu_custom_call.1} parent=91 // pred_fallthru
          _
        // Predicated region
        $region97: #{tpu_custom_call.1} parent=91 // pred_check
          %p812 = pneg %p117
        $region98: #{tpu_custom_call.1} parent=91 // pred_check_branch
          %814 = sbr.rel (%p812) target = $region100
        $region99: #{tpu_custom_call.1} parent=91 // pred_region
          %815 = dma.done [#allocation7], 2048
        $region100: #{tpu_custom_call.1} parent=91 // pred_fallthru
          _
        %s816 = sand.u32 %s32, 1
        %s817 = scalar_lea.sflag [#allocation4], %s816
        %s818 = sand.u32 %s156, 1
        %s819 = smul.addr %s818, 128
        %s820 = scalar_lea.vmem [#allocation8], %s819
        // Predicated region
        $region101: #{tpu_custom_call.1} parent=91 // pred_check
          %p821 = pneg %p169
        $region102: #{tpu_custom_call.1} parent=91 // pred_check_branch
          %823 = sbr.rel (%p821) target = $region104
        $region103: #{tpu_custom_call.1} parent=91 // pred_region
          %824 = dma.done %s817, 2048
        $region104: #{tpu_custom_call.1} parent=91 // pred_fallthru
          _
        %s825 = sand.u32 %s32, 1
        %s826 = scalar_lea.sflag [#allocation4], %s825
        %s827 = sand.u32 %s182, 1
        %s828 = smul.addr %s827, 64
        %s829 = scalar_lea.vmem [#allocation9], %s828
        // Predicated region
        $region105: #{tpu_custom_call.1} parent=91 // pred_check
          %p830 = pneg %p195
        $region106: #{tpu_custom_call.1} parent=91 // pred_check_branch
          %832 = sbr.rel (%p830) target = $region108
        $region107: #{tpu_custom_call.1} parent=91 // pred_region
          %833 = dma.done %s826, 1024
        $region108: #{tpu_custom_call.1} parent=91 // pred_fallthru
          _
        %s834 = sand.u32 %s32, 1
        %s835 = scalar_lea.sflag [#allocation4], %s834
        %s836 = sand.u32 %s208, 1
        %s837 = smul.addr %s836, 64
        %s838 = scalar_lea.vmem [#allocation10], %s837
        // Predicated region
        $region109: #{tpu_custom_call.1} parent=91 // pred_check
          %p839 = pneg %p221
        $region110: #{tpu_custom_call.1} parent=91 // pred_check_branch
          %841 = sbr.rel (%p839) target = $region112
        $region111: #{tpu_custom_call.1} parent=91 // pred_region
          %842 = dma.done %s835, 1024
        $region112: #{tpu_custom_call.1} parent=91 // pred_fallthru
          _
        %s843 = sand.u32 %s32, 1
        %s844 = scalar_lea.sflag [#allocation4], %s843
        %s845 = sand.u32 %s260, 1
        %s846 = smul.addr %s845, 256
        %s847 = scalar_lea.vmem [#allocation11], %s846
        // Predicated region
        $region113: #{tpu_custom_call.1} parent=91 // pred_check
          %p848 = pneg %p273
        $region114: #{tpu_custom_call.1} parent=91 // pred_check_branch
          %850 = sbr.rel (%p848) target = $region116
        $region115: #{tpu_custom_call.1} parent=91 // pred_region
          %851 = dma.done %s844, 4096
        $region116: #{tpu_custom_call.1} parent=91 // pred_fallthru
          _
        %s852 = sand.u32 %s32, 1
        %s853 = scalar_lea.sflag [#allocation4], %s852
        %s854 = sand.u32 %s286, 1
        %s855 = smul.addr %s854, 4
        %s856 = scalar_lea.vmem [#allocation12], %s855
        // Predicated region
        $region117: #{tpu_custom_call.1} parent=91 // pred_check
          %p857 = pneg %p299
        $region118: #{tpu_custom_call.1} parent=91 // pred_check_branch
          %859 = sbr.rel (%p857) target = $region120
        $region119: #{tpu_custom_call.1} parent=91 // pred_region
          %860 = dma.done %s853, 64
        $region120: #{tpu_custom_call.1} parent=91 // pred_fallthru
          _
        %s861 = sand.u32 %s32, 1
        %s862 = scalar_lea.sflag [#allocation4], %s861
        %s863 = sand.u32 %s312, 1
        %s864 = smul.addr %s863, 64
        %s865 = scalar_lea.vmem [#allocation13], %s864
        // Predicated region
        $region121: #{tpu_custom_call.1} parent=91 // pred_check
          %p866 = pneg %p325
        $region122: #{tpu_custom_call.1} parent=91 // pred_check_branch
          %868 = sbr.rel (%p866) target = $region124
        $region123: #{tpu_custom_call.1} parent=91 // pred_region
          %869 = dma.done %s862, 1024
        $region124: #{tpu_custom_call.1} parent=91 // pred_fallthru
          _
        %s870 = sand.u32 %s32, 1
        %s871 = scalar_lea.sflag [#allocation4], %s870
        %s872 = sand.u32 %s338, 1
        %s873 = scalar_lea.vmem [#allocation14], %s872
        // Predicated region
        $region125: #{tpu_custom_call.1} parent=91 // pred_check
          %p874 = pneg %p351
        $region126: #{tpu_custom_call.1} parent=91 // pred_check_branch
          %876 = sbr.rel (%p874) target = $region128
        $region127: #{tpu_custom_call.1} parent=91 // pred_region
          %877 = dma.done %s871, 16
        $region128: #{tpu_custom_call.1} parent=91 // pred_fallthru
          _
        %s878 = sand.u32 %s32, 1
        %s879 = scalar_lea.sflag [#allocation4], %s878
        %s880 = sand.u32 %s364, 1
        %s881 = smul.addr %s880, 64
        %s882 = scalar_lea.vmem [#allocation15], %s881
        // Predicated region
        $region129: #{tpu_custom_call.1} parent=91 // pred_check
          %p883 = pneg %p377
        $region130: #{tpu_custom_call.1} parent=91 // pred_check_branch
          %885 = sbr.rel (%p883) target = $region132
        $region131: #{tpu_custom_call.1} parent=91 // pred_region
          %886 = dma.done %s879, 1024
        $region132: #{tpu_custom_call.1} parent=91 // pred_fallthru
          _
        %s887 = sand.u32 %s32, 1
        %s888 = scalar_lea.sflag [#allocation4], %s887
        %s889 = sand.u32 %s390, 1
        %s890 = scalar_lea.vmem [#allocation16], %s889
        // Predicated region
        $region133: #{tpu_custom_call.1} parent=91 // pred_check
          %p891 = pneg %p403
        $region134: #{tpu_custom_call.1} parent=91 // pred_check_branch
          %893 = sbr.rel (%p891) target = $region136
        $region135: #{tpu_custom_call.1} parent=91 // pred_region
          %894 = dma.done %s888, 16
        $region136: #{tpu_custom_call.1} parent=91 // pred_fallthru
          _
        %s895 = smul.u32 2, %s36
        %p896 = scmp.lt.s32.totalorder %s895, 1
        %s897 = scalar_select %p896, %s895, 1
        %s898 = smul.addr %s897, 2
        %s899 = smul.addr %s898, 4
        %s900 = scalar_lea.vmem %s0, %s899
        %p901 = pneg %p65
        %p902 = pneg %p62
        %p903 = pneg %p91
        %p904 = pneg %p88
        %p905 = pneg %p117
        %p906 = pneg %p114
        %s907 = smul.u32 2, %s36
        %p908 = scmp.lt.s32.totalorder %s907, 1
        %s909 = scalar_select %p908, %s907, 1
        %s910 = smul.addr %s909, 2
        %s911 = smul.addr %s910, 4
        %s912 = scalar_lea.vmem %s3, %s911
        %p913 = pneg %p143
        %p914 = pneg %p140
        %s915 = sand.u32 %s32, 1
        %s916 = scalar_lea.sflag [#allocation4], %s915
        %s917 = sand.u32 %s156, 1
        %s918 = smul.addr %s917, 128
        %s919 = scalar_lea.vmem [#allocation8], %s918
        %p920 = pneg %p169
        %p921 = pneg %p166
        %s922 = sand.u32 %s32, 1
        %s923 = scalar_lea.sflag [#allocation4], %s922
        %s924 = sand.u32 %s182, 1
        %s925 = smul.addr %s924, 64
        %s926 = scalar_lea.vmem [#allocation9], %s925
        %p927 = pneg %p195
        %p928 = pneg %p192
        %s929 = sand.u32 %s32, 1
        %s930 = scalar_lea.sflag [#allocation4], %s929
        %s931 = sand.u32 %s208, 1
        %s932 = smul.addr %s931, 64
        %s933 = scalar_lea.vmem [#allocation10], %s932
        %p934 = pneg %p221
        %p935 = pneg %p218
        %p936 = scmp.lt.s32.totalorder %s37, 1
        %s937 = scalar_select %p936, %s37, 1
        %s938 = smul.addr %s937, 4
        %s939 = scalar_lea.vmem %s7, %s938
        %p940 = pneg %p247
        %p941 = pneg %p244
        %s942 = sand.u32 %s32, 1
        %s943 = scalar_lea.sflag [#allocation4], %s942
        %s944 = sand.u32 %s260, 1
        %s945 = smul.addr %s944, 256
        %s946 = scalar_lea.vmem [#allocation11], %s945
        %p947 = pneg %p273
        %p948 = pneg %p270
        %s949 = sand.u32 %s32, 1
        %s950 = scalar_lea.sflag [#allocation4], %s949
        %s951 = sand.u32 %s286, 1
        %s952 = smul.addr %s951, 4
        %s953 = scalar_lea.vmem [#allocation12], %s952
        %p954 = pneg %p299
        %p955 = pneg %p296
        %s956 = sand.u32 %s32, 1
        %s957 = scalar_lea.sflag [#allocation4], %s956
        %s958 = sand.u32 %s312, 1
        %s959 = smul.addr %s958, 64
        %s960 = scalar_lea.vmem [#allocation13], %s959
        %p961 = pneg %p325
        %p962 = pneg %p322
        %s963 = sand.u32 %s32, 1
        %s964 = scalar_lea.sflag [#allocation4], %s963
        %s965 = sand.u32 %s338, 1
        %s966 = scalar_lea.vmem [#allocation14], %s965
        %p967 = pneg %p351
        %p968 = pneg %p348
        %s969 = sand.u32 %s32, 1
        %s970 = scalar_lea.sflag [#allocation4], %s969
        %s971 = sand.u32 %s364, 1
        %s972 = smul.addr %s971, 64
        %s973 = scalar_lea.vmem [#allocation15], %s972
        %p974 = pneg %p377
        %p975 = pneg %p374
        %s976 = sand.u32 %s32, 1
        %s977 = scalar_lea.sflag [#allocation4], %s976
        %s978 = sand.u32 %s390, 1
        %s979 = scalar_lea.vmem [#allocation16], %s978
        %p980 = pneg %p403
        %p981 = pneg %p400
        %p982 = scmp.lt.s32.totalorder %s37, 1
        %s983 = scalar_select %p982, %s37, 1
        %s984 = smul.addr %s983, 4
        %s985 = scalar_lea.vmem %s14, %s984
        %p986 = pneg %p429
        %p987 = pneg %p426
        %p988 = scmp.lt.s32.totalorder %s37, 1
        %s989 = scalar_select %p988, %s37, 1
        %s990 = smul.addr %s989, 4
        %s991 = scalar_lea.vmem %s15, %s990
        %p992 = pneg %p455
        %p993 = pneg %p452
        %p994 = pneg %p476
        %p995 = pneg %p473
        %p996 = pneg %p497
        %p997 = pneg %p494
        %p998 = pneg %p523
        %p999 = pneg %p520
        %s1000 = smul.u32 2, %s36
        %p1001 = scmp.lt.s32.totalorder %s1000, 1
        %s1002 = scalar_select %p1001, %s1000, 1
        %s1003 = smul.addr %s1002, 2
        %s1004 = smul.addr %s1003, 4
        %s1005 = scalar_lea.vmem %s0, %s1004
        %s1006 = smul.u32 2, %s36
        %s1007 = smul.u32 2, %s36
        %s1008 = smul.u32 2, %s36
        %s1009 = smul.u32 2, %s36
        %p1010 = scmp.lt.s32.totalorder %s1009, 1
        %s1011 = scalar_select %p1010, %s1009, 1
        %s1012 = smul.addr %s1011, 2
        %s1013 = smul.addr %s1012, 4
        %s1014 = scalar_lea.vmem %s3, %s1013
        %s1015 = smul.u32 2, %s36
        %p1016 = scmp.lt.s32.totalorder %s37, 1
        %s1017 = scalar_select %p1016, %s37, 1
        %s1018 = smul.addr %s1017, 4
        %s1019 = scalar_lea.vmem %s7, %s1018
        %p1020 = scmp.lt.s32.totalorder %s37, 1
        %s1021 = scalar_select %p1020, %s37, 1
        %s1022 = smul.addr %s1021, 4
        %s1023 = scalar_lea.vmem %s14, %s1022
        %p1024 = scmp.lt.s32.totalorder %s37, 1
        %s1025 = scalar_select %p1024, %s37, 1
        %s1026 = smul.addr %s1025, 4
        %s1027 = scalar_lea.vmem %s15, %s1026
        %s1028 = smul.u32 2, %s36
        %p1030 = scmp.eq.s32.totalorder %s37, 0
        // Predicated region
        $region137: #{tpu_custom_call.1} parent=91 // pred_check
          %p1031 = pneg %p1030
        $region138: #{tpu_custom_call.1} parent=91 // pred_check_branch
          %1033 = sbr.rel (%p1031) target = $region140
        $region139: #{tpu_custom_call.1} parent=91 // pred_region
          %v1034 = vld [vmem:[%s1005] sm:$0xf]
          %v1035 = vld [vmem:[%s1005 + $0x4] sm:$0xf]
          %v1036 = vld [vmem:[%s1005 + $0x8] sm:$0xf]
          %v1037 = vld [vmem:[%s1005 + $0xc] sm:$0xf]
          %v1038 = vunpack.c.l.bf16 %v1034
          %v1039 = vunpack.c.l.bf16 %v1035
          %v1040 = vunpack.c.l.bf16 %v1036
          %v1041 = vunpack.c.l.bf16 %v1037
          %1042 = vst [vmem:[#allocation2] sm:$0xff] %v1038
          %1043 = vst [vmem:[#allocation2 + $0x8] sm:$0xff] %v1039
          %1044 = vst [vmem:[#allocation2 + $0x10] sm:$0xff] %v1040
          %1045 = vst [vmem:[#allocation2 + $0x18] sm:$0xff] %v1041
        $region140: #{tpu_custom_call.1} parent=91 // pred_fallthru
          _
        %v1046 = vlaneseq
        %v1047 = vand.u32 %v1046, 127
        %vm1048 = vcmp.lt.s32.totalorder %v1047, 32
        %v1049 = vsel %vm1048, 1, 0
        %v1050 = vcvt.s32.f32 %v1049
        %vm1051 = vcmp.lt.s32.totalorder %v1047, 10
        %vm1052 = vcmp.lt.s32.totalorder %v1047, 24
        %v1053 = vld [vmem:[%s1014] sm:$0xf]
        %v1054 = vld [vmem:[%s1014 + $0x4] sm:$0xf]
        %v1055 = vld [vmem:[%s1014 + $0x8] sm:$0xf]
        %v1056 = vld [vmem:[%s1014 + $0xc] sm:$0xf]
        %v1057 = vld [vmem:[%s1023] sm:$0x7]
        %v1058 = vld [vmem:[%s1027] sm:$0x7]
        %v1059 = vld [vmem:[%s1019] sm:$0xf]
        %v1060 = vld [vmem:[%s856] sm:$0xf]
        %v1061 = vld [vmem:[#allocation2] sm:$0xff]
        %v1062 = vld [vmem:[#allocation2 + $0x8] sm:$0xff]
        %v1063 = vld [vmem:[#allocation2 + $0x10] sm:$0xff]
        %v1064 = vld [vmem:[#allocation2 + $0x18] sm:$0xff]
        %v1065 = vpack.c.bf16 %v1062, %v1061
        %v1066 = vpack.c.bf16 %v1064, %v1063
        %v1071 = vunpack.c.l.b16 %v1053
        %v1072 = vunpack.c.l.b16 %v1054
        %v1073 = vunpack.c.l.b16 %v1055
        %v1074 = vunpack.c.l.b16 %v1056
        %v1075 = vpack.c.b16 %v1072, %v1071
        %v1076 = vpack.c.b16 %v1074, %v1073
        %v1079 = vadd.bf16 %v1065, %v1075
        %v1080 = vadd.bf16 %v1066, %v1076
        %v1081 = vld [vmem:[%s820] sm:$0xff]
        %v1082 = vld [vmem:[%s820 + $0x8] sm:$0xff]
        %v1083 = vld [vmem:[%s820 + $0x10] sm:$0xff]
        %v1084 = vld [vmem:[%s820 + $0x18] sm:$0xff]
        %v1085 = vld [vmem:[%s820 + $0x20] sm:$0xff]
        %v1086 = vld [vmem:[%s820 + $0x28] sm:$0xff]
        %v1087 = vld [vmem:[%s820 + $0x30] sm:$0xff]
        %v1088 = vld [vmem:[%s820 + $0x38] sm:$0xff]
        %v1089 = vld [vmem:[%s820 + $0x40] sm:$0xff]
        %v1090 = vld [vmem:[%s820 + $0x48] sm:$0xff]
        %v1091 = vld [vmem:[%s820 + $0x50] sm:$0xff]
        %v1092 = vld [vmem:[%s820 + $0x58] sm:$0xff]
        %v1093 = vld [vmem:[%s820 + $0x60] sm:$0xff]
        %v1094 = vld [vmem:[%s820 + $0x68] sm:$0xff]
        %v1095 = vld [vmem:[%s820 + $0x70] sm:$0xff]
        %v1096 = vld [vmem:[%s820 + $0x78] sm:$0xff]
        %v1113 = vunpack.c.l.b16 %v1081
        %v1114 = vunpack.c.h.b16 %v1081
        %v1115 = vunpack.c.l.b16 %v1082
        %v1116 = vunpack.c.h.b16 %v1082
        %v1117 = vunpack.c.l.b16 %v1083
        %v1118 = vunpack.c.h.b16 %v1083
        %v1119 = vunpack.c.l.b16 %v1084
        %v1120 = vunpack.c.h.b16 %v1084
        %v1121 = vunpack.c.l.b16 %v1085
        %v1122 = vunpack.c.h.b16 %v1085
        %v1123 = vunpack.c.l.b16 %v1086
        %v1124 = vunpack.c.h.b16 %v1086
        %v1125 = vunpack.c.l.b16 %v1087
        %v1126 = vunpack.c.h.b16 %v1087
        %v1127 = vunpack.c.l.b16 %v1088
        %v1128 = vunpack.c.h.b16 %v1088
        %v1129 = vunpack.c.l.b16 %v1089
        %v1130 = vunpack.c.h.b16 %v1089
        %v1131 = vunpack.c.l.b16 %v1090
        %v1132 = vunpack.c.h.b16 %v1090
        %v1133 = vunpack.c.l.b16 %v1091
        %v1134 = vunpack.c.h.b16 %v1091
        %v1135 = vunpack.c.l.b16 %v1092
        %v1136 = vunpack.c.h.b16 %v1092
        %v1137 = vunpack.c.l.b16 %v1093
        %v1138 = vunpack.c.h.b16 %v1093
        %v1139 = vunpack.c.l.b16 %v1094
        %v1140 = vunpack.c.h.b16 %v1094
        %v1141 = vunpack.c.l.b16 %v1095
        %v1142 = vunpack.c.h.b16 %v1095
        %v1143 = vunpack.c.l.b16 %v1096
        %v1144 = vunpack.c.h.b16 %v1096
        %v1145 = vpack.c.b16 %v1115, %v1113
        %v1146 = vpack.c.b16 %v1116, %v1114
        %v1147 = vpack.c.b16 %v1119, %v1117
        %v1148 = vpack.c.b16 %v1120, %v1118
        %v1149 = vpack.c.b16 %v1123, %v1121
        %v1150 = vpack.c.b16 %v1124, %v1122
        %v1151 = vpack.c.b16 %v1127, %v1125
        %v1152 = vpack.c.b16 %v1128, %v1126
        %v1153 = vpack.c.b16 %v1131, %v1129
        %v1154 = vpack.c.b16 %v1132, %v1130
        %v1155 = vpack.c.b16 %v1135, %v1133
        %v1156 = vpack.c.b16 %v1136, %v1134
        %v1157 = vpack.c.b16 %v1139, %v1137
        %v1158 = vpack.c.b16 %v1140, %v1138
        %v1159 = vpack.c.b16 %v1143, %v1141
        %v1160 = vpack.c.b16 %v1144, %v1142
        %1177 = vmatprep.subr.bf16.mxu0 %v1160
        %1178 = vmatpush1.bf16.msra.mxu0 %v1159
        %1179 = vmatprep.subr.bf16.mxu0 %v1158
        %1180 = vmatpush1.bf16.msra.mxu0 %v1157
        %1181 = vmatprep.subr.bf16.mxu0 %v1156
        %1182 = vmatpush1.bf16.msra.mxu0 %v1155
        %1183 = vmatprep.subr.bf16.mxu0 %v1154
        %1184 = vmatpush1.bf16.msra.mxu0 %v1153
        %1185 = vmatprep.subr.bf16.mxu0 %v1152
        %1186 = vmatpush1.bf16.msra.mxu0 %v1151
        %1187 = vmatprep.subr.bf16.mxu0 %v1150
        %1188 = vmatpush1.bf16.msra.mxu0 %v1149
        %1189 = vmatprep.subr.bf16.mxu0 %v1148
        %1190 = vmatpush1.bf16.msra.mxu0 %v1147
        %1191 = vmatprep.subr.bf16.mxu0 %v1146
        %1192 = vmatpush1.bf16.msra.mxu0 %v1145
        %1193 = vmatprep.subr.bf16.mxu0 0
        %1194 = vmatpush2.bf16.msra.mxu0 0
        %1195 = vmatprep.subr.bf16.mxu0 0
        %1196 = vmatpush2.bf16.msra.mxu0 0
        %1197 = vmatprep.subr.bf16.mxu0 0
        %1198 = vmatpush2.bf16.msra.mxu0 0
        %1199 = vmatprep.subr.bf16.mxu0 0
        %1200 = vmatpush2.bf16.msra.mxu0 0
        %1201 = vmatprep.subr.bf16.mxu0 0
        %1202 = vmatpush2.bf16.msra.mxu0 0
        %1203 = vmatprep.subr.bf16.mxu0 0
        %1204 = vmatpush2.bf16.msra.mxu0 0
        %1205 = vmatprep.subr.bf16.mxu0 0
        %1206 = vmatpush2.bf16.msra.mxu0 0
        %1207 = vmatprep.subr.bf16.mxu0 0
        %1208 = vmatpush2.bf16.msra.mxu0 0
        %1209 = vmatprep.mubr.bf16.mxu0 0
        %1210 = vmatmul.mubr.bf16.gmra.mxu0 %v1079
        %v1211 = vpop.f32.mrf.mxu0
        %v1212 = vadd.f32 0.0, %v1211
        %v1213 = vpop.f32.mrf.mxu0
        %v1214 = vadd.f32 0.0, %v1213
        %v1215 = vpop.f32.mrf.mxu0
        %v1216 = vadd.f32 0.0, %v1215
        %v1217 = vpop.f32.mrf.mxu0
        %v1218 = vadd.f32 0.0, %v1217
        %1219 = vmatprep.mubr.bf16.mxu0 0
        %1220 = vmatmul.mubr.bf16.gmra.mxu0 %v1080
        %v1221 = vpop.f32.mrf.mxu0
        %v1222 = vadd.f32 0.0, %v1221
        %v1223 = vpop.f32.mrf.mxu0
        %v1224 = vadd.f32 0.0, %v1223
        %v1225 = vpop.f32.mrf.mxu0
        %v1226 = vadd.f32 0.0, %v1225
        %v1227 = vpop.f32.mrf.mxu0
        %v1228 = vadd.f32 0.0, %v1227
        %1229 = vdwg.mxu0
        %v1230 = vlaneseq
        %v1231 = vshrl.u32 %v1230, 7
        %v1232 = vsub.s32 0, %v1231
        %v1233 = vrot.slane %v1059, %v1232
        %v1234 = vadd.f32 %v1212, %v1233
        %v1235 = vadd.f32 %v1216, %v1233
        %v1236 = vadd.f32 %v1222, %v1233
        %v1237 = vadd.f32 %v1226, %v1233
        %v1238 = vpack.c.bf16 %v1235, %v1234
        %v1239 = vpack.c.bf16 %v1237, %v1236
        %v1240 = vlaneseq
        %v1241 = vshrl.u32 %v1240, 7
        %v1242 = vsub.s32 1, %v1241
        %v1243 = vrot.slane %v1059, %v1242
        %v1244 = vadd.f32 %v1214, %v1243
        %v1245 = vadd.f32 %v1218, %v1243
        %v1246 = vadd.f32 %v1224, %v1243
        %v1247 = vadd.f32 %v1228, %v1243
        %v1248 = vpack.c.bf16 %v1245, %v1244
        %v1249 = vpack.c.bf16 %v1247, %v1246
        %v1250 = vld [vmem:[%s829] sm:$0xf]
        %v1251 = vld [vmem:[%s829 + $0x4] sm:$0xf]
        %v1252 = vld [vmem:[%s829 + $0x8] sm:$0xf]
        %v1253 = vld [vmem:[%s829 + $0xc] sm:$0xf]
        %v1254 = vld [vmem:[%s829 + $0x10] sm:$0xf]
        %v1255 = vld [vmem:[%s829 + $0x14] sm:$0xf]
        %v1256 = vld [vmem:[%s829 + $0x18] sm:$0xf]
        %v1257 = vld [vmem:[%s829 + $0x1c] sm:$0xf]
        %v1258 = vld [vmem:[%s829 + $0x20] sm:$0xf]
        %v1259 = vld [vmem:[%s829 + $0x24] sm:$0xf]
        %v1260 = vld [vmem:[%s829 + $0x28] sm:$0xf]
        %v1261 = vld [vmem:[%s829 + $0x2c] sm:$0xf]
        %v1262 = vld [vmem:[%s829 + $0x30] sm:$0xf]
        %v1263 = vld [vmem:[%s829 + $0x34] sm:$0xf]
        %v1264 = vld [vmem:[%s829 + $0x38] sm:$0xf]
        %v1265 = vld [vmem:[%s829 + $0x3c] sm:$0xf]
        %v1266 = vlaneseq
        %v1267 = vshrl.u32 %v1266, 7
        %v1268 = vsub.s32 2, %v1267
        %v1269 = vrot.slane %v1059, %v1268
        %v1286 = vunpack.c.l.b16 %v1250
        %v1287 = vunpack.c.l.b16 %v1251
        %v1288 = vunpack.c.l.b16 %v1252
        %v1289 = vunpack.c.l.b16 %v1253
        %v1290 = vunpack.c.l.b16 %v1254
        %v1291 = vunpack.c.l.b16 %v1255
        %v1292 = vunpack.c.l.b16 %v1256
        %v1293 = vunpack.c.l.b16 %v1257
        %v1294 = vunpack.c.l.b16 %v1258
        %v1295 = vunpack.c.l.b16 %v1259
        %v1296 = vunpack.c.l.b16 %v1260
        %v1297 = vunpack.c.l.b16 %v1261
        %v1298 = vunpack.c.l.b16 %v1262
        %v1299 = vunpack.c.l.b16 %v1263
        %v1300 = vunpack.c.l.b16 %v1264
        %v1301 = vunpack.c.l.b16 %v1265
        %v1302 = vpack.c.b16 %v1287, %v1286
        %v1303 = vpack.c.b16 %v1289, %v1288
        %v1304 = vpack.c.b16 %v1291, %v1290
        %v1305 = vpack.c.b16 %v1293, %v1292
        %v1306 = vpack.c.b16 %v1295, %v1294
        %v1307 = vpack.c.b16 %v1297, %v1296
        %v1308 = vpack.c.b16 %v1299, %v1298
        %v1309 = vpack.c.b16 %v1301, %v1300
        %1318 = vmatprep.subr.bf16.mxu0 0
        %1319 = vmatpush1.bf16.msra.mxu0 %v1309
        %1320 = vmatprep.subr.bf16.mxu0 0
        %1321 = vmatpush1.bf16.msra.mxu0 %v1308
        %1322 = vmatprep.subr.bf16.mxu0 0
        %1323 = vmatpush1.bf16.msra.mxu0 %v1307
        %1324 = vmatprep.subr.bf16.mxu0 0
        %1325 = vmatpush1.bf16.msra.mxu0 %v1306
        %1326 = vmatprep.subr.bf16.mxu0 0
        %1327 = vmatpush1.bf16.msra.mxu0 %v1305
        %1328 = vmatprep.subr.bf16.mxu0 0
        %1329 = vmatpush1.bf16.msra.mxu0 %v1304
        %1330 = vmatprep.subr.bf16.mxu0 0
        %1331 = vmatpush1.bf16.msra.mxu0 %v1303
        %1332 = vmatprep.subr.bf16.mxu0 0
        %1333 = vmatpush1.bf16.msra.mxu0 %v1302
        %1334 = vmatprep.subr.bf16.mxu0 0
        %1335 = vmatpush2.bf16.msra.mxu0 0
        %1336 = vmatprep.subr.bf16.mxu0 0
        %1337 = vmatpush2.bf16.msra.mxu0 0
        %1338 = vmatprep.subr.bf16.mxu0 0
        %1339 = vmatpush2.bf16.msra.mxu0 0
        %1340 = vmatprep.subr.bf16.mxu0 0
        %1341 = vmatpush2.bf16.msra.mxu0 0
        %1342 = vmatprep.subr.bf16.mxu0 0
        %1343 = vmatpush2.bf16.msra.mxu0 0
        %1344 = vmatprep.subr.bf16.mxu0 0
        %1345 = vmatpush2.bf16.msra.mxu0 0
        %1346 = vmatprep.subr.bf16.mxu0 0
        %1347 = vmatpush2.bf16.msra.mxu0 0
        %1348 = vmatprep.subr.bf16.mxu0 0
        %1349 = vmatpush2.bf16.msra.mxu0 0
        %1350 = vmatprep.mubr.bf16.mxu0 0
        %1351 = vmatmul.mubr.bf16.gmra.mxu0 %v1065
        %v1352 = vpop.f32.mrf.mxu0
        %v1353 = vadd.f32 %v1269, %v1352
        %v1354 = vpop.f32.mrf.mxu0
        %v1355 = vpop.f32.mrf.mxu0
        %v1356 = vadd.f32 %v1269, %v1355
        %v1357 = vpop.f32.mrf.mxu0
        %1358 = vmatprep.mubr.bf16.mxu0 0
        %1359 = vmatmul.mubr.bf16.gmra.mxu0 %v1066
        %v1360 = vpop.f32.mrf.mxu0
        %v1361 = vadd.f32 %v1269, %v1360
        %v1362 = vpop.f32.mrf.mxu0
        %v1363 = vpop.f32.mrf.mxu0
        %v1364 = vadd.f32 %v1269, %v1363
        %v1365 = vpop.f32.mrf.mxu0
        %1366 = vdwg.mxu0
        %v1367 = vpack.c.bf16 %v1356, %v1353
        %v1368 = vpack.c.bf16 %v1364, %v1361
        %1369 = vmatprep.subr.bf16.mxu0 0
        %1370 = vmatpush1.bf16.xpose.msra.mxu0 0
        %1371 = vmatprep.subr.bf16.mxu0 0
        %1372 = vmatpush1.bf16.xpose.msra.mxu0 0
        %1373 = vmatprep.subr.bf16.mxu0 0
        %1374 = vmatpush1.bf16.xpose.msra.mxu0 0
        %1375 = vmatprep.subr.bf16.mxu0 0
        %1376 = vmatpush1.bf16.xpose.msra.mxu0 0
        %1377 = vmatprep.subr.bf16.mxu0 0
        %1378 = vmatpush1.bf16.xpose.msra.mxu0 0
        %1379 = vmatprep.subr.bf16.mxu0 0
        %1380 = vmatpush1.bf16.xpose.msra.mxu0 0
        %1381 = vmatprep.subr.bf16.mxu0 0
        %1382 = vmatpush1.bf16.xpose.msra.mxu0 0
        %1383 = vmatprep.subr.bf16.mxu0 0
        %1384 = vmatpush1.bf16.xpose.msra.mxu0 %v1248
        %1385 = vmatprep.subr.bf16.mxu0 0
        %1386 = vmatpush2.bf16.xpose.msra.mxu0 0
        %1387 = vmatprep.subr.bf16.mxu0 0
        %1388 = vmatpush2.bf16.xpose.msra.mxu0 0
        %1389 = vmatprep.subr.bf16.mxu0 0
        %1390 = vmatpush2.bf16.xpose.msra.mxu0 0
        %1391 = vmatprep.subr.bf16.mxu0 0
        %1392 = vmatpush2.bf16.xpose.msra.mxu0 0
        %1393 = vmatprep.subr.bf16.mxu0 0
        %1394 = vmatpush2.bf16.xpose.msra.mxu0 0
        %1395 = vmatprep.subr.bf16.mxu0 0
        %1396 = vmatpush2.bf16.xpose.msra.mxu0 0
        %1397 = vmatprep.subr.bf16.mxu0 0
        %1398 = vmatpush2.bf16.xpose.msra.mxu0 0
        %1399 = vmatprep.subr.bf16.mxu0 0
        %1400 = vmatpush2.bf16.xpose.msra.mxu0 0
        %1401 = vmatprep.mubr.bf16.mxu0 0
        %1402 = vmatmul.mubr.bf16.gmra.mxu0 %v1238
        %v1403 = vpop.f32.mrf.mxu0
        %v1404 = vadd.f32 0.0, %v1403
        %v1405 = vpop.f32.mrf.mxu0
        %v1406 = vpop.f32.mrf.mxu0
        %v1407 = vadd.f32 0.0, %v1406
        %v1408 = vpop.f32.mrf.mxu0
        %1409 = vdwg.mxu0
        %1410 = vmatprep.subr.bf16.mxu0 0
        %1411 = vmatpush1.bf16.xpose.msra.mxu0 0
        %1412 = vmatprep.subr.bf16.mxu0 0
        %1413 = vmatpush1.bf16.xpose.msra.mxu0 0
        %1414 = vmatprep.subr.bf16.mxu0 0
        %1415 = vmatpush1.bf16.xpose.msra.mxu0 0
        %1416 = vmatprep.subr.bf16.mxu0 0
        %1417 = vmatpush1.bf16.xpose.msra.mxu0 0
        %1418 = vmatprep.subr.bf16.mxu0 0
        %1419 = vmatpush1.bf16.xpose.msra.mxu0 0
        %1420 = vmatprep.subr.bf16.mxu0 0
        %1421 = vmatpush1.bf16.xpose.msra.mxu0 0
        %1422 = vmatprep.subr.bf16.mxu0 0
        %1423 = vmatpush1.bf16.xpose.msra.mxu0 0
        %1424 = vmatprep.subr.bf16.mxu0 0
        %1425 = vmatpush1.bf16.xpose.msra.mxu0 %v1249
        %1426 = vmatprep.subr.bf16.mxu0 0
        %1427 = vmatpush2.bf16.xpose.msra.mxu0 0
        %1428 = vmatprep.subr.bf16.mxu0 0
        %1429 = vmatpush2.bf16.xpose.msra.mxu0 0
        %1430 = vmatprep.subr.bf16.mxu0 0
        %1431 = vmatpush2.bf16.xpose.msra.mxu0 0
        %1432 = vmatprep.subr.bf16.mxu0 0
        %1433 = vmatpush2.bf16.xpose.msra.mxu0 0
        %1434 = vmatprep.subr.bf16.mxu0 0
        %1435 = vmatpush2.bf16.xpose.msra.mxu0 0
        %1436 = vmatprep.subr.bf16.mxu0 0
        %1437 = vmatpush2.bf16.xpose.msra.mxu0 0
        %1438 = vmatprep.subr.bf16.mxu0 0
        %1439 = vmatpush2.bf16.xpose.msra.mxu0 0
        %1440 = vmatprep.subr.bf16.mxu0 0
        %1441 = vmatpush2.bf16.xpose.msra.mxu0 0
        %1442 = vmatprep.mubr.bf16.mxu0 0
        %1443 = vmatmul.mubr.bf16.gmra.mxu0 %v1239
        %v1444 = vpop.f32.mrf.mxu0
        %v1445 = vadd.f32 0.0, %v1444
        %v1446 = vpop.f32.mrf.mxu0
        %v1447 = vpop.f32.mrf.mxu0
        %v1448 = vadd.f32 0.0, %v1447
        %v1449 = vpop.f32.mrf.mxu0
        %1450 = vdwg.mxu0
        %v1451 = vmul.f32 %v1404, 0.17677669
        %v1452 = vmul.f32 %v1407, 0.17677669
        %v1453 = vmul.f32 %v1445, 0.17677669
        %v1454 = vmul.f32 %v1448, 0.17677669
        %v1455 = vsel %vm1051, 1, 0
        %vm1456 = vcmp.eq.s32.totalorder %v1455, 1
        %v1457 = vsel %vm1456, %v1451, -1e+30
        %v1458 = vsel %vm1456, %v1452, -1e+30
        %v1459 = vsel %vm1456, %v1453, -1e+30
        %v1460 = vsel %vm1456, %v1454, -1e+30
        %vm1461 = vcmask 130048
        %v1462 = vsel %vm1461, %v1457, -inf
        %1463 = vmax.xlane.f32.xlu0 %v1462
        %v1464 = vpop.xlane.xlu0 %1463
        %v1465 = vsel %vm1461, %v1458, -inf
        %1466 = vmax.xlane.f32.xlu0 %v1465
        %v1467 = vpop.xlane.xlu0 %1466
        %v1468 = vsel %vm1461, %v1459, -inf
        %1469 = vmax.xlane.f32.xlu0 %v1468
        %v1470 = vpop.xlane.xlu0 %1469
        %v1471 = vsel %vm1461, %v1460, -inf
        %1472 = vmax.xlane.f32.xlu0 %v1471
        %v1473 = vpop.xlane.xlu0 %1472
        %v1474 = vsub.f32 %v1457, %v1464
        %v1475 = vsub.f32 %v1458, %v1467
        %v1476 = vsub.f32 %v1459, %v1470
        %v1477 = vsub.f32 %v1460, %v1473
        %v1478 = vmul.f32 %v1474, 1.442695
        %v1479 = vpow.pop %v1478
        %v1480 = vmul.f32 %v1475, 1.442695
        %v1481 = vpow.pop %v1480
        %v1482 = vmul.f32 %v1476, 1.442695
        %v1483 = vpow.pop %v1482
        %v1484 = vmul.f32 %v1477, 1.442695
        %v1485 = vpow.pop %v1484
        %v1486 = vsel %vm1461, %v1479, 0.0
        %1487 = vadd.xlane.f32.xlu0 %v1486
        %v1488 = vpop.xlane.xlu0 %1487
        %v1489 = vsel %vm1461, %v1481, 0.0
        %1490 = vadd.xlane.f32.xlu0 %v1489
        %v1491 = vpop.xlane.xlu0 %1490
        %v1492 = vsel %vm1461, %v1483, 0.0
        %1493 = vadd.xlane.f32.xlu0 %v1492
        %v1494 = vpop.xlane.xlu0 %1493
        %v1495 = vsel %vm1461, %v1485, 0.0
        %1496 = vadd.xlane.f32.xlu0 %v1495
        %v1497 = vpop.xlane.xlu0 %1496
        %v1498 = vrcp.pop %v1488
        %v1499 = vrcp.pop %v1491
        %v1500 = vrcp.pop %v1494
        %v1501 = vrcp.pop %v1497
        %v1502 = vmul.f32 %v1479, %v1498
        %v1503 = vmul.f32 %v1481, %v1499
        %v1504 = vmul.f32 %v1483, %v1500
        %v1505 = vmul.f32 %v1485, %v1501
        %v1506 = vpack.c.bf16 %v1503, %v1502
        %v1507 = vpack.c.bf16 %v1505, %v1504
        %v1509 = vsel %vm1461, %v1506, 0
        %1511 = vmatprep.subr.bf16.mxu0 0
        %1512 = vmatpush1.bf16.msra.mxu0 0
        %1513 = vmatprep.subr.bf16.mxu0 0
        %1514 = vmatpush1.bf16.msra.mxu0 0
        %1515 = vmatprep.subr.bf16.mxu0 0
        %1516 = vmatpush1.bf16.msra.mxu0 0
        %1517 = vmatprep.subr.bf16.mxu0 0
        %1518 = vmatpush1.bf16.msra.mxu0 0
        %1519 = vmatprep.subr.bf16.mxu0 0
        %1520 = vmatpush1.bf16.msra.mxu0 0
        %1521 = vmatprep.subr.bf16.mxu0 0
        %1522 = vmatpush1.bf16.msra.mxu0 0
        %1523 = vmatprep.subr.bf16.mxu0 0
        %1524 = vmatpush1.bf16.msra.mxu0 0
        %1525 = vmatprep.subr.bf16.mxu0 0
        %1526 = vmatpush1.bf16.msra.mxu0 %v1367
        %1527 = vmatprep.subr.bf16.mxu0 0
        %1528 = vmatpush2.bf16.msra.mxu0 0
        %1529 = vmatprep.subr.bf16.mxu0 0
        %1530 = vmatpush2.bf16.msra.mxu0 0
        %1531 = vmatprep.subr.bf16.mxu0 0
        %1532 = vmatpush2.bf16.msra.mxu0 0
        %1533 = vmatprep.subr.bf16.mxu0 0
        %1534 = vmatpush2.bf16.msra.mxu0 0
        %1535 = vmatprep.subr.bf16.mxu0 0
        %1536 = vmatpush2.bf16.msra.mxu0 0
        %1537 = vmatprep.subr.bf16.mxu0 0
        %1538 = vmatpush2.bf16.msra.mxu0 0
        %1539 = vmatprep.subr.bf16.mxu0 0
        %1540 = vmatpush2.bf16.msra.mxu0 0
        %1541 = vmatprep.subr.bf16.mxu0 0
        %1542 = vmatpush2.bf16.msra.mxu0 0
        %1543 = vmatprep.mubr.bf16.mxu0 0
        %1544 = vmatmul.mubr.bf16.gmra.mxu0 %v1509
        %v1545 = vpop.f32.mrf.mxu0
        %v1546 = vadd.f32 0.0, %v1545
        %v1547 = vpop.f32.mrf.mxu0
        %v1548 = vpop.f32.mrf.mxu0
        %v1549 = vadd.f32 0.0, %v1548
        %v1550 = vpop.f32.mrf.mxu0
        %1551 = vdwg.mxu0
        %v1553 = vsel %vm1461, %v1507, 0
        %1555 = vmatprep.subr.bf16.mxu0 0
        %1556 = vmatpush1.bf16.msra.mxu0 0
        %1557 = vmatprep.subr.bf16.mxu0 0
        %1558 = vmatpush1.bf16.msra.mxu0 0
        %1559 = vmatprep.subr.bf16.mxu0 0
        %1560 = vmatpush1.bf16.msra.mxu0 0
        %1561 = vmatprep.subr.bf16.mxu0 0
        %1562 = vmatpush1.bf16.msra.mxu0 0
        %1563 = vmatprep.subr.bf16.mxu0 0
        %1564 = vmatpush1.bf16.msra.mxu0 0
        %1565 = vmatprep.subr.bf16.mxu0 0
        %1566 = vmatpush1.bf16.msra.mxu0 0
        %1567 = vmatprep.subr.bf16.mxu0 0
        %1568 = vmatpush1.bf16.msra.mxu0 0
        %1569 = vmatprep.subr.bf16.mxu0 0
        %1570 = vmatpush1.bf16.msra.mxu0 %v1368
        %1571 = vmatprep.subr.bf16.mxu0 0
        %1572 = vmatpush2.bf16.msra.mxu0 0
        %1573 = vmatprep.subr.bf16.mxu0 0
        %1574 = vmatpush2.bf16.msra.mxu0 0
        %1575 = vmatprep.subr.bf16.mxu0 0
        %1576 = vmatpush2.bf16.msra.mxu0 0
        %1577 = vmatprep.subr.bf16.mxu0 0
        %1578 = vmatpush2.bf16.msra.mxu0 0
        %1579 = vmatprep.subr.bf16.mxu0 0
        %1580 = vmatpush2.bf16.msra.mxu0 0
        %1581 = vmatprep.subr.bf16.mxu0 0
        %1582 = vmatpush2.bf16.msra.mxu0 0
        %1583 = vmatprep.subr.bf16.mxu0 0
        %1584 = vmatpush2.bf16.msra.mxu0 0
        %1585 = vmatprep.subr.bf16.mxu0 0
        %1586 = vmatpush2.bf16.msra.mxu0 0
        %1587 = vmatprep.mubr.bf16.mxu0 0
        %1588 = vmatmul.mubr.bf16.gmra.mxu0 %v1553
        %v1589 = vpop.f32.mrf.mxu0
        %v1590 = vadd.f32 0.0, %v1589
        %v1591 = vpop.f32.mrf.mxu0
        %v1592 = vpop.f32.mrf.mxu0
        %v1593 = vadd.f32 0.0, %v1592
        %v1594 = vpop.f32.mrf.mxu0
        %1595 = vdwg.mxu0
        %v1596 = vpack.c.bf16 %v1549, %v1546
        %v1597 = vpack.c.bf16 %v1593, %v1590
        %v1598 = vld [vmem:[%s838] sm:$0xf]
        %v1599 = vld [vmem:[%s838 + $0x4] sm:$0xf]
        %v1600 = vld [vmem:[%s838 + $0x8] sm:$0xf]
        %v1601 = vld [vmem:[%s838 + $0xc] sm:$0xf]
        %v1602 = vld [vmem:[%s838 + $0x10] sm:$0xf]
        %v1603 = vld [vmem:[%s838 + $0x14] sm:$0xf]
        %v1604 = vld [vmem:[%s838 + $0x18] sm:$0xf]
        %v1605 = vld [vmem:[%s838 + $0x1c] sm:$0xf]
        %v1606 = vld [vmem:[%s838 + $0x20] sm:$0xf]
        %v1607 = vld [vmem:[%s838 + $0x24] sm:$0xf]
        %v1608 = vld [vmem:[%s838 + $0x28] sm:$0xf]
        %v1609 = vld [vmem:[%s838 + $0x2c] sm:$0xf]
        %v1610 = vld [vmem:[%s838 + $0x30] sm:$0xf]
        %v1611 = vld [vmem:[%s838 + $0x34] sm:$0xf]
        %v1612 = vld [vmem:[%s838 + $0x38] sm:$0xf]
        %v1613 = vld [vmem:[%s838 + $0x3c] sm:$0xf]
        %v1614 = vlaneseq
        %v1615 = vshrl.u32 %v1614, 7
        %v1616 = vsub.s32 3, %v1615
        %v1617 = vrot.slane %v1059, %v1616
        %v1634 = vunpack.c.l.b16 %v1598
        %v1635 = vunpack.c.l.b16 %v1599
        %v1636 = vunpack.c.l.b16 %v1600
        %v1637 = vunpack.c.l.b16 %v1601
        %v1638 = vunpack.c.l.b16 %v1602
        %v1639 = vunpack.c.l.b16 %v1603
        %v1640 = vunpack.c.l.b16 %v1604
        %v1641 = vunpack.c.l.b16 %v1605
        %v1642 = vunpack.c.l.b16 %v1606
        %v1643 = vunpack.c.l.b16 %v1607
        %v1644 = vunpack.c.l.b16 %v1608
        %v1645 = vunpack.c.l.b16 %v1609
        %v1646 = vunpack.c.l.b16 %v1610
        %v1647 = vunpack.c.l.b16 %v1611
        %v1648 = vunpack.c.l.b16 %v1612
        %v1649 = vunpack.c.l.b16 %v1613
        %v1650 = vpack.c.b16 %v1635, %v1634
        %v1651 = vpack.c.b16 %v1637, %v1636
        %v1652 = vpack.c.b16 %v1639, %v1638
        %v1653 = vpack.c.b16 %v1641, %v1640
        %v1654 = vpack.c.b16 %v1643, %v1642
        %v1655 = vpack.c.b16 %v1645, %v1644
        %v1656 = vpack.c.b16 %v1647, %v1646
        %v1657 = vpack.c.b16 %v1649, %v1648
        %1666 = vmatprep.subr.bf16.mxu0 0
        %1667 = vmatpush1.bf16.msra.mxu0 %v1657
        %1668 = vmatprep.subr.bf16.mxu0 0
        %1669 = vmatpush1.bf16.msra.mxu0 %v1656
        %1670 = vmatprep.subr.bf16.mxu0 0
        %1671 = vmatpush1.bf16.msra.mxu0 %v1655
        %1672 = vmatprep.subr.bf16.mxu0 0
        %1673 = vmatpush1.bf16.msra.mxu0 %v1654
        %1674 = vmatprep.subr.bf16.mxu0 0
        %1675 = vmatpush1.bf16.msra.mxu0 %v1653
        %1676 = vmatprep.subr.bf16.mxu0 0
        %1677 = vmatpush1.bf16.msra.mxu0 %v1652
        %1678 = vmatprep.subr.bf16.mxu0 0
        %1679 = vmatpush1.bf16.msra.mxu0 %v1651
        %1680 = vmatprep.subr.bf16.mxu0 0
        %1681 = vmatpush1.bf16.msra.mxu0 %v1650
        %1682 = vmatprep.subr.bf16.mxu0 0
        %1683 = vmatpush2.bf16.msra.mxu0 0
        %1684 = vmatprep.subr.bf16.mxu0 0
        %1685 = vmatpush2.bf16.msra.mxu0 0
        %1686 = vmatprep.subr.bf16.mxu0 0
        %1687 = vmatpush2.bf16.msra.mxu0 0
        %1688 = vmatprep.subr.bf16.mxu0 0
        %1689 = vmatpush2.bf16.msra.mxu0 0
        %1690 = vmatprep.subr.bf16.mxu0 0
        %1691 = vmatpush2.bf16.msra.mxu0 0
        %1692 = vmatprep.subr.bf16.mxu0 0
        %1693 = vmatpush2.bf16.msra.mxu0 0
        %1694 = vmatprep.subr.bf16.mxu0 0
        %1695 = vmatpush2.bf16.msra.mxu0 0
        %1696 = vmatprep.subr.bf16.mxu0 0
        %1697 = vmatpush2.bf16.msra.mxu0 0
        %1698 = vmatprep.mubr.bf16.mxu0 0
        %1699 = vmatmul.mubr.bf16.gmra.mxu0 %v1596
        %v1700 = vpop.f32.mrf.mxu0
        %v1701 = vadd.f32 %v1617, %v1700
        %v1702 = vpop.f32.mrf.mxu0
        %v1703 = vpop.f32.mrf.mxu0
        %v1704 = vadd.f32 %v1617, %v1703
        %v1705 = vpop.f32.mrf.mxu0
        %1706 = vmatprep.mubr.bf16.mxu0 0
        %1707 = vmatmul.mubr.bf16.gmra.mxu0 %v1597
        %v1708 = vpop.f32.mrf.mxu0
        %v1709 = vadd.f32 %v1617, %v1708
        %v1710 = vpop.f32.mrf.mxu0
        %v1711 = vpop.f32.mrf.mxu0
        %v1712 = vadd.f32 %v1617, %v1711
        %v1713 = vpop.f32.mrf.mxu0
        %1714 = vdwg.mxu0
        %v1715 = vadd.f32 %v1061, %v1701
        %v1716 = vadd.f32 %v1062, %v1704
        %v1717 = vadd.f32 %v1063, %v1709
        %v1718 = vadd.f32 %v1064, %v1712
        %1719 = vadd.xlane.f32.xlu0 %v1715
        %v1720 = vpop.xlane.xlu0 %1719
        %1721 = vadd.xlane.f32.xlu0 %v1716
        %v1722 = vpop.xlane.xlu0 %1721
        %1723 = vadd.xlane.f32.xlu0 %v1717
        %v1724 = vpop.xlane.xlu0 %1723
        %1725 = vadd.xlane.f32.xlu0 %v1718
        %v1726 = vpop.xlane.xlu0 %1725
        %v1727 = vmul.f32 %v1720, 0.03125
        %v1728 = vmul.f32 %v1722, 0.03125
        %v1729 = vmul.f32 %v1724, 0.03125
        %v1730 = vmul.f32 %v1726, 0.03125
        %v1731 = vsub.f32 %v1715, %v1727
        %v1732 = vsub.f32 %v1716, %v1728
        %v1733 = vsub.f32 %v1717, %v1729
        %v1734 = vsub.f32 %v1718, %v1730
        %v1735 = vmul.f32 %v1731, %v1731
        %v1736 = vmul.f32 %v1732, %v1732
        %v1737 = vmul.f32 %v1733, %v1733
        %v1738 = vmul.f32 %v1734, %v1734
        %v1739 = vmul.f32 %v1735, %v1050
        %v1740 = vmul.f32 %v1736, %v1050
        %v1741 = vmul.f32 %v1737, %v1050
        %v1742 = vmul.f32 %v1738, %v1050
        %1743 = vadd.xlane.f32.xlu0 %v1739
        %v1744 = vpop.xlane.xlu0 %1743
        %1745 = vadd.xlane.f32.xlu0 %v1740
        %v1746 = vpop.xlane.xlu0 %1745
        %1747 = vadd.xlane.f32.xlu0 %v1741
        %v1748 = vpop.xlane.xlu0 %1747
        %1749 = vadd.xlane.f32.xlu0 %v1742
        %v1750 = vpop.xlane.xlu0 %1749
        %v1751 = vmul.f32 %v1744, 0.03125
        %v1752 = vmul.f32 %v1746, 0.03125
        %v1753 = vmul.f32 %v1748, 0.03125
        %v1754 = vmul.f32 %v1750, 0.03125
        %v1755 = vadd.f32 %v1751, 1e-05
        %v1756 = vadd.f32 %v1752, 1e-05
        %v1757 = vadd.f32 %v1753, 1e-05
        %v1758 = vadd.f32 %v1754, 1e-05
        %v1759 = vrsqrt.pop %v1755
        %v1760 = vrsqrt.pop %v1756
        %v1761 = vrsqrt.pop %v1757
        %v1762 = vrsqrt.pop %v1758
        %v1763 = vmul.f32 %v1731, %v1759
        %v1764 = vmul.f32 %v1732, %v1760
        %v1765 = vmul.f32 %v1733, %v1761
        %v1766 = vmul.f32 %v1734, %v1762
        %v1767 = vlaneseq
        %v1768 = vshrl.u32 %v1767, 7
        %v1769 = vsub.s32 0, %v1768
        %v1770 = vrot.slane %v1057, %v1769
        %v1771 = vmul.f32 %v1763, %v1770
        %v1772 = vmul.f32 %v1764, %v1770
        %v1773 = vmul.f32 %v1765, %v1770
        %v1774 = vmul.f32 %v1766, %v1770
        %v1775 = vlaneseq
        %v1776 = vshrl.u32 %v1775, 7
        %v1777 = vsub.s32 0, %v1776
        %v1778 = vrot.slane %v1058, %v1777
        %v1779 = vadd.f32 %v1771, %v1778
        %v1780 = vadd.f32 %v1772, %v1778
        %v1781 = vadd.f32 %v1773, %v1778
        %v1782 = vadd.f32 %v1774, %v1778
        %v1783 = vpack.c.bf16 %v1780, %v1779
        %v1784 = vpack.c.bf16 %v1782, %v1781
        %v1785 = vadd.bf16 %v1783, %v1075
        %v1786 = vadd.bf16 %v1784, %v1076
        %v1787 = vld [vmem:[%s847] sm:$0xf]
        %v1788 = vld [vmem:[%s847 + $0x4] sm:$0xf]
        %v1789 = vld [vmem:[%s847 + $0x8] sm:$0xf]
        %v1790 = vld [vmem:[%s847 + $0xc] sm:$0xf]
        %v1791 = vld [vmem:[%s847 + $0x10] sm:$0xf]
        %v1792 = vld [vmem:[%s847 + $0x14] sm:$0xf]
        %v1793 = vld [vmem:[%s847 + $0x18] sm:$0xf]
        %v1794 = vld [vmem:[%s847 + $0x1c] sm:$0xf]
        %v1795 = vld [vmem:[%s847 + $0x20] sm:$0xf]
        %v1796 = vld [vmem:[%s847 + $0x24] sm:$0xf]
        %v1797 = vld [vmem:[%s847 + $0x28] sm:$0xf]
        %v1798 = vld [vmem:[%s847 + $0x2c] sm:$0xf]
        %v1799 = vld [vmem:[%s847 + $0x30] sm:$0xf]
        %v1800 = vld [vmem:[%s847 + $0x34] sm:$0xf]
        %v1801 = vld [vmem:[%s847 + $0x38] sm:$0xf]
        %v1802 = vld [vmem:[%s847 + $0x3c] sm:$0xf]
        %v1803 = vlaneseq
        %v1804 = vshrl.u32 %v1803, 7
        %v1805 = vsub.s32 0, %v1804
        %v1806 = vrot.slane %v1060, %v1805
        %v1823 = vunpack.c.l.b16 %v1787
        %v1824 = vunpack.c.l.b16 %v1788
        %v1825 = vunpack.c.l.b16 %v1789
        %v1826 = vunpack.c.l.b16 %v1790
        %v1827 = vunpack.c.l.b16 %v1791
        %v1828 = vunpack.c.l.b16 %v1792
        %v1829 = vunpack.c.l.b16 %v1793
        %v1830 = vunpack.c.l.b16 %v1794
        %v1831 = vunpack.c.l.b16 %v1795
        %v1832 = vunpack.c.l.b16 %v1796
        %v1833 = vunpack.c.l.b16 %v1797
        %v1834 = vunpack.c.l.b16 %v1798
        %v1835 = vunpack.c.l.b16 %v1799
        %v1836 = vunpack.c.l.b16 %v1800
        %v1837 = vunpack.c.l.b16 %v1801
        %v1838 = vunpack.c.l.b16 %v1802
        %v1839 = vpack.c.b16 %v1824, %v1823
        %v1840 = vpack.c.b16 %v1826, %v1825
        %v1841 = vpack.c.b16 %v1828, %v1827
        %v1842 = vpack.c.b16 %v1830, %v1829
        %v1843 = vpack.c.b16 %v1832, %v1831
        %v1844 = vpack.c.b16 %v1834, %v1833
        %v1845 = vpack.c.b16 %v1836, %v1835
        %v1846 = vpack.c.b16 %v1838, %v1837
        %1855 = vmatprep.subr.bf16.mxu0 0
        %1856 = vmatpush1.bf16.msra.mxu0 %v1846
        %1857 = vmatprep.subr.bf16.mxu0 0
        %1858 = vmatpush1.bf16.msra.mxu0 %v1845
        %1859 = vmatprep.subr.bf16.mxu0 0
        %1860 = vmatpush1.bf16.msra.mxu0 %v1844
        %1861 = vmatprep.subr.bf16.mxu0 0
        %1862 = vmatpush1.bf16.msra.mxu0 %v1843
        %1863 = vmatprep.subr.bf16.mxu0 0
        %1864 = vmatpush1.bf16.msra.mxu0 %v1842
        %1865 = vmatprep.subr.bf16.mxu0 0
        %1866 = vmatpush1.bf16.msra.mxu0 %v1841
        %1867 = vmatprep.subr.bf16.mxu0 0
        %1868 = vmatpush1.bf16.msra.mxu0 %v1840
        %1869 = vmatprep.subr.bf16.mxu0 0
        %1870 = vmatpush1.bf16.msra.mxu0 %v1839
        %1871 = vmatprep.subr.bf16.mxu0 0
        %1872 = vmatpush2.bf16.msra.mxu0 0
        %1873 = vmatprep.subr.bf16.mxu0 0
        %1874 = vmatpush2.bf16.msra.mxu0 0
        %1875 = vmatprep.subr.bf16.mxu0 0
        %1876 = vmatpush2.bf16.msra.mxu0 0
        %1877 = vmatprep.subr.bf16.mxu0 0
        %1878 = vmatpush2.bf16.msra.mxu0 0
        %1879 = vmatprep.subr.bf16.mxu0 0
        %1880 = vmatpush2.bf16.msra.mxu0 0
        %1881 = vmatprep.subr.bf16.mxu0 0
        %1882 = vmatpush2.bf16.msra.mxu0 0
        %1883 = vmatprep.subr.bf16.mxu0 0
        %1884 = vmatpush2.bf16.msra.mxu0 0
        %1885 = vmatprep.subr.bf16.mxu0 0
        %1886 = vmatpush2.bf16.msra.mxu0 0
        %1887 = vmatprep.mubr.bf16.mxu0 0
        %1888 = vmatmul.mubr.bf16.gmra.mxu0 %v1785
        %v1889 = vpop.f32.mrf.mxu0
        %v1890 = vadd.f32 %v1806, %v1889
        %v1891 = vpop.f32.mrf.mxu0
        %v1892 = vpop.f32.mrf.mxu0
        %v1893 = vadd.f32 %v1806, %v1892
        %v1894 = vpop.f32.mrf.mxu0
        %1895 = vmatprep.mubr.bf16.mxu0 0
        %1896 = vmatmul.mubr.bf16.gmra.mxu0 %v1786
        %v1897 = vpop.f32.mrf.mxu0
        %v1898 = vadd.f32 %v1806, %v1897
        %v1899 = vpop.f32.mrf.mxu0
        %v1900 = vpop.f32.mrf.mxu0
        %v1901 = vadd.f32 %v1806, %v1900
        %v1902 = vpop.f32.mrf.mxu0
        %1903 = vdwg.mxu0
        %v1904 = vpack.c.bf16 %v1893, %v1890
        %v1905 = vpack.c.bf16 %v1901, %v1898
        %v1906 = vld [vmem:[#allocation6] sm:$0xf]
        %v1907 = vld [vmem:[#allocation6 + $0x4] sm:$0xf]
        %v1908 = vld [vmem:[#allocation6 + $0x8] sm:$0xf]
        %v1909 = vld [vmem:[#allocation6 + $0xc] sm:$0xf]
        %v1910 = vld [vmem:[#allocation6 + $0x10] sm:$0xf]
        %v1911 = vld [vmem:[#allocation6 + $0x14] sm:$0xf]
        %v1912 = vld [vmem:[#allocation6 + $0x18] sm:$0xf]
        %v1913 = vld [vmem:[#allocation6 + $0x1c] sm:$0xf]
        %v1914 = vld [vmem:[#allocation6 + $0x20] sm:$0xf]
        %v1915 = vld [vmem:[#allocation6 + $0x24] sm:$0xf]
        %v1916 = vld [vmem:[#allocation6 + $0x28] sm:$0xf]
        %v1917 = vld [vmem:[#allocation6 + $0x2c] sm:$0xf]
        %v1918 = vld [vmem:[#allocation6 + $0x30] sm:$0xf]
        %v1919 = vld [vmem:[#allocation6 + $0x34] sm:$0xf]
        %v1920 = vld [vmem:[#allocation6 + $0x38] sm:$0xf]
        %v1921 = vld [vmem:[#allocation6 + $0x3c] sm:$0xf]
        %v1922 = vld [vmem:[#allocation6 + $0x40] sm:$0xf]
        %v1923 = vld [vmem:[#allocation6 + $0x44] sm:$0xf]
        %v1924 = vld [vmem:[#allocation6 + $0x48] sm:$0xf]
        %v1925 = vld [vmem:[#allocation6 + $0x4c] sm:$0xf]
        %v1926 = vld [vmem:[#allocation6 + $0x50] sm:$0xf]
        %v1927 = vld [vmem:[#allocation6 + $0x54] sm:$0xf]
        %v1928 = vld [vmem:[#allocation6 + $0x58] sm:$0xf]
        %v1929 = vld [vmem:[#allocation6 + $0x5c] sm:$0xf]
        %v1930 = vld [vmem:[#allocation6 + $0x60] sm:$0xf]
        %v1931 = vld [vmem:[#allocation6 + $0x64] sm:$0xf]
        %v1932 = vld [vmem:[#allocation6 + $0x68] sm:$0xf]
        %v1933 = vld [vmem:[#allocation6 + $0x6c] sm:$0xf]
        %v1934 = vld [vmem:[#allocation6 + $0x70] sm:$0xf]
        %v1935 = vld [vmem:[#allocation6 + $0x74] sm:$0xf]
        %v1936 = vld [vmem:[#allocation6 + $0x78] sm:$0xf]
        %v1937 = vld [vmem:[#allocation6 + $0x7c] sm:$0xf]
        %s1938 = scalar_lea.vmem %s847, 64 [#allocation11]
        %v1939 = vld [vmem:[%s1938] sm:$0xf]
        %v1940 = vld [vmem:[%s1938 + $0x4] sm:$0xf]
        %v1941 = vld [vmem:[%s1938 + $0x8] sm:$0xf]
        %v1942 = vld [vmem:[%s1938 + $0xc] sm:$0xf]
        %v1943 = vld [vmem:[%s1938 + $0x10] sm:$0xf]
        %v1944 = vld [vmem:[%s1938 + $0x14] sm:$0xf]
        %v1945 = vld [vmem:[%s1938 + $0x18] sm:$0xf]
        %v1946 = vld [vmem:[%s1938 + $0x1c] sm:$0xf]
        %v1947 = vld [vmem:[%s1938 + $0x20] sm:$0xf]
        %v1948 = vld [vmem:[%s1938 + $0x24] sm:$0xf]
        %v1949 = vld [vmem:[%s1938 + $0x28] sm:$0xf]
        %v1950 = vld [vmem:[%s1938 + $0x2c] sm:$0xf]
        %v1951 = vld [vmem:[%s1938 + $0x30] sm:$0xf]
        %v1952 = vld [vmem:[%s1938 + $0x34] sm:$0xf]
        %v1953 = vld [vmem:[%s1938 + $0x38] sm:$0xf]
        %v1954 = vld [vmem:[%s1938 + $0x3c] sm:$0xf]
        %v1955 = vlaneseq
        %v1956 = vshrl.u32 %v1955, 7
        %v1957 = vsub.s32 1, %v1956
        %v1958 = vrot.slane %v1060, %v1957
        %v1991 = vunpack.c.l.b16 %v1906
        %v1992 = vunpack.c.l.b16 %v1907
        %v1993 = vunpack.c.l.b16 %v1908
        %v1994 = vunpack.c.l.b16 %v1909
        %v1995 = vunpack.c.l.b16 %v1910
        %v1996 = vunpack.c.l.b16 %v1911
        %v1997 = vunpack.c.l.b16 %v1912
        %v1998 = vunpack.c.l.b16 %v1913
        %v1999 = vunpack.c.l.b16 %v1914
        %v2000 = vunpack.c.l.b16 %v1915
        %v2001 = vunpack.c.l.b16 %v1916
        %v2002 = vunpack.c.l.b16 %v1917
        %v2003 = vunpack.c.l.b16 %v1918
        %v2004 = vunpack.c.l.b16 %v1919
        %v2005 = vunpack.c.l.b16 %v1920
        %v2006 = vunpack.c.l.b16 %v1921
        %v2007 = vunpack.c.l.b16 %v1922
        %v2008 = vunpack.c.l.b16 %v1923
        %v2009 = vunpack.c.l.b16 %v1924
        %v2010 = vunpack.c.l.b16 %v1925
        %v2011 = vunpack.c.l.b16 %v1926
        %v2012 = vunpack.c.l.b16 %v1927
        %v2013 = vunpack.c.l.b16 %v1928
        %v2014 = vunpack.c.l.b16 %v1929
        %v2015 = vunpack.c.l.b16 %v1930
        %v2016 = vunpack.c.l.b16 %v1931
        %v2017 = vunpack.c.l.b16 %v1932
        %v2018 = vunpack.c.l.b16 %v1933
        %v2019 = vunpack.c.l.b16 %v1934
        %v2020 = vunpack.c.l.b16 %v1935
        %v2021 = vunpack.c.l.b16 %v1936
        %v2022 = vunpack.c.l.b16 %v1937
        %v2023 = vpack.c.b16 %v1992, %v1991
        %v2024 = vpack.c.b16 %v1994, %v1993
        %v2025 = vpack.c.b16 %v1996, %v1995
        %v2026 = vpack.c.b16 %v1998, %v1997
        %v2027 = vpack.c.b16 %v2000, %v1999
        %v2028 = vpack.c.b16 %v2002, %v2001
        %v2029 = vpack.c.b16 %v2004, %v2003
        %v2030 = vpack.c.b16 %v2006, %v2005
        %v2031 = vpack.c.b16 %v2008, %v2007
        %v2032 = vpack.c.b16 %v2010, %v2009
        %v2033 = vpack.c.b16 %v2012, %v2011
        %v2034 = vpack.c.b16 %v2014, %v2013
        %v2035 = vpack.c.b16 %v2016, %v2015
        %v2036 = vpack.c.b16 %v2018, %v2017
        %v2037 = vpack.c.b16 %v2020, %v2019
        %v2038 = vpack.c.b16 %v2022, %v2021
        %v2071 = vunpack.c.l.b16 %v1939
        %v2072 = vunpack.c.l.b16 %v1940
        %v2073 = vunpack.c.l.b16 %v1941
        %v2074 = vunpack.c.l.b16 %v1942
        %v2075 = vunpack.c.l.b16 %v1943
        %v2076 = vunpack.c.l.b16 %v1944
        %v2077 = vunpack.c.l.b16 %v1945
        %v2078 = vunpack.c.l.b16 %v1946
        %v2079 = vunpack.c.l.b16 %v1947
        %v2080 = vunpack.c.l.b16 %v1948
        %v2081 = vunpack.c.l.b16 %v1949
        %v2082 = vunpack.c.l.b16 %v1950
        %v2083 = vunpack.c.l.b16 %v1951
        %v2084 = vunpack.c.l.b16 %v1952
        %v2085 = vunpack.c.l.b16 %v1953
        %v2086 = vunpack.c.l.b16 %v1954
        %v2087 = vpack.c.b16 %v2072, %v2071
        %v2088 = vpack.c.b16 %v2074, %v2073
        %v2089 = vpack.c.b16 %v2076, %v2075
        %v2090 = vpack.c.b16 %v2078, %v2077
        %v2091 = vpack.c.b16 %v2080, %v2079
        %v2092 = vpack.c.b16 %v2082, %v2081
        %v2093 = vpack.c.b16 %v2084, %v2083
        %v2094 = vpack.c.b16 %v2086, %v2085
        %2103 = vmatprep.subr.bf16.mxu0 0
        %2104 = vmatpush1.bf16.msra.mxu0 %v2094
        %2105 = vmatprep.subr.bf16.mxu0 0
        %2106 = vmatpush1.bf16.msra.mxu0 %v2093
        %2107 = vmatprep.subr.bf16.mxu0 0
        %2108 = vmatpush1.bf16.msra.mxu0 %v2092
        %2109 = vmatprep.subr.bf16.mxu0 0
        %2110 = vmatpush1.bf16.msra.mxu0 %v2091
        %2111 = vmatprep.subr.bf16.mxu0 0
        %2112 = vmatpush1.bf16.msra.mxu0 %v2090
        %2113 = vmatprep.subr.bf16.mxu0 0
        %2114 = vmatpush1.bf16.msra.mxu0 %v2089
        %2115 = vmatprep.subr.bf16.mxu0 0
        %2116 = vmatpush1.bf16.msra.mxu0 %v2088
        %2117 = vmatprep.subr.bf16.mxu0 0
        %2118 = vmatpush1.bf16.msra.mxu0 %v2087
        %2119 = vmatprep.subr.bf16.mxu0 0
        %2120 = vmatpush2.bf16.msra.mxu0 0
        %2121 = vmatprep.subr.bf16.mxu0 0
        %2122 = vmatpush2.bf16.msra.mxu0 0
        %2123 = vmatprep.subr.bf16.mxu0 0
        %2124 = vmatpush2.bf16.msra.mxu0 0
        %2125 = vmatprep.subr.bf16.mxu0 0
        %2126 = vmatpush2.bf16.msra.mxu0 0
        %2127 = vmatprep.subr.bf16.mxu0 0
        %2128 = vmatpush2.bf16.msra.mxu0 0
        %2129 = vmatprep.subr.bf16.mxu0 0
        %2130 = vmatpush2.bf16.msra.mxu0 0
        %2131 = vmatprep.subr.bf16.mxu0 0
        %2132 = vmatpush2.bf16.msra.mxu0 0
        %2133 = vmatprep.subr.bf16.mxu0 0
        %2134 = vmatpush2.bf16.msra.mxu0 0
        %2135 = vmatprep.mubr.bf16.mxu0 0
        %2136 = vmatmul.mubr.bf16.gmra.mxu0 %v2023
        %v2137 = vpop.f32.mrf.mxu0
        %v2138 = vadd.f32 %v1958, %v2137
        %v2139 = vpop.f32.mrf.mxu0
        %v2140 = vpop.f32.mrf.mxu0
        %v2141 = vadd.f32 %v1958, %v2140
        %v2142 = vpop.f32.mrf.mxu0
        %2143 = vmatprep.mubr.bf16.mxu0 0
        %2144 = vmatmul.mubr.bf16.gmra.mxu0 %v2024
        %v2145 = vpop.f32.mrf.mxu0
        %v2146 = vadd.f32 %v1958, %v2145
        %v2147 = vpop.f32.mrf.mxu0
        %v2148 = vpop.f32.mrf.mxu0
        %v2149 = vadd.f32 %v1958, %v2148
        %v2150 = vpop.f32.mrf.mxu0
        %2151 = vmatprep.mubr.bf16.mxu0 0
        %2152 = vmatmul.mubr.bf16.gmra.mxu0 %v2025
        %v2153 = vpop.f32.mrf.mxu0
        %v2154 = vadd.f32 %v1958, %v2153
        %v2155 = vpop.f32.mrf.mxu0
        %v2156 = vpop.f32.mrf.mxu0
        %v2157 = vadd.f32 %v1958, %v2156
        %v2158 = vpop.f32.mrf.mxu0
        %2159 = vmatprep.mubr.bf16.mxu0 0
        %2160 = vmatmul.mubr.bf16.gmra.mxu0 %v2026
        %v2161 = vpop.f32.mrf.mxu0
        %v2162 = vadd.f32 %v1958, %v2161
        %v2163 = vpop.f32.mrf.mxu0
        %v2164 = vpop.f32.mrf.mxu0
        %v2165 = vadd.f32 %v1958, %v2164
        %v2166 = vpop.f32.mrf.mxu0
        %2167 = vmatprep.mubr.bf16.mxu0 0
        %2168 = vmatmul.mubr.bf16.gmra.mxu0 %v2027
        %v2169 = vpop.f32.mrf.mxu0
        %v2170 = vadd.f32 %v1958, %v2169
        %v2171 = vpop.f32.mrf.mxu0
        %v2172 = vpop.f32.mrf.mxu0
        %v2173 = vadd.f32 %v1958, %v2172
        %v2174 = vpop.f32.mrf.mxu0
        %2175 = vmatprep.mubr.bf16.mxu0 0
        %2176 = vmatmul.mubr.bf16.gmra.mxu0 %v2028
        %v2177 = vpop.f32.mrf.mxu0
        %v2178 = vadd.f32 %v1958, %v2177
        %v2179 = vpop.f32.mrf.mxu0
        %v2180 = vpop.f32.mrf.mxu0
        %v2181 = vadd.f32 %v1958, %v2180
        %v2182 = vpop.f32.mrf.mxu0
        %2183 = vmatprep.mubr.bf16.mxu0 0
        %2184 = vmatmul.mubr.bf16.gmra.mxu0 %v2029
        %v2185 = vpop.f32.mrf.mxu0
        %v2186 = vadd.f32 %v1958, %v2185
        %v2187 = vpop.f32.mrf.mxu0
        %v2188 = vpop.f32.mrf.mxu0
        %v2189 = vadd.f32 %v1958, %v2188
        %v2190 = vpop.f32.mrf.mxu0
        %2191 = vmatprep.mubr.bf16.mxu0 0
        %2192 = vmatmul.mubr.bf16.gmra.mxu0 %v2030
        %v2193 = vpop.f32.mrf.mxu0
        %v2194 = vadd.f32 %v1958, %v2193
        %v2195 = vpop.f32.mrf.mxu0
        %v2196 = vpop.f32.mrf.mxu0
        %v2197 = vadd.f32 %v1958, %v2196
        %v2198 = vpop.f32.mrf.mxu0
        %2199 = vmatprep.mubr.bf16.mxu0 0
        %2200 = vmatmul.mubr.bf16.gmra.mxu0 %v2031
        %v2201 = vpop.f32.mrf.mxu0
        %v2202 = vadd.f32 %v1958, %v2201
        %v2203 = vpop.f32.mrf.mxu0
        %v2204 = vpop.f32.mrf.mxu0
        %v2205 = vadd.f32 %v1958, %v2204
        %v2206 = vpop.f32.mrf.mxu0
        %2207 = vmatprep.mubr.bf16.mxu0 0
        %2208 = vmatmul.mubr.bf16.gmra.mxu0 %v2032
        %v2209 = vpop.f32.mrf.mxu0
        %v2210 = vadd.f32 %v1958, %v2209
        %v2211 = vpop.f32.mrf.mxu0
        %v2212 = vpop.f32.mrf.mxu0
        %v2213 = vadd.f32 %v1958, %v2212
        %v2214 = vpop.f32.mrf.mxu0
        %2215 = vmatprep.mubr.bf16.mxu0 0
        %2216 = vmatmul.mubr.bf16.gmra.mxu0 %v2033
        %v2217 = vpop.f32.mrf.mxu0
        %v2218 = vadd.f32 %v1958, %v2217
        %v2219 = vpop.f32.mrf.mxu0
        %v2220 = vpop.f32.mrf.mxu0
        %v2221 = vadd.f32 %v1958, %v2220
        %v2222 = vpop.f32.mrf.mxu0
        %2223 = vmatprep.mubr.bf16.mxu0 0
        %2224 = vmatmul.mubr.bf16.gmra.mxu0 %v2034
        %v2225 = vpop.f32.mrf.mxu0
        %v2226 = vadd.f32 %v1958, %v2225
        %v2227 = vpop.f32.mrf.mxu0
        %v2228 = vpop.f32.mrf.mxu0
        %v2229 = vadd.f32 %v1958, %v2228
        %v2230 = vpop.f32.mrf.mxu0
        %2231 = vmatprep.mubr.bf16.mxu0 0
        %2232 = vmatmul.mubr.bf16.gmra.mxu0 %v2035
        %v2233 = vpop.f32.mrf.mxu0
        %v2234 = vadd.f32 %v1958, %v2233
        %v2235 = vpop.f32.mrf.mxu0
        %v2236 = vpop.f32.mrf.mxu0
        %v2237 = vadd.f32 %v1958, %v2236
        %v2238 = vpop.f32.mrf.mxu0
        %2239 = vmatprep.mubr.bf16.mxu0 0
        %2240 = vmatmul.mubr.bf16.gmra.mxu0 %v2036
        %v2241 = vpop.f32.mrf.mxu0
        %v2242 = vadd.f32 %v1958, %v2241
        %v2243 = vpop.f32.mrf.mxu0
        %v2244 = vpop.f32.mrf.mxu0
        %v2245 = vadd.f32 %v1958, %v2244
        %v2246 = vpop.f32.mrf.mxu0
        %2247 = vmatprep.mubr.bf16.mxu0 0
        %2248 = vmatmul.mubr.bf16.gmra.mxu0 %v2037
        %v2249 = vpop.f32.mrf.mxu0
        %v2250 = vadd.f32 %v1958, %v2249
        %v2251 = vpop.f32.mrf.mxu0
        %v2252 = vpop.f32.mrf.mxu0
        %v2253 = vadd.f32 %v1958, %v2252
        %v2254 = vpop.f32.mrf.mxu0
        %2255 = vmatprep.mubr.bf16.mxu0 0
        %2256 = vmatmul.mubr.bf16.gmra.mxu0 %v2038
        %v2257 = vpop.f32.mrf.mxu0
        %v2258 = vadd.f32 %v1958, %v2257
        %v2259 = vpop.f32.mrf.mxu0
        %v2260 = vpop.f32.mrf.mxu0
        %v2261 = vadd.f32 %v1958, %v2260
        %v2262 = vpop.f32.mrf.mxu0
        %2263 = vdwg.mxu0
        %v2264 = vpack.c.bf16 %v2141, %v2138
        %v2265 = vpack.c.bf16 %v2149, %v2146
        %v2266 = vpack.c.bf16 %v2157, %v2154
        %v2267 = vpack.c.bf16 %v2165, %v2162
        %v2268 = vpack.c.bf16 %v2173, %v2170
        %v2269 = vpack.c.bf16 %v2181, %v2178
        %v2270 = vpack.c.bf16 %v2189, %v2186
        %v2271 = vpack.c.bf16 %v2197, %v2194
        %v2272 = vpack.c.bf16 %v2205, %v2202
        %v2273 = vpack.c.bf16 %v2213, %v2210
        %v2274 = vpack.c.bf16 %v2221, %v2218
        %v2275 = vpack.c.bf16 %v2229, %v2226
        %v2276 = vpack.c.bf16 %v2237, %v2234
        %v2277 = vpack.c.bf16 %v2245, %v2242
        %v2278 = vpack.c.bf16 %v2253, %v2250
        %v2279 = vpack.c.bf16 %v2261, %v2258
        %v2280 = vld [vmem:[#allocation3] sm:$0xf]
        %v2281 = vld [vmem:[#allocation3 + $0x4] sm:$0xf]
        %v2282 = vld [vmem:[#allocation3 + $0x8] sm:$0xf]
        %v2283 = vld [vmem:[#allocation3 + $0xc] sm:$0xf]
        %v2284 = vld [vmem:[#allocation3 + $0x10] sm:$0xf]
        %v2285 = vld [vmem:[#allocation3 + $0x14] sm:$0xf]
        %v2286 = vld [vmem:[#allocation3 + $0x18] sm:$0xf]
        %v2287 = vld [vmem:[#allocation3 + $0x1c] sm:$0xf]
        %v2288 = vld [vmem:[#allocation3 + $0x20] sm:$0xf]
        %v2289 = vld [vmem:[#allocation3 + $0x24] sm:$0xf]
        %v2290 = vld [vmem:[#allocation3 + $0x28] sm:$0xf]
        %v2291 = vld [vmem:[#allocation3 + $0x2c] sm:$0xf]
        %v2292 = vld [vmem:[#allocation3 + $0x30] sm:$0xf]
        %v2293 = vld [vmem:[#allocation3 + $0x34] sm:$0xf]
        %v2294 = vld [vmem:[#allocation3 + $0x38] sm:$0xf]
        %v2295 = vld [vmem:[#allocation3 + $0x3c] sm:$0xf]
        %v2296 = vld [vmem:[#allocation3 + $0x40] sm:$0xf]
        %v2297 = vld [vmem:[#allocation3 + $0x44] sm:$0xf]
        %v2298 = vld [vmem:[#allocation3 + $0x48] sm:$0xf]
        %v2299 = vld [vmem:[#allocation3 + $0x4c] sm:$0xf]
        %v2300 = vld [vmem:[#allocation3 + $0x50] sm:$0xf]
        %v2301 = vld [vmem:[#allocation3 + $0x54] sm:$0xf]
        %v2302 = vld [vmem:[#allocation3 + $0x58] sm:$0xf]
        %v2303 = vld [vmem:[#allocation3 + $0x5c] sm:$0xf]
        %v2304 = vld [vmem:[#allocation3 + $0x60] sm:$0xf]
        %v2305 = vld [vmem:[#allocation3 + $0x64] sm:$0xf]
        %v2306 = vld [vmem:[#allocation3 + $0x68] sm:$0xf]
        %v2307 = vld [vmem:[#allocation3 + $0x6c] sm:$0xf]
        %v2308 = vld [vmem:[#allocation3 + $0x70] sm:$0xf]
        %v2309 = vld [vmem:[#allocation3 + $0x74] sm:$0xf]
        %v2310 = vld [vmem:[#allocation3 + $0x78] sm:$0xf]
        %v2311 = vld [vmem:[#allocation3 + $0x7c] sm:$0xf]
        %s2312 = scalar_lea.vmem %s847, 128 [#allocation11]
        %v2313 = vld [vmem:[%s2312] sm:$0xf]
        %v2314 = vld [vmem:[%s2312 + $0x4] sm:$0xf]
        %v2315 = vld [vmem:[%s2312 + $0x8] sm:$0xf]
        %v2316 = vld [vmem:[%s2312 + $0xc] sm:$0xf]
        %v2317 = vld [vmem:[%s2312 + $0x10] sm:$0xf]
        %v2318 = vld [vmem:[%s2312 + $0x14] sm:$0xf]
        %v2319 = vld [vmem:[%s2312 + $0x18] sm:$0xf]
        %v2320 = vld [vmem:[%s2312 + $0x1c] sm:$0xf]
        %v2321 = vld [vmem:[%s2312 + $0x20] sm:$0xf]
        %v2322 = vld [vmem:[%s2312 + $0x24] sm:$0xf]
        %v2323 = vld [vmem:[%s2312 + $0x28] sm:$0xf]
        %v2324 = vld [vmem:[%s2312 + $0x2c] sm:$0xf]
        %v2325 = vld [vmem:[%s2312 + $0x30] sm:$0xf]
        %v2326 = vld [vmem:[%s2312 + $0x34] sm:$0xf]
        %v2327 = vld [vmem:[%s2312 + $0x38] sm:$0xf]
        %v2328 = vld [vmem:[%s2312 + $0x3c] sm:$0xf]
        %v2329 = vlaneseq
        %v2330 = vshrl.u32 %v2329, 7
        %v2331 = vsub.s32 2, %v2330
        %v2332 = vrot.slane %v1060, %v2331
        %v2365 = vunpack.c.l.b16 %v2280
        %v2366 = vunpack.c.l.b16 %v2281
        %v2367 = vunpack.c.l.b16 %v2282
        %v2368 = vunpack.c.l.b16 %v2283
        %v2369 = vunpack.c.l.b16 %v2284
        %v2370 = vunpack.c.l.b16 %v2285
        %v2371 = vunpack.c.l.b16 %v2286
        %v2372 = vunpack.c.l.b16 %v2287
        %v2373 = vunpack.c.l.b16 %v2288
        %v2374 = vunpack.c.l.b16 %v2289
        %v2375 = vunpack.c.l.b16 %v2290
        %v2376 = vunpack.c.l.b16 %v2291
        %v2377 = vunpack.c.l.b16 %v2292
        %v2378 = vunpack.c.l.b16 %v2293
        %v2379 = vunpack.c.l.b16 %v2294
        %v2380 = vunpack.c.l.b16 %v2295
        %v2381 = vunpack.c.l.b16 %v2296
        %v2382 = vunpack.c.l.b16 %v2297
        %v2383 = vunpack.c.l.b16 %v2298
        %v2384 = vunpack.c.l.b16 %v2299
        %v2385 = vunpack.c.l.b16 %v2300
        %v2386 = vunpack.c.l.b16 %v2301
        %v2387 = vunpack.c.l.b16 %v2302
        %v2388 = vunpack.c.l.b16 %v2303
        %v2389 = vunpack.c.l.b16 %v2304
        %v2390 = vunpack.c.l.b16 %v2305
        %v2391 = vunpack.c.l.b16 %v2306
        %v2392 = vunpack.c.l.b16 %v2307
        %v2393 = vunpack.c.l.b16 %v2308
        %v2394 = vunpack.c.l.b16 %v2309
        %v2395 = vunpack.c.l.b16 %v2310
        %v2396 = vunpack.c.l.b16 %v2311
        %v2397 = vpack.c.b16 %v2366, %v2365
        %v2398 = vpack.c.b16 %v2368, %v2367
        %v2399 = vpack.c.b16 %v2370, %v2369
        %v2400 = vpack.c.b16 %v2372, %v2371
        %v2401 = vpack.c.b16 %v2374, %v2373
        %v2402 = vpack.c.b16 %v2376, %v2375
        %v2403 = vpack.c.b16 %v2378, %v2377
        %v2404 = vpack.c.b16 %v2380, %v2379
        %v2405 = vpack.c.b16 %v2382, %v2381
        %v2406 = vpack.c.b16 %v2384, %v2383
        %v2407 = vpack.c.b16 %v2386, %v2385
        %v2408 = vpack.c.b16 %v2388, %v2387
        %v2409 = vpack.c.b16 %v2390, %v2389
        %v2410 = vpack.c.b16 %v2392, %v2391
        %v2411 = vpack.c.b16 %v2394, %v2393
        %v2412 = vpack.c.b16 %v2396, %v2395
        %v2445 = vunpack.c.l.b16 %v2313
        %v2446 = vunpack.c.l.b16 %v2314
        %v2447 = vunpack.c.l.b16 %v2315
        %v2448 = vunpack.c.l.b16 %v2316
        %v2449 = vunpack.c.l.b16 %v2317
        %v2450 = vunpack.c.l.b16 %v2318
        %v2451 = vunpack.c.l.b16 %v2319
        %v2452 = vunpack.c.l.b16 %v2320
        %v2453 = vunpack.c.l.b16 %v2321
        %v2454 = vunpack.c.l.b16 %v2322
        %v2455 = vunpack.c.l.b16 %v2323
        %v2456 = vunpack.c.l.b16 %v2324
        %v2457 = vunpack.c.l.b16 %v2325
        %v2458 = vunpack.c.l.b16 %v2326
        %v2459 = vunpack.c.l.b16 %v2327
        %v2460 = vunpack.c.l.b16 %v2328
        %v2461 = vpack.c.b16 %v2446, %v2445
        %v2462 = vpack.c.b16 %v2448, %v2447
        %v2463 = vpack.c.b16 %v2450, %v2449
        %v2464 = vpack.c.b16 %v2452, %v2451
        %v2465 = vpack.c.b16 %v2454, %v2453
        %v2466 = vpack.c.b16 %v2456, %v2455
        %v2467 = vpack.c.b16 %v2458, %v2457
        %v2468 = vpack.c.b16 %v2460, %v2459
        %2477 = vmatprep.subr.bf16.mxu0 0
        %2478 = vmatpush1.bf16.msra.mxu0 %v2468
        %2479 = vmatprep.subr.bf16.mxu0 0
        %2480 = vmatpush1.bf16.msra.mxu0 %v2467
        %2481 = vmatprep.subr.bf16.mxu0 0
        %2482 = vmatpush1.bf16.msra.mxu0 %v2466
        %2483 = vmatprep.subr.bf16.mxu0 0
        %2484 = vmatpush1.bf16.msra.mxu0 %v2465
        %2485 = vmatprep.subr.bf16.mxu0 0
        %2486 = vmatpush1.bf16.msra.mxu0 %v2464
        %2487 = vmatprep.subr.bf16.mxu0 0
        %2488 = vmatpush1.bf16.msra.mxu0 %v2463
        %2489 = vmatprep.subr.bf16.mxu0 0
        %2490 = vmatpush1.bf16.msra.mxu0 %v2462
        %2491 = vmatprep.subr.bf16.mxu0 0
        %2492 = vmatpush1.bf16.msra.mxu0 %v2461
        %2493 = vmatprep.subr.bf16.mxu0 0
        %2494 = vmatpush2.bf16.msra.mxu0 0
        %2495 = vmatprep.subr.bf16.mxu0 0
        %2496 = vmatpush2.bf16.msra.mxu0 0
        %2497 = vmatprep.subr.bf16.mxu0 0
        %2498 = vmatpush2.bf16.msra.mxu0 0
        %2499 = vmatprep.subr.bf16.mxu0 0
        %2500 = vmatpush2.bf16.msra.mxu0 0
        %2501 = vmatprep.subr.bf16.mxu0 0
        %2502 = vmatpush2.bf16.msra.mxu0 0
        %2503 = vmatprep.subr.bf16.mxu0 0
        %2504 = vmatpush2.bf16.msra.mxu0 0
        %2505 = vmatprep.subr.bf16.mxu0 0
        %2506 = vmatpush2.bf16.msra.mxu0 0
        %2507 = vmatprep.subr.bf16.mxu0 0
        %2508 = vmatpush2.bf16.msra.mxu0 0
        %2509 = vmatprep.mubr.bf16.mxu0 0
        %2510 = vmatmul.mubr.bf16.gmra.mxu0 %v2397
        %v2511 = vpop.f32.mrf.mxu0
        %v2512 = vadd.f32 %v2332, %v2511
        %v2513 = vpop.f32.mrf.mxu0
        %v2514 = vpop.f32.mrf.mxu0
        %v2515 = vadd.f32 %v2332, %v2514
        %v2516 = vpop.f32.mrf.mxu0
        %2517 = vmatprep.mubr.bf16.mxu0 0
        %2518 = vmatmul.mubr.bf16.gmra.mxu0 %v2398
        %v2519 = vpop.f32.mrf.mxu0
        %v2520 = vadd.f32 %v2332, %v2519
        %v2521 = vpop.f32.mrf.mxu0
        %v2522 = vpop.f32.mrf.mxu0
        %v2523 = vadd.f32 %v2332, %v2522
        %v2524 = vpop.f32.mrf.mxu0
        %2525 = vmatprep.mubr.bf16.mxu0 0
        %2526 = vmatmul.mubr.bf16.gmra.mxu0 %v2399
        %v2527 = vpop.f32.mrf.mxu0
        %v2528 = vadd.f32 %v2332, %v2527
        %v2529 = vpop.f32.mrf.mxu0
        %v2530 = vpop.f32.mrf.mxu0
        %v2531 = vadd.f32 %v2332, %v2530
        %v2532 = vpop.f32.mrf.mxu0
        %2533 = vmatprep.mubr.bf16.mxu0 0
        %2534 = vmatmul.mubr.bf16.gmra.mxu0 %v2400
        %v2535 = vpop.f32.mrf.mxu0
        %v2536 = vadd.f32 %v2332, %v2535
        %v2537 = vpop.f32.mrf.mxu0
        %v2538 = vpop.f32.mrf.mxu0
        %v2539 = vadd.f32 %v2332, %v2538
        %v2540 = vpop.f32.mrf.mxu0
        %2541 = vmatprep.mubr.bf16.mxu0 0
        %2542 = vmatmul.mubr.bf16.gmra.mxu0 %v2401
        %v2543 = vpop.f32.mrf.mxu0
        %v2544 = vadd.f32 %v2332, %v2543
        %v2545 = vpop.f32.mrf.mxu0
        %v2546 = vpop.f32.mrf.mxu0
        %v2547 = vadd.f32 %v2332, %v2546
        %v2548 = vpop.f32.mrf.mxu0
        %2549 = vmatprep.mubr.bf16.mxu0 0
        %2550 = vmatmul.mubr.bf16.gmra.mxu0 %v2402
        %v2551 = vpop.f32.mrf.mxu0
        %v2552 = vadd.f32 %v2332, %v2551
        %v2553 = vpop.f32.mrf.mxu0
        %v2554 = vpop.f32.mrf.mxu0
        %v2555 = vadd.f32 %v2332, %v2554
        %v2556 = vpop.f32.mrf.mxu0
        %2557 = vmatprep.mubr.bf16.mxu0 0
        %2558 = vmatmul.mubr.bf16.gmra.mxu0 %v2403
        %v2559 = vpop.f32.mrf.mxu0
        %v2560 = vadd.f32 %v2332, %v2559
        %v2561 = vpop.f32.mrf.mxu0
        %v2562 = vpop.f32.mrf.mxu0
        %v2563 = vadd.f32 %v2332, %v2562
        %v2564 = vpop.f32.mrf.mxu0
        %2565 = vmatprep.mubr.bf16.mxu0 0
        %2566 = vmatmul.mubr.bf16.gmra.mxu0 %v2404
        %v2567 = vpop.f32.mrf.mxu0
        %v2568 = vadd.f32 %v2332, %v2567
        %v2569 = vpop.f32.mrf.mxu0
        %v2570 = vpop.f32.mrf.mxu0
        %v2571 = vadd.f32 %v2332, %v2570
        %v2572 = vpop.f32.mrf.mxu0
        %2573 = vmatprep.mubr.bf16.mxu0 0
        %2574 = vmatmul.mubr.bf16.gmra.mxu0 %v2405
        %v2575 = vpop.f32.mrf.mxu0
        %v2576 = vadd.f32 %v2332, %v2575
        %v2577 = vpop.f32.mrf.mxu0
        %v2578 = vpop.f32.mrf.mxu0
        %v2579 = vadd.f32 %v2332, %v2578
        %v2580 = vpop.f32.mrf.mxu0
        %2581 = vmatprep.mubr.bf16.mxu0 0
        %2582 = vmatmul.mubr.bf16.gmra.mxu0 %v2406
        %v2583 = vpop.f32.mrf.mxu0
        %v2584 = vadd.f32 %v2332, %v2583
        %v2585 = vpop.f32.mrf.mxu0
        %v2586 = vpop.f32.mrf.mxu0
        %v2587 = vadd.f32 %v2332, %v2586
        %v2588 = vpop.f32.mrf.mxu0
        %2589 = vmatprep.mubr.bf16.mxu0 0
        %2590 = vmatmul.mubr.bf16.gmra.mxu0 %v2407
        %v2591 = vpop.f32.mrf.mxu0
        %v2592 = vadd.f32 %v2332, %v2591
        %v2593 = vpop.f32.mrf.mxu0
        %v2594 = vpop.f32.mrf.mxu0
        %v2595 = vadd.f32 %v2332, %v2594
        %v2596 = vpop.f32.mrf.mxu0
        %2597 = vmatprep.mubr.bf16.mxu0 0
        %2598 = vmatmul.mubr.bf16.gmra.mxu0 %v2408
        %v2599 = vpop.f32.mrf.mxu0
        %v2600 = vadd.f32 %v2332, %v2599
        %v2601 = vpop.f32.mrf.mxu0
        %v2602 = vpop.f32.mrf.mxu0
        %v2603 = vadd.f32 %v2332, %v2602
        %v2604 = vpop.f32.mrf.mxu0
        %2605 = vmatprep.mubr.bf16.mxu0 0
        %2606 = vmatmul.mubr.bf16.gmra.mxu0 %v2409
        %v2607 = vpop.f32.mrf.mxu0
        %v2608 = vadd.f32 %v2332, %v2607
        %v2609 = vpop.f32.mrf.mxu0
        %v2610 = vpop.f32.mrf.mxu0
        %v2611 = vadd.f32 %v2332, %v2610
        %v2612 = vpop.f32.mrf.mxu0
        %2613 = vmatprep.mubr.bf16.mxu0 0
        %2614 = vmatmul.mubr.bf16.gmra.mxu0 %v2410
        %v2615 = vpop.f32.mrf.mxu0
        %v2616 = vadd.f32 %v2332, %v2615
        %v2617 = vpop.f32.mrf.mxu0
        %v2618 = vpop.f32.mrf.mxu0
        %v2619 = vadd.f32 %v2332, %v2618
        %v2620 = vpop.f32.mrf.mxu0
        %2621 = vmatprep.mubr.bf16.mxu0 0
        %2622 = vmatmul.mubr.bf16.gmra.mxu0 %v2411
        %v2623 = vpop.f32.mrf.mxu0
        %v2624 = vadd.f32 %v2332, %v2623
        %v2625 = vpop.f32.mrf.mxu0
        %v2626 = vpop.f32.mrf.mxu0
        %v2627 = vadd.f32 %v2332, %v2626
        %v2628 = vpop.f32.mrf.mxu0
        %2629 = vmatprep.mubr.bf16.mxu0 0
        %2630 = vmatmul.mubr.bf16.gmra.mxu0 %v2412
        %v2631 = vpop.f32.mrf.mxu0
        %v2632 = vadd.f32 %v2332, %v2631
        %v2633 = vpop.f32.mrf.mxu0
        %v2634 = vpop.f32.mrf.mxu0
        %v2635 = vadd.f32 %v2332, %v2634
        %v2636 = vpop.f32.mrf.mxu0
        %2637 = vdwg.mxu0
        %v2638 = vpack.c.bf16 %v2515, %v2512
        %v2639 = vpack.c.bf16 %v2523, %v2520
        %v2640 = vpack.c.bf16 %v2531, %v2528
        %v2641 = vpack.c.bf16 %v2539, %v2536
        %v2642 = vpack.c.bf16 %v2547, %v2544
        %v2643 = vpack.c.bf16 %v2555, %v2552
        %v2644 = vpack.c.bf16 %v2563, %v2560
        %v2645 = vpack.c.bf16 %v2571, %v2568
        %v2646 = vpack.c.bf16 %v2579, %v2576
        %v2647 = vpack.c.bf16 %v2587, %v2584
        %v2648 = vpack.c.bf16 %v2595, %v2592
        %v2649 = vpack.c.bf16 %v2603, %v2600
        %v2650 = vpack.c.bf16 %v2611, %v2608
        %v2651 = vpack.c.bf16 %v2619, %v2616
        %v2652 = vpack.c.bf16 %v2627, %v2624
        %v2653 = vpack.c.bf16 %v2635, %v2632
        %2654 = vmatprep.subr.bf16.mxu0 0
        %2655 = vmatpush1.bf16.xpose.msra.mxu0 %v2271
        %2656 = vmatprep.subr.bf16.mxu0 0
        %2657 = vmatpush1.bf16.xpose.msra.mxu0 %v2270
        %2658 = vmatprep.subr.bf16.mxu0 0
        %2659 = vmatpush1.bf16.xpose.msra.mxu0 %v2269
        %2660 = vmatprep.subr.bf16.mxu0 0
        %2661 = vmatpush1.bf16.xpose.msra.mxu0 %v2268
        %2662 = vmatprep.subr.bf16.mxu0 0
        %2663 = vmatpush1.bf16.xpose.msra.mxu0 %v2267
        %2664 = vmatprep.subr.bf16.mxu0 0
        %2665 = vmatpush1.bf16.xpose.msra.mxu0 %v2266
        %2666 = vmatprep.subr.bf16.mxu0 0
        %2667 = vmatpush1.bf16.xpose.msra.mxu0 %v2265
        %2668 = vmatprep.subr.bf16.mxu0 0
        %2669 = vmatpush1.bf16.xpose.msra.mxu0 %v2264
        %2670 = vmatprep.subr.bf16.mxu0 0
        %2671 = vmatpush2.bf16.xpose.msra.mxu0 0
        %2672 = vmatprep.subr.bf16.mxu0 0
        %2673 = vmatpush2.bf16.xpose.msra.mxu0 0
        %2674 = vmatprep.subr.bf16.mxu0 0
        %2675 = vmatpush2.bf16.xpose.msra.mxu0 0
        %2676 = vmatprep.subr.bf16.mxu0 0
        %2677 = vmatpush2.bf16.xpose.msra.mxu0 0
        %2678 = vmatprep.subr.bf16.mxu0 0
        %2679 = vmatpush2.bf16.xpose.msra.mxu0 0
        %2680 = vmatprep.subr.bf16.mxu0 0
        %2681 = vmatpush2.bf16.xpose.msra.mxu0 0
        %2682 = vmatprep.subr.bf16.mxu0 0
        %2683 = vmatpush2.bf16.xpose.msra.mxu0 0
        %2684 = vmatprep.subr.bf16.mxu0 0
        %2685 = vmatpush2.bf16.xpose.msra.mxu0 0
        %2686 = vmatprep.mubr.bf16.mxu0 0
        %2687 = vmatmul.mubr.bf16.gmra.mxu0 %v1904
        %v2688 = vpop.f32.mrf.mxu0
        %v2689 = vadd.f32 0.0, %v2688
        %v2690 = vpop.f32.mrf.mxu0
        %v2691 = vpop.f32.mrf.mxu0
        %v2692 = vadd.f32 0.0, %v2691
        %v2693 = vpop.f32.mrf.mxu0
        %2694 = vdwg.mxu0
        %2695 = vmatprep.subr.bf16.mxu0 0
        %2696 = vmatpush1.bf16.xpose.msra.mxu0 %v2279
        %2697 = vmatprep.subr.bf16.mxu0 0
        %2698 = vmatpush1.bf16.xpose.msra.mxu0 %v2278
        %2699 = vmatprep.subr.bf16.mxu0 0
        %2700 = vmatpush1.bf16.xpose.msra.mxu0 %v2277
        %2701 = vmatprep.subr.bf16.mxu0 0
        %2702 = vmatpush1.bf16.xpose.msra.mxu0 %v2276
        %2703 = vmatprep.subr.bf16.mxu0 0
        %2704 = vmatpush1.bf16.xpose.msra.mxu0 %v2275
        %2705 = vmatprep.subr.bf16.mxu0 0
        %2706 = vmatpush1.bf16.xpose.msra.mxu0 %v2274
        %2707 = vmatprep.subr.bf16.mxu0 0
        %2708 = vmatpush1.bf16.xpose.msra.mxu0 %v2273
        %2709 = vmatprep.subr.bf16.mxu0 0
        %2710 = vmatpush1.bf16.xpose.msra.mxu0 %v2272
        %2711 = vmatprep.subr.bf16.mxu0 0
        %2712 = vmatpush2.bf16.xpose.msra.mxu0 0
        %2713 = vmatprep.subr.bf16.mxu0 0
        %2714 = vmatpush2.bf16.xpose.msra.mxu0 0
        %2715 = vmatprep.subr.bf16.mxu0 0
        %2716 = vmatpush2.bf16.xpose.msra.mxu0 0
        %2717 = vmatprep.subr.bf16.mxu0 0
        %2718 = vmatpush2.bf16.xpose.msra.mxu0 0
        %2719 = vmatprep.subr.bf16.mxu0 0
        %2720 = vmatpush2.bf16.xpose.msra.mxu0 0
        %2721 = vmatprep.subr.bf16.mxu0 0
        %2722 = vmatpush2.bf16.xpose.msra.mxu0 0
        %2723 = vmatprep.subr.bf16.mxu0 0
        %2724 = vmatpush2.bf16.xpose.msra.mxu0 0
        %2725 = vmatprep.subr.bf16.mxu0 0
        %2726 = vmatpush2.bf16.xpose.msra.mxu0 0
        %2727 = vmatprep.mubr.bf16.mxu0 0
        %2728 = vmatmul.mubr.bf16.gmra.mxu0 %v1905
        %v2729 = vpop.f32.mrf.mxu0
        %v2730 = vadd.f32 0.0, %v2729
        %v2731 = vpop.f32.mrf.mxu0
        %v2732 = vpop.f32.mrf.mxu0
        %v2733 = vadd.f32 0.0, %v2732
        %v2734 = vpop.f32.mrf.mxu0
        %2735 = vdwg.mxu0
        %v2736 = vmul.f32 %v2689, 0.17677669
        %v2737 = vmul.f32 %v2692, 0.17677669
        %v2738 = vmul.f32 %v2730, 0.17677669
        %v2739 = vmul.f32 %v2733, 0.17677669
        %v2740 = vsel %vm1052, 1, 0
        %vm2741 = vcmp.eq.s32.totalorder %v2740, 1
        %v2742 = vsel %vm2741, %v2736, -1e+30
        %v2743 = vsel %vm2741, %v2737, -1e+30
        %v2744 = vsel %vm2741, %v2738, -1e+30
        %v2745 = vsel %vm2741, %v2739, -1e+30
        %2746 = vmax.xlane.f32.xlu0 %v2742
        %v2747 = vpop.xlane.xlu0 %2746
        %2748 = vmax.xlane.f32.xlu0 %v2743
        %v2749 = vpop.xlane.xlu0 %2748
        %2750 = vmax.xlane.f32.xlu0 %v2744
        %v2751 = vpop.xlane.xlu0 %2750
        %2752 = vmax.xlane.f32.xlu0 %v2745
        %v2753 = vpop.xlane.xlu0 %2752
        %v2754 = vsub.f32 %v2742, %v2747
        %v2755 = vsub.f32 %v2743, %v2749
        %v2756 = vsub.f32 %v2744, %v2751
        %v2757 = vsub.f32 %v2745, %v2753
        %v2758 = vmul.f32 %v2754, 1.442695
        %v2759 = vpow.pop %v2758
        %v2760 = vmul.f32 %v2755, 1.442695
        %v2761 = vpow.pop %v2760
        %v2762 = vmul.f32 %v2756, 1.442695
        %v2763 = vpow.pop %v2762
        %v2764 = vmul.f32 %v2757, 1.442695
        %v2765 = vpow.pop %v2764
        %2766 = vadd.xlane.f32.xlu0 %v2759
        %v2767 = vpop.xlane.xlu0 %2766
        %2768 = vadd.xlane.f32.xlu0 %v2761
        %v2769 = vpop.xlane.xlu0 %2768
        %2770 = vadd.xlane.f32.xlu0 %v2763
        %v2771 = vpop.xlane.xlu0 %2770
        %2772 = vadd.xlane.f32.xlu0 %v2765
        %v2773 = vpop.xlane.xlu0 %2772
        %v2774 = vrcp.pop %v2767
        %v2775 = vrcp.pop %v2769
        %v2776 = vrcp.pop %v2771
        %v2777 = vrcp.pop %v2773
        %v2778 = vmul.f32 %v2759, %v2774
        %v2779 = vmul.f32 %v2761, %v2775
        %v2780 = vmul.f32 %v2763, %v2776
        %v2781 = vmul.f32 %v2765, %v2777
        %v2782 = vpack.c.bf16 %v2779, %v2778
        %v2783 = vpack.c.bf16 %v2781, %v2780
        %2784 = vmatprep.subr.bf16.mxu0 0
        %2785 = vmatpush1.bf16.msra.mxu0 %v2645
        %2786 = vmatprep.subr.bf16.mxu0 0
        %2787 = vmatpush1.bf16.msra.mxu0 %v2644
        %2788 = vmatprep.subr.bf16.mxu0 0
        %2789 = vmatpush1.bf16.msra.mxu0 %v2643
        %2790 = vmatprep.subr.bf16.mxu0 0
        %2791 = vmatpush1.bf16.msra.mxu0 %v2642
        %2792 = vmatprep.subr.bf16.mxu0 0
        %2793 = vmatpush1.bf16.msra.mxu0 %v2641
        %2794 = vmatprep.subr.bf16.mxu0 0
        %2795 = vmatpush1.bf16.msra.mxu0 %v2640
        %2796 = vmatprep.subr.bf16.mxu0 0
        %2797 = vmatpush1.bf16.msra.mxu0 %v2639
        %2798 = vmatprep.subr.bf16.mxu0 0
        %2799 = vmatpush1.bf16.msra.mxu0 %v2638
        %2800 = vmatprep.subr.bf16.mxu0 0
        %2801 = vmatpush2.bf16.msra.mxu0 0
        %2802 = vmatprep.subr.bf16.mxu0 0
        %2803 = vmatpush2.bf16.msra.mxu0 0
        %2804 = vmatprep.subr.bf16.mxu0 0
        %2805 = vmatpush2.bf16.msra.mxu0 0
        %2806 = vmatprep.subr.bf16.mxu0 0
        %2807 = vmatpush2.bf16.msra.mxu0 0
        %2808 = vmatprep.subr.bf16.mxu0 0
        %2809 = vmatpush2.bf16.msra.mxu0 0
        %2810 = vmatprep.subr.bf16.mxu0 0
        %2811 = vmatpush2.bf16.msra.mxu0 0
        %2812 = vmatprep.subr.bf16.mxu0 0
        %2813 = vmatpush2.bf16.msra.mxu0 0
        %2814 = vmatprep.subr.bf16.mxu0 0
        %2815 = vmatpush2.bf16.msra.mxu0 0
        %2816 = vmatprep.mubr.bf16.mxu0 0
        %2817 = vmatmul.mubr.bf16.gmra.mxu0 %v2782
        %v2818 = vpop.f32.mrf.mxu0
        %v2819 = vadd.f32 0.0, %v2818
        %v2820 = vpop.f32.mrf.mxu0
        %v2821 = vpop.f32.mrf.mxu0
        %v2822 = vadd.f32 0.0, %v2821
        %v2823 = vpop.f32.mrf.mxu0
        %2824 = vdwg.mxu0
        %2825 = vmatprep.subr.bf16.mxu0 0
        %2826 = vmatpush1.bf16.msra.mxu0 %v2653
        %2827 = vmatprep.subr.bf16.mxu0 0
        %2828 = vmatpush1.bf16.msra.mxu0 %v2652
        %2829 = vmatprep.subr.bf16.mxu0 0
        %2830 = vmatpush1.bf16.msra.mxu0 %v2651
        %2831 = vmatprep.subr.bf16.mxu0 0
        %2832 = vmatpush1.bf16.msra.mxu0 %v2650
        %2833 = vmatprep.subr.bf16.mxu0 0
        %2834 = vmatpush1.bf16.msra.mxu0 %v2649
        %2835 = vmatprep.subr.bf16.mxu0 0
        %2836 = vmatpush1.bf16.msra.mxu0 %v2648
        %2837 = vmatprep.subr.bf16.mxu0 0
        %2838 = vmatpush1.bf16.msra.mxu0 %v2647
        %2839 = vmatprep.subr.bf16.mxu0 0
        %2840 = vmatpush1.bf16.msra.mxu0 %v2646
        %2841 = vmatprep.subr.bf16.mxu0 0
        %2842 = vmatpush2.bf16.msra.mxu0 0
        %2843 = vmatprep.subr.bf16.mxu0 0
        %2844 = vmatpush2.bf16.msra.mxu0 0
        %2845 = vmatprep.subr.bf16.mxu0 0
        %2846 = vmatpush2.bf16.msra.mxu0 0
        %2847 = vmatprep.subr.bf16.mxu0 0
        %2848 = vmatpush2.bf16.msra.mxu0 0
        %2849 = vmatprep.subr.bf16.mxu0 0
        %2850 = vmatpush2.bf16.msra.mxu0 0
        %2851 = vmatprep.subr.bf16.mxu0 0
        %2852 = vmatpush2.bf16.msra.mxu0 0
        %2853 = vmatprep.subr.bf16.mxu0 0
        %2854 = vmatpush2.bf16.msra.mxu0 0
        %2855 = vmatprep.subr.bf16.mxu0 0
        %2856 = vmatpush2.bf16.msra.mxu0 0
        %2857 = vmatprep.mubr.bf16.mxu0 0
        %2858 = vmatmul.mubr.bf16.gmra.mxu0 %v2783
        %v2859 = vpop.f32.mrf.mxu0
        %v2860 = vadd.f32 0.0, %v2859
        %v2861 = vpop.f32.mrf.mxu0
        %v2862 = vpop.f32.mrf.mxu0
        %v2863 = vadd.f32 0.0, %v2862
        %v2864 = vpop.f32.mrf.mxu0
        %2865 = vdwg.mxu0
        %v2866 = vpack.c.bf16 %v2822, %v2819
        %v2867 = vpack.c.bf16 %v2863, %v2860
        %s2868 = scalar_lea.vmem %s847, 192 [#allocation11]
        %v2869 = vld [vmem:[%s2868] sm:$0xf]
        %v2870 = vld [vmem:[%s2868 + $0x4] sm:$0xf]
        %v2871 = vld [vmem:[%s2868 + $0x8] sm:$0xf]
        %v2872 = vld [vmem:[%s2868 + $0xc] sm:$0xf]
        %v2873 = vld [vmem:[%s2868 + $0x10] sm:$0xf]
        %v2874 = vld [vmem:[%s2868 + $0x14] sm:$0xf]
        %v2875 = vld [vmem:[%s2868 + $0x18] sm:$0xf]
        %v2876 = vld [vmem:[%s2868 + $0x1c] sm:$0xf]
        %v2877 = vld [vmem:[%s2868 + $0x20] sm:$0xf]
        %v2878 = vld [vmem:[%s2868 + $0x24] sm:$0xf]
        %v2879 = vld [vmem:[%s2868 + $0x28] sm:$0xf]
        %v2880 = vld [vmem:[%s2868 + $0x2c] sm:$0xf]
        %v2881 = vld [vmem:[%s2868 + $0x30] sm:$0xf]
        %v2882 = vld [vmem:[%s2868 + $0x34] sm:$0xf]
        %v2883 = vld [vmem:[%s2868 + $0x38] sm:$0xf]
        %v2884 = vld [vmem:[%s2868 + $0x3c] sm:$0xf]
        %v2885 = vlaneseq
        %v2886 = vshrl.u32 %v2885, 7
        %v2887 = vsub.s32 3, %v2886
        %v2888 = vrot.slane %v1060, %v2887
        %v2905 = vunpack.c.l.b16 %v2869
        %v2906 = vunpack.c.l.b16 %v2870
        %v2907 = vunpack.c.l.b16 %v2871
        %v2908 = vunpack.c.l.b16 %v2872
        %v2909 = vunpack.c.l.b16 %v2873
        %v2910 = vunpack.c.l.b16 %v2874
        %v2911 = vunpack.c.l.b16 %v2875
        %v2912 = vunpack.c.l.b16 %v2876
        %v2913 = vunpack.c.l.b16 %v2877
        %v2914 = vunpack.c.l.b16 %v2878
        %v2915 = vunpack.c.l.b16 %v2879
        %v2916 = vunpack.c.l.b16 %v2880
        %v2917 = vunpack.c.l.b16 %v2881
        %v2918 = vunpack.c.l.b16 %v2882
        %v2919 = vunpack.c.l.b16 %v2883
        %v2920 = vunpack.c.l.b16 %v2884
        %v2921 = vpack.c.b16 %v2906, %v2905
        %v2922 = vpack.c.b16 %v2908, %v2907
        %v2923 = vpack.c.b16 %v2910, %v2909
        %v2924 = vpack.c.b16 %v2912, %v2911
        %v2925 = vpack.c.b16 %v2914, %v2913
        %v2926 = vpack.c.b16 %v2916, %v2915
        %v2927 = vpack.c.b16 %v2918, %v2917
        %v2928 = vpack.c.b16 %v2920, %v2919
        %2937 = vmatprep.subr.bf16.mxu0 0
        %2938 = vmatpush1.bf16.msra.mxu0 %v2928
        %2939 = vmatprep.subr.bf16.mxu0 0
        %2940 = vmatpush1.bf16.msra.mxu0 %v2927
        %2941 = vmatprep.subr.bf16.mxu0 0
        %2942 = vmatpush1.bf16.msra.mxu0 %v2926
        %2943 = vmatprep.subr.bf16.mxu0 0
        %2944 = vmatpush1.bf16.msra.mxu0 %v2925
        %2945 = vmatprep.subr.bf16.mxu0 0
        %2946 = vmatpush1.bf16.msra.mxu0 %v2924
        %2947 = vmatprep.subr.bf16.mxu0 0
        %2948 = vmatpush1.bf16.msra.mxu0 %v2923
        %2949 = vmatprep.subr.bf16.mxu0 0
        %2950 = vmatpush1.bf16.msra.mxu0 %v2922
        %2951 = vmatprep.subr.bf16.mxu0 0
        %2952 = vmatpush1.bf16.msra.mxu0 %v2921
        %2953 = vmatprep.subr.bf16.mxu0 0
        %2954 = vmatpush2.bf16.msra.mxu0 0
        %2955 = vmatprep.subr.bf16.mxu0 0
        %2956 = vmatpush2.bf16.msra.mxu0 0
        %2957 = vmatprep.subr.bf16.mxu0 0
        %2958 = vmatpush2.bf16.msra.mxu0 0
        %2959 = vmatprep.subr.bf16.mxu0 0
        %2960 = vmatpush2.bf16.msra.mxu0 0
        %2961 = vmatprep.subr.bf16.mxu0 0
        %2962 = vmatpush2.bf16.msra.mxu0 0
        %2963 = vmatprep.subr.bf16.mxu0 0
        %2964 = vmatpush2.bf16.msra.mxu0 0
        %2965 = vmatprep.subr.bf16.mxu0 0
        %2966 = vmatpush2.bf16.msra.mxu0 0
        %2967 = vmatprep.subr.bf16.mxu0 0
        %2968 = vmatpush2.bf16.msra.mxu0 0
        %2969 = vmatprep.mubr.bf16.mxu0 0
        %2970 = vmatmul.mubr.bf16.gmra.mxu0 %v2866
        %v2971 = vpop.f32.mrf.mxu0
        %v2972 = vadd.f32 %v2888, %v2971
        %v2973 = vpop.f32.mrf.mxu0
        %v2974 = vpop.f32.mrf.mxu0
        %v2975 = vadd.f32 %v2888, %v2974
        %v2976 = vpop.f32.mrf.mxu0
        %2977 = vmatprep.mubr.bf16.mxu0 0
        %2978 = vmatmul.mubr.bf16.gmra.mxu0 %v2867
        %v2979 = vpop.f32.mrf.mxu0
        %v2980 = vadd.f32 %v2888, %v2979
        %v2981 = vpop.f32.mrf.mxu0
        %v2982 = vpop.f32.mrf.mxu0
        %v2983 = vadd.f32 %v2888, %v2982
        %v2984 = vpop.f32.mrf.mxu0
        %2985 = vdwg.mxu0
        %v2986 = vadd.f32 %v1779, %v2972
        %v2987 = vadd.f32 %v1780, %v2975
        %v2988 = vadd.f32 %v1781, %v2980
        %v2989 = vadd.f32 %v1782, %v2983
        %2990 = vadd.xlane.f32.xlu0 %v2986
        %v2991 = vpop.xlane.xlu0 %2990
        %2992 = vadd.xlane.f32.xlu0 %v2987
        %v2993 = vpop.xlane.xlu0 %2992
        %2994 = vadd.xlane.f32.xlu0 %v2988
        %v2995 = vpop.xlane.xlu0 %2994
        %2996 = vadd.xlane.f32.xlu0 %v2989
        %v2997 = vpop.xlane.xlu0 %2996
        %v2998 = vmul.f32 %v2991, 0.03125
        %v2999 = vmul.f32 %v2993, 0.03125
        %v3000 = vmul.f32 %v2995, 0.03125
        %v3001 = vmul.f32 %v2997, 0.03125
        %v3002 = vsub.f32 %v2986, %v2998
        %v3003 = vsub.f32 %v2987, %v2999
        %v3004 = vsub.f32 %v2988, %v3000
        %v3005 = vsub.f32 %v2989, %v3001
        %v3006 = vmul.f32 %v3002, %v3002
        %v3007 = vmul.f32 %v3003, %v3003
        %v3008 = vmul.f32 %v3004, %v3004
        %v3009 = vmul.f32 %v3005, %v3005
        %v3010 = vmul.f32 %v3006, %v1050
        %v3011 = vmul.f32 %v3007, %v1050
        %v3012 = vmul.f32 %v3008, %v1050
        %v3013 = vmul.f32 %v3009, %v1050
        %3014 = vadd.xlane.f32.xlu0 %v3010
        %v3015 = vpop.xlane.xlu0 %3014
        %3016 = vadd.xlane.f32.xlu0 %v3011
        %v3017 = vpop.xlane.xlu0 %3016
        %3018 = vadd.xlane.f32.xlu0 %v3012
        %v3019 = vpop.xlane.xlu0 %3018
        %3020 = vadd.xlane.f32.xlu0 %v3013
        %v3021 = vpop.xlane.xlu0 %3020
        %v3022 = vmul.f32 %v3015, 0.03125
        %v3023 = vmul.f32 %v3017, 0.03125
        %v3024 = vmul.f32 %v3019, 0.03125
        %v3025 = vmul.f32 %v3021, 0.03125
        %v3026 = vadd.f32 %v3022, 1e-05
        %v3027 = vadd.f32 %v3023, 1e-05
        %v3028 = vadd.f32 %v3024, 1e-05
        %v3029 = vadd.f32 %v3025, 1e-05
        %v3030 = vrsqrt.pop %v3026
        %v3031 = vrsqrt.pop %v3027
        %v3032 = vrsqrt.pop %v3028
        %v3033 = vrsqrt.pop %v3029
        %v3034 = vmul.f32 %v3002, %v3030
        %v3035 = vmul.f32 %v3003, %v3031
        %v3036 = vmul.f32 %v3004, %v3032
        %v3037 = vmul.f32 %v3005, %v3033
        %v3038 = vlaneseq
        %v3039 = vshrl.u32 %v3038, 7
        %v3040 = vsub.s32 1, %v3039
        %v3041 = vrot.slane %v1057, %v3040
        %v3042 = vmul.f32 %v3034, %v3041
        %v3043 = vmul.f32 %v3035, %v3041
        %v3044 = vmul.f32 %v3036, %v3041
        %v3045 = vmul.f32 %v3037, %v3041
        %v3046 = vlaneseq
        %v3047 = vshrl.u32 %v3046, 7
        %v3048 = vsub.s32 1, %v3047
        %v3049 = vrot.slane %v1058, %v3048
        %v3050 = vadd.f32 %v3042, %v3049
        %v3051 = vadd.f32 %v3043, %v3049
        %v3052 = vadd.f32 %v3044, %v3049
        %v3053 = vadd.f32 %v3045, %v3049
        %v3054 = vpack.c.bf16 %v3051, %v3050
        %v3055 = vpack.c.bf16 %v3053, %v3052
        %v3056 = vld [vmem:[%s865] sm:$0xf]
        %v3057 = vld [vmem:[%s865 + $0x4] sm:$0xf]
        %v3058 = vld [vmem:[%s865 + $0x8] sm:$0xf]
        %v3059 = vld [vmem:[%s865 + $0xc] sm:$0xf]
        %v3060 = vld [vmem:[%s865 + $0x10] sm:$0xf]
        %v3061 = vld [vmem:[%s865 + $0x14] sm:$0xf]
        %v3062 = vld [vmem:[%s865 + $0x18] sm:$0xf]
        %v3063 = vld [vmem:[%s865 + $0x1c] sm:$0xf]
        %v3064 = vld [vmem:[%s865 + $0x20] sm:$0xf]
        %v3065 = vld [vmem:[%s865 + $0x24] sm:$0xf]
        %v3066 = vld [vmem:[%s865 + $0x28] sm:$0xf]
        %v3067 = vld [vmem:[%s865 + $0x2c] sm:$0xf]
        %v3068 = vld [vmem:[%s865 + $0x30] sm:$0xf]
        %v3069 = vld [vmem:[%s865 + $0x34] sm:$0xf]
        %v3070 = vld [vmem:[%s865 + $0x38] sm:$0xf]
        %v3071 = vld [vmem:[%s865 + $0x3c] sm:$0xf]
        %v3072 = vld [vmem:[%s873] sm:$0x1]
        %v3074 = vlaneseq
        %v3075 = vshrl.u32 %v3074, 7
        %v3076 = vsub.s32 0, %v3075
        %v3077 = vrot.slane %v3072, %v3076
        %v3095 = vunpack.c.l.b16 %v3056
        %v3096 = vunpack.c.l.b16 %v3057
        %v3097 = vunpack.c.l.b16 %v3058
        %v3098 = vunpack.c.l.b16 %v3059
        %v3099 = vunpack.c.l.b16 %v3060
        %v3100 = vunpack.c.l.b16 %v3061
        %v3101 = vunpack.c.l.b16 %v3062
        %v3102 = vunpack.c.l.b16 %v3063
        %v3103 = vunpack.c.l.b16 %v3064
        %v3104 = vunpack.c.l.b16 %v3065
        %v3105 = vunpack.c.l.b16 %v3066
        %v3106 = vunpack.c.l.b16 %v3067
        %v3107 = vunpack.c.l.b16 %v3068
        %v3108 = vunpack.c.l.b16 %v3069
        %v3109 = vunpack.c.l.b16 %v3070
        %v3110 = vunpack.c.l.b16 %v3071
        %v3111 = vpack.c.b16 %v3096, %v3095
        %v3112 = vpack.c.b16 %v3098, %v3097
        %v3113 = vpack.c.b16 %v3100, %v3099
        %v3114 = vpack.c.b16 %v3102, %v3101
        %v3115 = vpack.c.b16 %v3104, %v3103
        %v3116 = vpack.c.b16 %v3106, %v3105
        %v3117 = vpack.c.b16 %v3108, %v3107
        %v3118 = vpack.c.b16 %v3110, %v3109
        %3127 = vmatprep.subr.bf16.mxu0 0
        %3128 = vmatpush1.bf16.msra.mxu0 %v3118
        %3129 = vmatprep.subr.bf16.mxu0 0
        %3130 = vmatpush1.bf16.msra.mxu0 %v3117
        %3131 = vmatprep.subr.bf16.mxu0 0
        %3132 = vmatpush1.bf16.msra.mxu0 %v3116
        %3133 = vmatprep.subr.bf16.mxu0 0
        %3134 = vmatpush1.bf16.msra.mxu0 %v3115
        %3135 = vmatprep.subr.bf16.mxu0 0
        %3136 = vmatpush1.bf16.msra.mxu0 %v3114
        %3137 = vmatprep.subr.bf16.mxu0 0
        %3138 = vmatpush1.bf16.msra.mxu0 %v3113
        %3139 = vmatprep.subr.bf16.mxu0 0
        %3140 = vmatpush1.bf16.msra.mxu0 %v3112
        %3141 = vmatprep.subr.bf16.mxu0 0
        %3142 = vmatpush1.bf16.msra.mxu0 %v3111
        %3143 = vmatprep.subr.bf16.mxu0 0
        %3144 = vmatpush2.bf16.msra.mxu0 0
        %3145 = vmatprep.subr.bf16.mxu0 0
        %3146 = vmatpush2.bf16.msra.mxu0 0
        %3147 = vmatprep.subr.bf16.mxu0 0
        %3148 = vmatpush2.bf16.msra.mxu0 0
        %3149 = vmatprep.subr.bf16.mxu0 0
        %3150 = vmatpush2.bf16.msra.mxu0 0
        %3151 = vmatprep.subr.bf16.mxu0 0
        %3152 = vmatpush2.bf16.msra.mxu0 0
        %3153 = vmatprep.subr.bf16.mxu0 0
        %3154 = vmatpush2.bf16.msra.mxu0 0
        %3155 = vmatprep.subr.bf16.mxu0 0
        %3156 = vmatpush2.bf16.msra.mxu0 0
        %3157 = vmatprep.subr.bf16.mxu0 0
        %3158 = vmatpush2.bf16.msra.mxu0 0
        %3159 = vmatprep.mubr.bf16.mxu0 0
        %3160 = vmatmul.mubr.bf16.gmra.mxu0 %v3054
        %v3161 = vpop.f32.mrf.mxu0
        %v3162 = vadd.f32 %v3077, %v3161
        %v3163 = vpop.f32.mrf.mxu0
        %v3164 = vpop.f32.mrf.mxu0
        %v3165 = vadd.f32 %v3077, %v3164
        %v3166 = vpop.f32.mrf.mxu0
        %3167 = vmatprep.mubr.bf16.mxu0 0
        %3168 = vmatmul.mubr.bf16.gmra.mxu0 %v3055
        %v3169 = vpop.f32.mrf.mxu0
        %v3170 = vadd.f32 %v3077, %v3169
        %v3171 = vpop.f32.mrf.mxu0
        %v3172 = vpop.f32.mrf.mxu0
        %v3173 = vadd.f32 %v3077, %v3172
        %v3174 = vpop.f32.mrf.mxu0
        %3175 = vdwg.mxu0
        %v3176 = vmax.f32 %v3162, 0.0
        %v3177 = vmax.f32 %v3165, 0.0
        %v3178 = vmax.f32 %v3170, 0.0
        %v3179 = vmax.f32 %v3173, 0.0
        %v3180 = vpack.c.bf16 %v3177, %v3176
        %v3181 = vpack.c.bf16 %v3179, %v3178
        %v3182 = vld [vmem:[%s882] sm:$0xf]
        %v3183 = vld [vmem:[%s882 + $0x4] sm:$0xf]
        %v3184 = vld [vmem:[%s882 + $0x8] sm:$0xf]
        %v3185 = vld [vmem:[%s882 + $0xc] sm:$0xf]
        %v3186 = vld [vmem:[%s882 + $0x10] sm:$0xf]
        %v3187 = vld [vmem:[%s882 + $0x14] sm:$0xf]
        %v3188 = vld [vmem:[%s882 + $0x18] sm:$0xf]
        %v3189 = vld [vmem:[%s882 + $0x1c] sm:$0xf]
        %v3190 = vld [vmem:[%s882 + $0x20] sm:$0xf]
        %v3191 = vld [vmem:[%s882 + $0x24] sm:$0xf]
        %v3192 = vld [vmem:[%s882 + $0x28] sm:$0xf]
        %v3193 = vld [vmem:[%s882 + $0x2c] sm:$0xf]
        %v3194 = vld [vmem:[%s882 + $0x30] sm:$0xf]
        %v3195 = vld [vmem:[%s882 + $0x34] sm:$0xf]
        %v3196 = vld [vmem:[%s882 + $0x38] sm:$0xf]
        %v3197 = vld [vmem:[%s882 + $0x3c] sm:$0xf]
        %v3198 = vld [vmem:[%s890] sm:$0x1]
        %v3200 = vlaneseq
        %v3201 = vshrl.u32 %v3200, 7
        %v3202 = vsub.s32 0, %v3201
        %v3203 = vrot.slane %v3198, %v3202
        %v3221 = vunpack.c.l.b16 %v3182
        %v3222 = vunpack.c.l.b16 %v3183
        %v3223 = vunpack.c.l.b16 %v3184
        %v3224 = vunpack.c.l.b16 %v3185
        %v3225 = vunpack.c.l.b16 %v3186
        %v3226 = vunpack.c.l.b16 %v3187
        %v3227 = vunpack.c.l.b16 %v3188
        %v3228 = vunpack.c.l.b16 %v3189
        %v3229 = vunpack.c.l.b16 %v3190
        %v3230 = vunpack.c.l.b16 %v3191
        %v3231 = vunpack.c.l.b16 %v3192
        %v3232 = vunpack.c.l.b16 %v3193
        %v3233 = vunpack.c.l.b16 %v3194
        %v3234 = vunpack.c.l.b16 %v3195
        %v3235 = vunpack.c.l.b16 %v3196
        %v3236 = vunpack.c.l.b16 %v3197
        %v3237 = vpack.c.b16 %v3222, %v3221
        %v3238 = vpack.c.b16 %v3224, %v3223
        %v3239 = vpack.c.b16 %v3226, %v3225
        %v3240 = vpack.c.b16 %v3228, %v3227
        %v3241 = vpack.c.b16 %v3230, %v3229
        %v3242 = vpack.c.b16 %v3232, %v3231
        %v3243 = vpack.c.b16 %v3234, %v3233
        %v3244 = vpack.c.b16 %v3236, %v3235
        %3253 = vmatprep.subr.bf16.mxu0 0
        %3254 = vmatpush1.bf16.msra.mxu0 %v3244
        %3255 = vmatprep.subr.bf16.mxu0 0
        %3256 = vmatpush1.bf16.msra.mxu0 %v3243
        %3257 = vmatprep.subr.bf16.mxu0 0
        %3258 = vmatpush1.bf16.msra.mxu0 %v3242
        %3259 = vmatprep.subr.bf16.mxu0 0
        %3260 = vmatpush1.bf16.msra.mxu0 %v3241
        %3261 = vmatprep.subr.bf16.mxu0 0
        %3262 = vmatpush1.bf16.msra.mxu0 %v3240
        %3263 = vmatprep.subr.bf16.mxu0 0
        %3264 = vmatpush1.bf16.msra.mxu0 %v3239
        %3265 = vmatprep.subr.bf16.mxu0 0
        %3266 = vmatpush1.bf16.msra.mxu0 %v3238
        %3267 = vmatprep.subr.bf16.mxu0 0
        %3268 = vmatpush1.bf16.msra.mxu0 %v3237
        %3269 = vmatprep.subr.bf16.mxu0 0
        %3270 = vmatpush2.bf16.msra.mxu0 0
        %3271 = vmatprep.subr.bf16.mxu0 0
        %3272 = vmatpush2.bf16.msra.mxu0 0
        %3273 = vmatprep.subr.bf16.mxu0 0
        %3274 = vmatpush2.bf16.msra.mxu0 0
        %3275 = vmatprep.subr.bf16.mxu0 0
        %3276 = vmatpush2.bf16.msra.mxu0 0
        %3277 = vmatprep.subr.bf16.mxu0 0
        %3278 = vmatpush2.bf16.msra.mxu0 0
        %3279 = vmatprep.subr.bf16.mxu0 0
        %3280 = vmatpush2.bf16.msra.mxu0 0
        %3281 = vmatprep.subr.bf16.mxu0 0
        %3282 = vmatpush2.bf16.msra.mxu0 0
        %3283 = vmatprep.subr.bf16.mxu0 0
        %3284 = vmatpush2.bf16.msra.mxu0 0
        %3285 = vmatprep.mubr.bf16.mxu0 0
        %3286 = vmatmul.mubr.bf16.gmra.mxu0 %v3180
        %v3287 = vpop.f32.mrf.mxu0
        %v3288 = vadd.f32 %v3203, %v3287
        %v3289 = vpop.f32.mrf.mxu0
        %v3290 = vpop.f32.mrf.mxu0
        %v3291 = vadd.f32 %v3203, %v3290
        %v3292 = vpop.f32.mrf.mxu0
        %3293 = vmatprep.mubr.bf16.mxu0 0
        %3294 = vmatmul.mubr.bf16.gmra.mxu0 %v3181
        %v3295 = vpop.f32.mrf.mxu0
        %v3296 = vadd.f32 %v3203, %v3295
        %v3297 = vpop.f32.mrf.mxu0
        %v3298 = vpop.f32.mrf.mxu0
        %v3299 = vadd.f32 %v3203, %v3298
        %v3300 = vpop.f32.mrf.mxu0
        %3301 = vdwg.mxu0
        %v3302 = vadd.f32 %v3050, %v3288
        %v3303 = vadd.f32 %v3051, %v3291
        %v3304 = vadd.f32 %v3052, %v3296
        %v3305 = vadd.f32 %v3053, %v3299
        %3306 = vadd.xlane.f32.xlu0 %v3302
        %v3307 = vpop.xlane.xlu0 %3306
        %3308 = vadd.xlane.f32.xlu0 %v3303
        %v3309 = vpop.xlane.xlu0 %3308
        %3310 = vadd.xlane.f32.xlu0 %v3304
        %v3311 = vpop.xlane.xlu0 %3310
        %3312 = vadd.xlane.f32.xlu0 %v3305
        %v3313 = vpop.xlane.xlu0 %3312
        %v3314 = vmul.f32 %v3307, 0.03125
        %v3315 = vmul.f32 %v3309, 0.03125
        %v3316 = vmul.f32 %v3311, 0.03125
        %v3317 = vmul.f32 %v3313, 0.03125
        %v3318 = vsub.f32 %v3302, %v3314
        %v3319 = vsub.f32 %v3303, %v3315
        %v3320 = vsub.f32 %v3304, %v3316
        %v3321 = vsub.f32 %v3305, %v3317
        %v3322 = vmul.f32 %v3318, %v3318
        %v3323 = vmul.f32 %v3319, %v3319
        %v3324 = vmul.f32 %v3320, %v3320
        %v3325 = vmul.f32 %v3321, %v3321
        %v3326 = vmul.f32 %v3322, %v1050
        %v3327 = vmul.f32 %v3323, %v1050
        %v3328 = vmul.f32 %v3324, %v1050
        %v3329 = vmul.f32 %v3325, %v1050
        %3330 = vadd.xlane.f32.xlu0 %v3326
        %v3331 = vpop.xlane.xlu0 %3330
        %3332 = vadd.xlane.f32.xlu0 %v3327
        %v3333 = vpop.xlane.xlu0 %3332
        %3334 = vadd.xlane.f32.xlu0 %v3328
        %v3335 = vpop.xlane.xlu0 %3334
        %3336 = vadd.xlane.f32.xlu0 %v3329
        %v3337 = vpop.xlane.xlu0 %3336
        %v3338 = vmul.f32 %v3331, 0.03125
        %v3339 = vmul.f32 %v3333, 0.03125
        %v3340 = vmul.f32 %v3335, 0.03125
        %v3341 = vmul.f32 %v3337, 0.03125
        %v3342 = vadd.f32 %v3338, 1e-05
        %v3343 = vadd.f32 %v3339, 1e-05
        %v3344 = vadd.f32 %v3340, 1e-05
        %v3345 = vadd.f32 %v3341, 1e-05
        %v3346 = vrsqrt.pop %v3342
        %v3347 = vrsqrt.pop %v3343
        %v3348 = vrsqrt.pop %v3344
        %v3349 = vrsqrt.pop %v3345
        %v3350 = vmul.f32 %v3318, %v3346
        %v3351 = vmul.f32 %v3319, %v3347
        %v3352 = vmul.f32 %v3320, %v3348
        %v3353 = vmul.f32 %v3321, %v3349
        %v3354 = vlaneseq
        %v3355 = vshrl.u32 %v3354, 7
        %v3356 = vsub.s32 2, %v3355
        %v3357 = vrot.slane %v1057, %v3356
        %v3358 = vmul.f32 %v3350, %v3357
        %v3359 = vmul.f32 %v3351, %v3357
        %v3360 = vmul.f32 %v3352, %v3357
        %v3361 = vmul.f32 %v3353, %v3357
        %v3362 = vlaneseq
        %v3363 = vshrl.u32 %v3362, 7
        %v3364 = vsub.s32 2, %v3363
        %v3365 = vrot.slane %v1058, %v3364
        %v3366 = vadd.f32 %v3358, %v3365
        %v3367 = vadd.f32 %v3359, %v3365
        %v3368 = vadd.f32 %v3360, %v3365
        %v3369 = vadd.f32 %v3361, %v3365
        %3370 = vst [vmem:[#allocation2] sm:$0xff] %v3366
        %3371 = vst [vmem:[#allocation2 + $0x8] sm:$0xff] %v3367
        %3372 = vst [vmem:[#allocation2 + $0x10] sm:$0xff] %v3368
        %3373 = vst [vmem:[#allocation2 + $0x18] sm:$0xff] %v3369
        %p3374 = scmp.eq.s32.totalorder %s37, 1
        // Predicated region
        $region141: #{tpu_custom_call.1} parent=91 // pred_check
          %p3375 = pneg %p3374
        $region142: #{tpu_custom_call.1} parent=91 // pred_check_branch
          %3377 = sbr.rel (%p3375) target = $region144
        $region143: #{tpu_custom_call.1} parent=91 // pred_region
          %v3378 = vld [vmem:[%s16] sm:$0x1]
          %v3379 = vld [vmem:[%s17] sm:$0x1]
          %3380 = vadd.xlane.f32.xlu0 %v3366
          %v3381 = vpop.xlane.xlu0 %3380
          %3382 = vadd.xlane.f32.xlu0 %v3367
          %v3383 = vpop.xlane.xlu0 %3382
          %3384 = vadd.xlane.f32.xlu0 %v3368
          %v3385 = vpop.xlane.xlu0 %3384
          %3386 = vadd.xlane.f32.xlu0 %v3369
          %v3387 = vpop.xlane.xlu0 %3386
          %v3388 = vmul.f32 %v3381, 0.03125
          %v3389 = vmul.f32 %v3383, 0.03125
          %v3390 = vmul.f32 %v3385, 0.03125
          %v3391 = vmul.f32 %v3387, 0.03125
          %v3392 = vsub.f32 %v3366, %v3388
          %v3393 = vsub.f32 %v3367, %v3389
          %v3394 = vsub.f32 %v3368, %v3390
          %v3395 = vsub.f32 %v3369, %v3391
          %v3396 = vmul.f32 %v3392, %v3392
          %v3397 = vmul.f32 %v3393, %v3393
          %v3398 = vmul.f32 %v3394, %v3394
          %v3399 = vmul.f32 %v3395, %v3395
          %v3400 = vmul.f32 %v3396, %v1050
          %v3401 = vmul.f32 %v3397, %v1050
          %v3402 = vmul.f32 %v3398, %v1050
          %v3403 = vmul.f32 %v3399, %v1050
          %3404 = vadd.xlane.f32.xlu0 %v3400
          %v3405 = vpop.xlane.xlu0 %3404
          %3406 = vadd.xlane.f32.xlu0 %v3401
          %v3407 = vpop.xlane.xlu0 %3406
          %3408 = vadd.xlane.f32.xlu0 %v3402
          %v3409 = vpop.xlane.xlu0 %3408
          %3410 = vadd.xlane.f32.xlu0 %v3403
          %v3411 = vpop.xlane.xlu0 %3410
          %v3412 = vmul.f32 %v3405, 0.03125
          %v3413 = vmul.f32 %v3407, 0.03125
          %v3414 = vmul.f32 %v3409, 0.03125
          %v3415 = vmul.f32 %v3411, 0.03125
          %v3416 = vadd.f32 %v3412, 1e-05
          %v3417 = vadd.f32 %v3413, 1e-05
          %v3418 = vadd.f32 %v3414, 1e-05
          %v3419 = vadd.f32 %v3415, 1e-05
          %v3420 = vrsqrt.pop %v3416
          %v3421 = vrsqrt.pop %v3417
          %v3422 = vrsqrt.pop %v3418
          %v3423 = vrsqrt.pop %v3419
          %v3424 = vmul.f32 %v3392, %v3420
          %v3425 = vmul.f32 %v3393, %v3421
          %v3426 = vmul.f32 %v3394, %v3422
          %v3427 = vmul.f32 %v3395, %v3423
          %v3429 = vlaneseq
          %v3430 = vshrl.u32 %v3429, 7
          %v3431 = vsub.s32 0, %v3430
          %v3432 = vrot.slane %v3378, %v3431
          %v3434 = vmul.f32 %v3424, %v3432
          %v3435 = vmul.f32 %v3425, %v3432
          %v3436 = vmul.f32 %v3426, %v3432
          %v3437 = vmul.f32 %v3427, %v3432
          %v3439 = vlaneseq
          %v3440 = vshrl.u32 %v3439, 7
          %v3441 = vsub.s32 0, %v3440
          %v3442 = vrot.slane %v3379, %v3441
          %v3444 = vadd.f32 %v3434, %v3442
          %v3445 = vadd.f32 %v3435, %v3442
          %v3446 = vadd.f32 %v3436, %v3442
          %v3447 = vadd.f32 %v3437, %v3442
          %3448 = vst [vmem:[#allocation17] sm:$0xff] %v3444
          %3449 = vst [vmem:[#allocation17 + $0x8] sm:$0xff] %v3445
          %3450 = vst [vmem:[#allocation17 + $0x10] sm:$0xff] %v3446
          %3451 = vst [vmem:[#allocation17 + $0x18] sm:$0xff] %v3447
        $region144: #{tpu_custom_call.1} parent=91 // pred_fallthru
          _
        // Predicated region
        $region145: #{tpu_custom_call.1} parent=91 // pred_check
          %p3452 = pneg %p520
        $region146: #{tpu_custom_call.1} parent=91 // pred_check_branch
          %3454 = sbr.rel (%p3452) target = $region148
        $region147: #{tpu_custom_call.1} parent=91 // pred_region
          %s3455 = smul.u32 2, %s36
          %s3457 = ssub.s32 512, 512
          %3458 = vsyncadd [#allocation5], %s3457
          %s3459 = smul.addr %s3455, 2
          %s3460 = smul.addr %s3459, 128
          %s3461 = scalar_lea.hbm %s18, %s3460
          %s3462 = sshll.u32 [#allocation17], 4
          %s3463 = int_to_ptr.vmem [resolvable:$true] %s3462
          %3468 = dma.vmem_to_hbm [thread:$0]  %s3463, 512, %s3461, [#allocation5], 128, 128, 8
        $region148: #{tpu_custom_call.1} parent=91 // pred_fallthru
          _
        // Predicated region
        $region149: #{tpu_custom_call.1} parent=91 // pred_check
          %p3469 = pneg %p520
        $region150: #{tpu_custom_call.1} parent=91 // pred_check_branch
          %3471 = sbr.rel (%p3469) target = $region152
        $region151: #{tpu_custom_call.1} parent=91 // pred_region
          %3472 = dma.done [#allocation5], 512
        $region152: #{tpu_custom_call.1} parent=91 // pred_fallthru
          _
      $region92: #{tpu_custom_call.1} parent=5 // pred_fallthru
        _
      %p3473 = scmp.le.s32.totalorder 2, %s27
      // Predicated region
      $region153: #{tpu_custom_call.1} parent=5 // pred_check
        %p3474 = pneg %p3473
      $region154: #{tpu_custom_call.1} parent=5 // pred_check_branch
        %3476 = sbr.rel (%p3474) target = $region156
      $region155: #{tpu_custom_call.1} parent=5 // pred_region
        %s3477 = ssub.s32 %s27, 2
      $region156: #{tpu_custom_call.1} parent=5 // pred_fallthru
        _
    $region6: #{tpu_custom_call.1} parent=1 // loop_footer
      %s31 = sadd.s32 1, %s27
    $region7: #{tpu_custom_call.1} parent=1 // loop_footer_branch
      %26 = sbr.rel target = $region3
    $region8: #{tpu_custom_call.1} parent=1 // loop_exit
      _
    %3478 = vsyncpa [#allocation4], 1
    %s3479 = scalar_lea.sflag [#allocation4], 1
    %3480 = vsyncpa %s3479, 1
    %3481 = vsyncpa [#allocation7], 1
    %3482 = vsyncpa [#allocation5], 1
    %s3483 = scalar_lea.sflag [#allocation5], 1
    %3484 = vsyncpa %s3483, 1

</llo_original>
